<compile_context>
chip_gen: v7x
topology: tpu7x:2x2x1
jax: 0.10.0
libtpu: 0.0.40
codegen_flags: <defaults>
</compile_context>

<pallas_src>
import numpy as np
import jax
import jax.numpy as jnp
from jax.experimental import pallas as pl
from jax.experimental.pallas import tpu as pltpu

# ----------------------------- constants / parameters -----------------------

MAPPING_KEYS = (2, 3, 4, 6, 8, 9, 11, 12, 13)   # label ids -> dict index 0..8
TGC = 8.0
ALPHA_BOUNDARY = 0.1
BETA_SCATTERING = 10.0
KSIZE = 5
PAD = KSIZE // 2

# Deterministic parameter initialisation (module __init__ defaults).
ACOUSTIC_IMPED_DEF = jnp.array([0.0004, 1.38, 1.61, 1.62, 1.62, 0.3, 1.65, 1.63, 7.8],
                               dtype=jnp.float32)
ATTENUATION_DEF = jnp.array([1.64, 0.63, 0.18, 1.0, 1.09, 0.54, 0.7, 0.54, 5.0],
                            dtype=jnp.float32)
MU_0_DEF = jnp.array([0.78, 0.5, 0.001, 0.45, 0.45, 0.3, 0.4, 0.45, 0.78],
                     dtype=jnp.float32)
MU_1_DEF = jnp.array([0.56, 0.5, 0.0, 0.6, 0.64, 0.2, 0.8, 0.64, 0.56],
                     dtype=jnp.float32)
SIGMA_0_DEF = jnp.array([0.1, 0.0, 0.01, 0.3, 0.1, 0.0, 0.14, 0.1, 0.1],
                        dtype=jnp.float32)


def _gaussian_1d(size=KSIZE, sigma=1.0):
    # TODO(synk): original module uses a module-level `g_kernel` PSF built
    # elsewhere; deterministic separable Gaussian stand-in (outer(g1, g1)).
    ax = np.arange(size, dtype=np.float64) - (size - 1) / 2.0
    k = np.exp(-(ax ** 2) / (2.0 * sigma ** 2))
    return (k / k.sum()).astype(np.float32)


G1 = _gaussian_1d()                       # (5,), outer(G1, G1) == 5x5 PSF


def _band_matrix(n):
    """Symmetric banded (n, n) matrix B: B @ x filters rows, x @ B filters
    columns, both with the zero-padded 5-tap Gaussian ('same' conv)."""
    m = np.zeros((n, n), dtype=np.float32)
    for t in range(-PAD, PAD + 1):
        m += np.eye(n, k=t, dtype=np.float32) * float(G1[t + PAD])
    return m


# ----------------------------- the Pallas kernel -----------------------------

def _us_render_kernel(dicts_ref,                       # (5, 9) SMEM, prefetched
                      ct_ref, noise_ref, scatp_ref,    # (H, W) per-slice blocks
                      gain_ref,                        # (1, W)   resident, f32
                      tri_ref,                         # (W, W)   resident
                      band_ref,                        # (W, W)   resident
                      fliph_ref,                       # (H, H)   resident
                      mask_ref,                        # (W, H)   resident, f32
                      out_ref):                        # (W, H)
    H, W = ct_ref.shape
    dot_dt = tri_ref.dtype                 # bf16 (default) or f32 MXU operands
    ct = ct_ref[...]                       # int32 label map

    # --- map_dict_to_array, key-outer: one mask live at a time ---------------
    # TODO(synk): on v6e/v7x the att/mu/sigma select chains could run in packed
    # bf16 (v5e VPU has no bf16); kept f32 here for portability.
    zero = jnp.zeros((H, W), jnp.float32)
    imped, natt, mu0, mu1, sig0 = zero, zero, zero, zero, zero
    for k, key in enumerate(MAPPING_KEYS):
        m = ct == key
        imped = jnp.where(m, dicts_ref[0, k], imped)   # impedance (unclamped, as torch)
        natt = jnp.where(m, dicts_ref[1, k], natt)     # -clip(att,0,10)*dists
        mu0 = jnp.where(m, dicts_ref[2, k], mu0)       # clip 0..1 in wrapper
        mu1 = jnp.where(m, dicts_ref[3, k], mu1)
        sig0 = jnp.where(m, dicts_ref[4, k], sig0)

    # --- boundary / reflection maps (rot90s folded into lane shifts) ---------
    col = jax.lax.broadcasted_iota(jnp.int32, (H, W), 1)
    not_last = col < (W - 1)
    not_first = col > 0

    nxt = pltpu.roll(imped, W - 1, axis=1)                       # imped[:, j+1]
    diff = jnp.where(not_last, imped - nxt, 0.0)                 # torch.diff + 0 pad
    prv = jnp.where(not_first, pltpu.roll(imped, 1, axis=1), 0.0)  # imped[:, j-1]
    ssum = imped + prv
    ssum = jnp.where(ssum == 0.0, 1.0, ssum)
    div = diff * pl.reciprocal(ssum, approx=True)                # EUP vrcp
    boundary = 1.0 - jnp.exp(diff * diff * (-1.0 / ALPHA_BOUNDARY))
    refl = jax.nn.sigmoid(div * div)

    # --- scattering texture ---------------------------------------------------
    sig_map = jax.nn.sigmoid(BETA_SCATTERING * (mu1 - scatp_ref[...]))
    scatterers = sig_map * (noise_ref[...] * sig0 + mu0)

    # --- cumulative products along depth: one stacked triangular matmul ------
    log_rt = jnp.log(jnp.maximum(1.0 - refl * boundary, 1e-30))
    cum_in = jnp.concatenate([natt, log_rt], axis=0).astype(dot_dt)   # (2H, W)
    tot = jnp.exp(jnp.dot(cum_in, tri_ref[...],
                          preferred_element_type=jnp.float32))        # (2H, W)
    att_total = tot[:H] * gain_ref[...]                 # exp(-cumsum(att*dists))*gain
    refl_total = tot[H:]                                # cumprod(1 - refl*boundary)

    # --- separable 'same' 5x5 Gaussian PSF: both passes on the MXU -----------
    band = band_ref[...]
    sb = jnp.concatenate([scatterers, boundary], axis=0).astype(dot_dt)  # (2H, W)
    colp = jnp.dot(sb, band, preferred_element_type=jnp.float32)        # lane pass
    scat_c = jnp.dot(band, colp[:H].astype(dot_dt),
                     preferred_element_type=jnp.float32)                # row pass
    bound_c = jnp.dot(band, colp[H:].astype(dot_dt),
                      preferred_element_type=jnp.float32)

    b = att_total * scat_c
    r = att_total * refl_total * refl * bound_c
    intensity = jnp.clip(b + r, 0.0, 1.0)

    # --- fused torch.rot90(intensity * mask.T, 3):
    #     rot[i, j] = intensity[H-1-j, i] via one MXU dot with a 0/1 flip -----
    rot = jax.lax.dot_general(intensity.astype(dot_dt), fliph_ref[...],
                              (((0,), (0,)), ((), ())),
                              preferred_element_type=jnp.float32)       # (W, H)
    out_ref[...] = rot * mask_ref[...]


# ----------------------------- wrapper (glue) --------------------------------

def ultrasound_rendering_forward(ct_slice,
                                 acoustic_impedance_dict=ACOUSTIC_IMPED_DEF,
                                 attenuation_dict=ATTENUATION_DEF,
                                 mu_0_dict=MU_0_DEF,
                                 mu_1_dict=MU_1_DEF,
                                 sigma_0_dict=SIGMA_0_DEF,
                                 texture_noise=None,
                                 scattering_probability=None,
                                 us_mask=None,
                                 use_bf16_mxu=True):
    """Forward pass.

    ct_slice: (H, W) or (B, H, W) int label map, labels in MAPPING_KEYS.
    Like the torch module, a square slice (H == W) is assumed (the mask
    transpose-multiply requires it).  Returns rot90(intensity*mask.T, 3),
    i.e. (W, H) per slice.
    """
    squeeze = (ct_slice.ndim == 2)
    if squeeze:
        ct_slice = ct_slice[None]
        texture_noise = texture_noise[None]
        scattering_probability = scattering_probability[None]
    B, H, W = ct_slice.shape
    assert H == W, "square slices required (mask transpose-multiply, as in torch module)"
    # H, W should be multiples of 128 for lane-dense stores / full MXU tiles
    # (the module's native 256x256 and this demo's 128x128 both are).

    # clamp_map_ranges() hoisted onto the 9-entry dictionaries (mapping is a
    # pure selection, so this is mathematically identical); the uniform ray
    # spacing dists = 4/(W-1) and the attenuation negation are folded in too.
    dists = 4.0 / float(W - 1)
    dicts = jnp.stack([
        acoustic_impedance_dict.astype(jnp.float32),    # NOT clamped before use
        -(jnp.clip(attenuation_dict.astype(jnp.float32), 0.0, 10.0) * dists),
        jnp.clip(mu_0_dict.astype(jnp.float32), 0.0, 1.0),
        jnp.clip(mu_1_dict.astype(jnp.float32), 0.0, 1.0),
        jnp.clip(sigma_0_dict.astype(jnp.float32), 0.0, 1.0),
    ])                                                  # (5, 9) -> SMEM prefetch

    gain = jnp.linspace(1.0, TGC, W, dtype=jnp.float32)[None, :]        # (1, W)

    # Constant operator matrices (resident in VMEM across grid steps).
    # bf16 operands: tri/fliph are exact 0/1; the Gaussian band and the dot
    # LHS operands (att*dists, log-reflectance, images in [0,1]) tolerate bf16;
    # accumulation stays f32 via preferred_element_type.
    op_dt = jnp.bfloat16 if use_bf16_mxu else jnp.float32
    tri = jnp.asarray(np.triu(np.ones((W, W), dtype=np.float32))).astype(op_dt)
    band = jnp.asarray(_band_matrix(W)).astype(op_dt)                   # PSF band
    fliph = jnp.asarray(np.eye(H, dtype=np.float32)[::-1].copy()).astype(op_dt)

    # Binarised, pre-rotated mask: mask_rot[i, j] = (us_mask[i, H-1-j] > 0).
    mask_rot = jnp.flip((us_mask > 0.0).astype(jnp.float32), axis=1)    # (W, H)

    grid_spec = pltpu.PrefetchScalarGridSpec(
        num_scalar_prefetch=1,
        grid=(B,),
        in_specs=[
            pl.BlockSpec((None, H, W), lambda b, d: (b, 0, 0)),   # ct (int32)
            pl.BlockSpec((None, H, W), lambda b, d: (b, 0, 0)),   # texture noise
            pl.BlockSpec((None, H, W), lambda b, d: (b, 0, 0)),   # scattering prob
            pl.BlockSpec((1, W), lambda b, d: (0, 0)),            # gain  (resident)
            pl.BlockSpec((W, W), lambda b, d: (0, 0)),            # tri   (resident)
            pl.BlockSpec((W, W), lambda b, d: (0, 0)),            # band  (resident)
            pl.BlockSpec((H, H), lambda b, d: (0, 0)),            # flip  (resident)
            pl.BlockSpec((W, H), lambda b, d: (0, 0)),            # mask  (resident)
        ],
        out_specs=pl.BlockSpec((None, W, H), lambda b, d: (b, 0, 0)),
    )

    # Advisory cost estimate: 5 dots/slice + ~7 transcendentals/elem.
    hw = H * W
    op_bytes = 2 if use_bf16_mxu else 4
    dot_flops = 8 * H * W * W + 6 * H * H * W
    cost = pl.CostEstimate(
        flops=int(B * (dot_flops + 90 * hw)),
        transcendentals=int(B * 7 * hw),
        bytes_accessed=int(B * 16 * hw + dicts.size * 4 + gain.size * 4
                           + (tri.size + band.size + fliph.size) * op_bytes
                           + mask_rot.size * 4),
    )

    # TODO(synk): for slices >= 512^2 on v7x, tile H (2-row conv halo) and give
    # the resident operands pipeline_mode=pl.Buffered(1); a whole 256^2 slice
    # fits VMEM comfortably on every generation so it is not needed here.
    out = pl.pallas_call(
        _us_render_kernel,
        out_shape=jax.ShapeDtypeStruct((B, W, H), jnp.float32),
        grid_spec=grid_spec,
        compiler_params=pltpu.CompilerParams(
            dimension_semantics=("parallel",),
            vmem_limit_bytes=48 * 1024 * 1024),
        cost_estimate=cost,
    )(dicts,
      ct_slice.astype(jnp.int32),
      texture_noise.astype(jnp.float32),
      scattering_probability.astype(jnp.float32),
      gain, tri, band, fliph, mask_rot)

    return out[0] if squeeze else out


def synthetic_us_mask(H, W):
    # TODO(synk): original loads 'us_convex_mask.png' from disk; deterministic
    # fan-shaped (convex-probe) stand-in computed in-script instead.
    yy, xx = np.meshgrid(np.arange(H, dtype=np.float32),
                         np.arange(W, dtype=np.float32), indexing="ij")
    dx = xx - (W - 1) / 2.0
    dy = yy + 0.35 * H
    ang = np.arctan2(dx, dy)
    rad = np.hypot(dx, dy)
    m = (np.abs(ang) < np.deg2rad(30.0)) & (rad > 0.35 * H) & (rad < 1.3 * H)
    return jnp.asarray(m.astype(np.float32))


# ----------------------------- demo ------------------------------------------

if __name__ == "__main__":
    B, S = 2, 128   # small square label maps; lane-friendly (last dim = 128)

    key = jax.random.PRNGKey(0)
    k_lbl, k_tex, k_scat = jax.random.split(key, 3)

    label_keys = jnp.array(MAPPING_KEYS, dtype=jnp.int32)
    idx = jax.random.randint(k_lbl, (B, S, S), 0, len(MAPPING_KEYS))
    ct_slices = label_keys[idx]                                  # (B, S, S) labels

    # torch.randn(H, W) inside rendering() -> supplied deterministically here.
    texture_noise = jax.random.normal(k_tex, (B, S, S), dtype=jnp.float32)
    scattering_probability = jax.random.normal(k_scat, (B, S, S), dtype=jnp.float32)

    us_mask = synthetic_us_mask(S, S)

    out = ultrasound_rendering_forward(
        ct_slices,
        texture_noise=texture_noise,
        scattering_probability=scattering_probability,
        us_mask=us_mask)
    out = jax.block_until_ready(out)

    assert out.shape == (B, S, S) and out.dtype == jnp.float32
    assert bool(jnp.all(jnp.isfinite(out)))
    print("KERNEL_OK")
</pallas_src>

<mosaic_0001>
module attributes {stable_mosaic.version = 11 : i64} {
  func.func @_us_render_kernel(%arg0: i32, %arg1: memref<5x9xf32, #tpu.memory_space<smem>>, %arg2: memref<1x128x128xi32, #tpu.memory_space<vmem>>, %arg3: memref<1x128x128xf32, #tpu.memory_space<vmem>>, %arg4: memref<1x128x128xf32, #tpu.memory_space<vmem>>, %arg5: memref<1x128xf32, #tpu.memory_space<vmem>>, %arg6: memref<128x128xbf16, #tpu.memory_space<vmem>>, %arg7: memref<128x128xbf16, #tpu.memory_space<vmem>>, %arg8: memref<128x128xbf16, #tpu.memory_space<vmem>>, %arg9: memref<128x128xf32, #tpu.memory_space<vmem>>, %arg10: memref<1x128x128xf32, #tpu.memory_space<vmem>>) attributes {dimension_semantics = [#tpu.dimension_semantics<parallel>], iteration_bounds = array<i64: 2>, scalar_prefetch = 1 : i64, scratch_operands = 0 : i64, tpu.core_type = #tpu.core_type<tc>, window_params = [{transform_indices = @transform_0, window_bounds = array<i64: 1, 128, 128>}, {transform_indices = @transform_1, window_bounds = array<i64: 1, 128, 128>}, {transform_indices = @transform_2, window_bounds = array<i64: 1, 128, 128>}, {pipeline_mode = #tpu.pipeline_mode<synchronous>, transform_indices = @transform_3, window_bounds = array<i64: 1, 128>}, {pipeline_mode = #tpu.pipeline_mode<synchronous>, transform_indices = @transform_4, window_bounds = array<i64: 128, 128>}, {pipeline_mode = #tpu.pipeline_mode<synchronous>, transform_indices = @transform_5, window_bounds = array<i64: 128, 128>}, {pipeline_mode = #tpu.pipeline_mode<synchronous>, transform_indices = @transform_6, window_bounds = array<i64: 128, 128>}, {pipeline_mode = #tpu.pipeline_mode<synchronous>, transform_indices = @transform_7, window_bounds = array<i64: 128, 128>}, {transform_indices = @transform_8, window_bounds = array<i64: 1, 128, 128>}]} {
    %c0 = arith.constant 0 : index
    %c0_0 = arith.constant 0 : index
    %c0_1 = arith.constant 0 : index
    %0 = vector.load %arg2[%c0, %c0_0, %c0_1] : memref<1x128x128xi32, #tpu.memory_space<vmem>>, vector<1x128x128xi32>
    %1 = vector.shape_cast %0 : vector<1x128x128xi32> to vector<128x128xi32>
    %cst = arith.constant 0.000000e+00 : f32
    %2 = vector.broadcast %cst : f32 to vector<128x128xf32>
    %c2_i32 = arith.constant 2 : i32
    %3 = vector.broadcast %c2_i32 : i32 to vector<128x128xi32>
    %4 = arith.cmpi eq, %1, %3 : vector<128x128xi32>
    %c0_2 = arith.constant 0 : index
    %c0_3 = arith.constant 0 : index
    %5 = memref.load %arg1[%c0_2, %c0_3] : memref<5x9xf32, #tpu.memory_space<smem>>
    %6 = vector.broadcast %5 : f32 to vector<128x128xf32>
    %7 = arith.select %4, %6, %2 : vector<128x128xi1>, vector<128x128xf32>
    %c1 = arith.constant 1 : index
    %c0_4 = arith.constant 0 : index
    %8 = memref.load %arg1[%c1, %c0_4] : memref<5x9xf32, #tpu.memory_space<smem>>
    %9 = vector.broadcast %8 : f32 to vector<128x128xf32>
    %10 = arith.select %4, %9, %2 : vector<128x128xi1>, vector<128x128xf32>
    %c2 = arith.constant 2 : index
    %c0_5 = arith.constant 0 : index
    %11 = memref.load %arg1[%c2, %c0_5] : memref<5x9xf32, #tpu.memory_space<smem>>
    %12 = vector.broadcast %11 : f32 to vector<128x128xf32>
    %13 = arith.select %4, %12, %2 : vector<128x128xi1>, vector<128x128xf32>
    %c3 = arith.constant 3 : index
    %c0_6 = arith.constant 0 : index
    %14 = memref.load %arg1[%c3, %c0_6] : memref<5x9xf32, #tpu.memory_space<smem>>
    %15 = vector.broadcast %14 : f32 to vector<128x128xf32>
    %16 = arith.select %4, %15, %2 : vector<128x128xi1>, vector<128x128xf32>
    %c4 = arith.constant 4 : index
    %c0_7 = arith.constant 0 : index
    %17 = memref.load %arg1[%c4, %c0_7] : memref<5x9xf32, #tpu.memory_space<smem>>
    %18 = vector.broadcast %17 : f32 to vector<128x128xf32>
    %19 = arith.select %4, %18, %2 : vector<128x128xi1>, vector<128x128xf32>
    %c3_i32 = arith.constant 3 : i32
    %20 = vector.broadcast %c3_i32 : i32 to vector<128x128xi32>
    %21 = arith.cmpi eq, %1, %20 : vector<128x128xi32>
    %c0_8 = arith.constant 0 : index
    %c1_9 = arith.constant 1 : index
    %22 = memref.load %arg1[%c0_8, %c1_9] : memref<5x9xf32, #tpu.memory_space<smem>>
    %23 = vector.broadcast %22 : f32 to vector<128x128xf32>
    %24 = arith.select %21, %23, %7 : vector<128x128xi1>, vector<128x128xf32>
    %c1_10 = arith.constant 1 : index
    %c1_11 = arith.constant 1 : index
    %25 = memref.load %arg1[%c1_10, %c1_11] : memref<5x9xf32, #tpu.memory_space<smem>>
    %26 = vector.broadcast %25 : f32 to vector<128x128xf32>
    %27 = arith.select %21, %26, %10 : vector<128x128xi1>, vector<128x128xf32>
    %c2_12 = arith.constant 2 : index
    %c1_13 = arith.constant 1 : index
    %28 = memref.load %arg1[%c2_12, %c1_13] : memref<5x9xf32, #tpu.memory_space<smem>>
    %29 = vector.broadcast %28 : f32 to vector<128x128xf32>
    %30 = arith.select %21, %29, %13 : vector<128x128xi1>, vector<128x128xf32>
    %c3_14 = arith.constant 3 : index
    %c1_15 = arith.constant 1 : index
    %31 = memref.load %arg1[%c3_14, %c1_15] : memref<5x9xf32, #tpu.memory_space<smem>>
    %32 = vector.broadcast %31 : f32 to vector<128x128xf32>
    %33 = arith.select %21, %32, %16 : vector<128x128xi1>, vector<128x128xf32>
    %c4_16 = arith.constant 4 : index
    %c1_17 = arith.constant 1 : index
    %34 = memref.load %arg1[%c4_16, %c1_17] : memref<5x9xf32, #tpu.memory_space<smem>>
    %35 = vector.broadcast %34 : f32 to vector<128x128xf32>
    %36 = arith.select %21, %35, %19 : vector<128x128xi1>, vector<128x128xf32>
    %c4_i32 = arith.constant 4 : i32
    %37 = vector.broadcast %c4_i32 : i32 to vector<128x128xi32>
    %38 = arith.cmpi eq, %1, %37 : vector<128x128xi32>
    %c0_18 = arith.constant 0 : index
    %c2_19 = arith.constant 2 : index
    %39 = memref.load %arg1[%c0_18, %c2_19] : memref<5x9xf32, #tpu.memory_space<smem>>
    %40 = vector.broadcast %39 : f32 to vector<128x128xf32>
    %41 = arith.select %38, %40, %24 : vector<128x128xi1>, vector<128x128xf32>
    %c1_20 = arith.constant 1 : index
    %c2_21 = arith.constant 2 : index
    %42 = memref.load %arg1[%c1_20, %c2_21] : memref<5x9xf32, #tpu.memory_space<smem>>
    %43 = vector.broadcast %42 : f32 to vector<128x128xf32>
    %44 = arith.select %38, %43, %27 : vector<128x128xi1>, vector<128x128xf32>
    %c2_22 = arith.constant 2 : index
    %c2_23 = arith.constant 2 : index
    %45 = memref.load %arg1[%c2_22, %c2_23] : memref<5x9xf32, #tpu.memory_space<smem>>
    %46 = vector.broadcast %45 : f32 to vector<128x128xf32>
    %47 = arith.select %38, %46, %30 : vector<128x128xi1>, vector<128x128xf32>
    %c3_24 = arith.constant 3 : index
    %c2_25 = arith.constant 2 : index
    %48 = memref.load %arg1[%c3_24, %c2_25] : memref<5x9xf32, #tpu.memory_space<smem>>
    %49 = vector.broadcast %48 : f32 to vector<128x128xf32>
    %50 = arith.select %38, %49, %33 : vector<128x128xi1>, vector<128x128xf32>
    %c4_26 = arith.constant 4 : index
    %c2_27 = arith.constant 2 : index
    %51 = memref.load %arg1[%c4_26, %c2_27] : memref<5x9xf32, #tpu.memory_space<smem>>
    %52 = vector.broadcast %51 : f32 to vector<128x128xf32>
    %53 = arith.select %38, %52, %36 : vector<128x128xi1>, vector<128x128xf32>
    %c6_i32 = arith.constant 6 : i32
    %54 = vector.broadcast %c6_i32 : i32 to vector<128x128xi32>
    %55 = arith.cmpi eq, %1, %54 : vector<128x128xi32>
    %c0_28 = arith.constant 0 : index
    %c3_29 = arith.constant 3 : index
    %56 = memref.load %arg1[%c0_28, %c3_29] : memref<5x9xf32, #tpu.memory_space<smem>>
    %57 = vector.broadcast %56 : f32 to vector<128x128xf32>
    %58 = arith.select %55, %57, %41 : vector<128x128xi1>, vector<128x128xf32>
    %c1_30 = arith.constant 1 : index
    %c3_31 = arith.constant 3 : index
    %59 = memref.load %arg1[%c1_30, %c3_31] : memref<5x9xf32, #tpu.memory_space<smem>>
    %60 = vector.broadcast %59 : f32 to vector<128x128xf32>
    %61 = arith.select %55, %60, %44 : vector<128x128xi1>, vector<128x128xf32>
    %c2_32 = arith.constant 2 : index
    %c3_33 = arith.constant 3 : index
    %62 = memref.load %arg1[%c2_32, %c3_33] : memref<5x9xf32, #tpu.memory_space<smem>>
    %63 = vector.broadcast %62 : f32 to vector<128x128xf32>
    %64 = arith.select %55, %63, %47 : vector<128x128xi1>, vector<128x128xf32>
    %c3_34 = arith.constant 3 : index
    %c3_35 = arith.constant 3 : index
    %65 = memref.load %arg1[%c3_34, %c3_35] : memref<5x9xf32, #tpu.memory_space<smem>>
    %66 = vector.broadcast %65 : f32 to vector<128x128xf32>
    %67 = arith.select %55, %66, %50 : vector<128x128xi1>, vector<128x128xf32>
    %c4_36 = arith.constant 4 : index
    %c3_37 = arith.constant 3 : index
    %68 = memref.load %arg1[%c4_36, %c3_37] : memref<5x9xf32, #tpu.memory_space<smem>>
    %69 = vector.broadcast %68 : f32 to vector<128x128xf32>
    %70 = arith.select %55, %69, %53 : vector<128x128xi1>, vector<128x128xf32>
    %c8_i32 = arith.constant 8 : i32
    %71 = vector.broadcast %c8_i32 : i32 to vector<128x128xi32>
    %72 = arith.cmpi eq, %1, %71 : vector<128x128xi32>
    %c0_38 = arith.constant 0 : index
    %c4_39 = arith.constant 4 : index
    %73 = memref.load %arg1[%c0_38, %c4_39] : memref<5x9xf32, #tpu.memory_space<smem>>
    %74 = vector.broadcast %73 : f32 to vector<128x128xf32>
    %75 = arith.select %72, %74, %58 : vector<128x128xi1>, vector<128x128xf32>
    %c1_40 = arith.constant 1 : index
    %c4_41 = arith.constant 4 : index
    %76 = memref.load %arg1[%c1_40, %c4_41] : memref<5x9xf32, #tpu.memory_space<smem>>
    %77 = vector.broadcast %76 : f32 to vector<128x128xf32>
    %78 = arith.select %72, %77, %61 : vector<128x128xi1>, vector<128x128xf32>
    %c2_42 = arith.constant 2 : index
    %c4_43 = arith.constant 4 : index
    %79 = memref.load %arg1[%c2_42, %c4_43] : memref<5x9xf32, #tpu.memory_space<smem>>
    %80 = vector.broadcast %79 : f32 to vector<128x128xf32>
    %81 = arith.select %72, %80, %64 : vector<128x128xi1>, vector<128x128xf32>
    %c3_44 = arith.constant 3 : index
    %c4_45 = arith.constant 4 : index
    %82 = memref.load %arg1[%c3_44, %c4_45] : memref<5x9xf32, #tpu.memory_space<smem>>
    %83 = vector.broadcast %82 : f32 to vector<128x128xf32>
    %84 = arith.select %72, %83, %67 : vector<128x128xi1>, vector<128x128xf32>
    %c4_46 = arith.constant 4 : index
    %c4_47 = arith.constant 4 : index
    %85 = memref.load %arg1[%c4_46, %c4_47] : memref<5x9xf32, #tpu.memory_space<smem>>
    %86 = vector.broadcast %85 : f32 to vector<128x128xf32>
    %87 = arith.select %72, %86, %70 : vector<128x128xi1>, vector<128x128xf32>
    %c9_i32 = arith.constant 9 : i32
    %88 = vector.broadcast %c9_i32 : i32 to vector<128x128xi32>
    %89 = arith.cmpi eq, %1, %88 : vector<128x128xi32>
    %c0_48 = arith.constant 0 : index
    %c5 = arith.constant 5 : index
    %90 = memref.load %arg1[%c0_48, %c5] : memref<5x9xf32, #tpu.memory_space<smem>>
    %91 = vector.broadcast %90 : f32 to vector<128x128xf32>
    %92 = arith.select %89, %91, %75 : vector<128x128xi1>, vector<128x128xf32>
    %c1_49 = arith.constant 1 : index
    %c5_50 = arith.constant 5 : index
    %93 = memref.load %arg1[%c1_49, %c5_50] : memref<5x9xf32, #tpu.memory_space<smem>>
    %94 = vector.broadcast %93 : f32 to vector<128x128xf32>
    %95 = arith.select %89, %94, %78 : vector<128x128xi1>, vector<128x128xf32>
    %c2_51 = arith.constant 2 : index
    %c5_52 = arith.constant 5 : index
    %96 = memref.load %arg1[%c2_51, %c5_52] : memref<5x9xf32, #tpu.memory_space<smem>>
    %97 = vector.broadcast %96 : f32 to vector<128x128xf32>
    %98 = arith.select %89, %97, %81 : vector<128x128xi1>, vector<128x128xf32>
    %c3_53 = arith.constant 3 : index
    %c5_54 = arith.constant 5 : index
    %99 = memref.load %arg1[%c3_53, %c5_54] : memref<5x9xf32, #tpu.memory_space<smem>>
    %100 = vector.broadcast %99 : f32 to vector<128x128xf32>
    %101 = arith.select %89, %100, %84 : vector<128x128xi1>, vector<128x128xf32>
    %c4_55 = arith.constant 4 : index
    %c5_56 = arith.constant 5 : index
    %102 = memref.load %arg1[%c4_55, %c5_56] : memref<5x9xf32, #tpu.memory_space<smem>>
    %103 = vector.broadcast %102 : f32 to vector<128x128xf32>
    %104 = arith.select %89, %103, %87 : vector<128x128xi1>, vector<128x128xf32>
    %c11_i32 = arith.constant 11 : i32
    %105 = vector.broadcast %c11_i32 : i32 to vector<128x128xi32>
    %106 = arith.cmpi eq, %1, %105 : vector<128x128xi32>
    %c0_57 = arith.constant 0 : index
    %c6 = arith.constant 6 : index
    %107 = memref.load %arg1[%c0_57, %c6] : memref<5x9xf32, #tpu.memory_space<smem>>
    %108 = vector.broadcast %107 : f32 to vector<128x128xf32>
    %109 = arith.select %106, %108, %92 : vector<128x128xi1>, vector<128x128xf32>
    %c1_58 = arith.constant 1 : index
    %c6_59 = arith.constant 6 : index
    %110 = memref.load %arg1[%c1_58, %c6_59] : memref<5x9xf32, #tpu.memory_space<smem>>
    %111 = vector.broadcast %110 : f32 to vector<128x128xf32>
    %112 = arith.select %106, %111, %95 : vector<128x128xi1>, vector<128x128xf32>
    %c2_60 = arith.constant 2 : index
    %c6_61 = arith.constant 6 : index
    %113 = memref.load %arg1[%c2_60, %c6_61] : memref<5x9xf32, #tpu.memory_space<smem>>
    %114 = vector.broadcast %113 : f32 to vector<128x128xf32>
    %115 = arith.select %106, %114, %98 : vector<128x128xi1>, vector<128x128xf32>
    %c3_62 = arith.constant 3 : index
    %c6_63 = arith.constant 6 : index
    %116 = memref.load %arg1[%c3_62, %c6_63] : memref<5x9xf32, #tpu.memory_space<smem>>
    %117 = vector.broadcast %116 : f32 to vector<128x128xf32>
    %118 = arith.select %106, %117, %101 : vector<128x128xi1>, vector<128x128xf32>
    %c4_64 = arith.constant 4 : index
    %c6_65 = arith.constant 6 : index
    %119 = memref.load %arg1[%c4_64, %c6_65] : memref<5x9xf32, #tpu.memory_space<smem>>
    %120 = vector.broadcast %119 : f32 to vector<128x128xf32>
    %121 = arith.select %106, %120, %104 : vector<128x128xi1>, vector<128x128xf32>
    %c12_i32 = arith.constant 12 : i32
    %122 = vector.broadcast %c12_i32 : i32 to vector<128x128xi32>
    %123 = arith.cmpi eq, %1, %122 : vector<128x128xi32>
    %c0_66 = arith.constant 0 : index
    %c7 = arith.constant 7 : index
    %124 = memref.load %arg1[%c0_66, %c7] : memref<5x9xf32, #tpu.memory_space<smem>>
    %125 = vector.broadcast %124 : f32 to vector<128x128xf32>
    %126 = arith.select %123, %125, %109 : vector<128x128xi1>, vector<128x128xf32>
    %c1_67 = arith.constant 1 : index
    %c7_68 = arith.constant 7 : index
    %127 = memref.load %arg1[%c1_67, %c7_68] : memref<5x9xf32, #tpu.memory_space<smem>>
    %128 = vector.broadcast %127 : f32 to vector<128x128xf32>
    %129 = arith.select %123, %128, %112 : vector<128x128xi1>, vector<128x128xf32>
    %c2_69 = arith.constant 2 : index
    %c7_70 = arith.constant 7 : index
    %130 = memref.load %arg1[%c2_69, %c7_70] : memref<5x9xf32, #tpu.memory_space<smem>>
    %131 = vector.broadcast %130 : f32 to vector<128x128xf32>
    %132 = arith.select %123, %131, %115 : vector<128x128xi1>, vector<128x128xf32>
    %c3_71 = arith.constant 3 : index
    %c7_72 = arith.constant 7 : index
    %133 = memref.load %arg1[%c3_71, %c7_72] : memref<5x9xf32, #tpu.memory_space<smem>>
    %134 = vector.broadcast %133 : f32 to vector<128x128xf32>
    %135 = arith.select %123, %134, %118 : vector<128x128xi1>, vector<128x128xf32>
    %c4_73 = arith.constant 4 : index
    %c7_74 = arith.constant 7 : index
    %136 = memref.load %arg1[%c4_73, %c7_74] : memref<5x9xf32, #tpu.memory_space<smem>>
    %137 = vector.broadcast %136 : f32 to vector<128x128xf32>
    %138 = arith.select %123, %137, %121 : vector<128x128xi1>, vector<128x128xf32>
    %c13_i32 = arith.constant 13 : i32
    %139 = vector.broadcast %c13_i32 : i32 to vector<128x128xi32>
    %140 = arith.cmpi eq, %1, %139 : vector<128x128xi32>
    %c0_75 = arith.constant 0 : index
    %c8 = arith.constant 8 : index
    %141 = memref.load %arg1[%c0_75, %c8] : memref<5x9xf32, #tpu.memory_space<smem>>
    %142 = vector.broadcast %141 : f32 to vector<128x128xf32>
    %143 = arith.select %140, %142, %126 : vector<128x128xi1>, vector<128x128xf32>
    %c1_76 = arith.constant 1 : index
    %c8_77 = arith.constant 8 : index
    %144 = memref.load %arg1[%c1_76, %c8_77] : memref<5x9xf32, #tpu.memory_space<smem>>
    %145 = vector.broadcast %144 : f32 to vector<128x128xf32>
    %146 = arith.select %140, %145, %129 : vector<128x128xi1>, vector<128x128xf32>
    %c2_78 = arith.constant 2 : index
    %c8_79 = arith.constant 8 : index
    %147 = memref.load %arg1[%c2_78, %c8_79] : memref<5x9xf32, #tpu.memory_space<smem>>
    %148 = vector.broadcast %147 : f32 to vector<128x128xf32>
    %149 = arith.select %140, %148, %132 : vector<128x128xi1>, vector<128x128xf32>
    %c3_80 = arith.constant 3 : index
    %c8_81 = arith.constant 8 : index
    %150 = memref.load %arg1[%c3_80, %c8_81] : memref<5x9xf32, #tpu.memory_space<smem>>
    %151 = vector.broadcast %150 : f32 to vector<128x128xf32>
    %152 = arith.select %140, %151, %135 : vector<128x128xi1>, vector<128x128xf32>
    %c4_82 = arith.constant 4 : index
    %c8_83 = arith.constant 8 : index
    %153 = memref.load %arg1[%c4_82, %c8_83] : memref<5x9xf32, #tpu.memory_space<smem>>
    %154 = vector.broadcast %153 : f32 to vector<128x128xf32>
    %155 = arith.select %140, %154, %138 : vector<128x128xi1>, vector<128x128xf32>
    %156 = tpu.iota {dimensions = array<i32: 1>} : vector<128x128xi32>
    %c127_i32 = arith.constant 127 : i32
    %157 = vector.broadcast %c127_i32 : i32 to vector<128x128xi32>
    %158 = arith.cmpi slt, %156, %157 : vector<128x128xi32>
    %c0_i32 = arith.constant 0 : i32
    %159 = vector.broadcast %c0_i32 : i32 to vector<128x128xi32>
    %160 = arith.cmpi sgt, %156, %159 : vector<128x128xi32>
    %c127_i32_84 = arith.constant 127 : i32
    %161 = tpu.dynamic_rotate %143 by %c127_i32_84 dim 1 : vector<128x128xf32>, i32 -> vector<128x128xf32>
    %162 = arith.subf %143, %161 : vector<128x128xf32>
    %cst_85 = arith.constant 0.000000e+00 : f32
    %163 = vector.broadcast %cst_85 : f32 to vector<128x128xf32>
    %164 = arith.select %158, %162, %163 : vector<128x128xi1>, vector<128x128xf32>
    %c1_i32 = arith.constant 1 : i32
    %165 = tpu.dynamic_rotate %143 by %c1_i32 dim 1 : vector<128x128xf32>, i32 -> vector<128x128xf32>
    %cst_86 = arith.constant 0.000000e+00 : f32
    %166 = vector.broadcast %cst_86 : f32 to vector<128x128xf32>
    %167 = arith.select %160, %165, %166 : vector<128x128xi1>, vector<128x128xf32>
    %168 = arith.addf %143, %167 : vector<128x128xf32>
    %cst_87 = arith.constant 0.000000e+00 : f32
    %169 = vector.broadcast %cst_87 : f32 to vector<128x128xf32>
    %170 = arith.cmpf oeq, %168, %169 : vector<128x128xf32>
    %cst_88 = arith.constant 1.000000e+00 : f32
    %171 = vector.broadcast %cst_88 : f32 to vector<128x128xf32>
    %172 = arith.select %170, %171, %168 : vector<128x128xi1>, vector<128x128xf32>
    %173 = tpu.reciprocal %172 {approx = true} : vector<128x128xf32> -> vector<128x128xf32>
    %174 = arith.mulf %164, %173 : vector<128x128xf32>
    %175 = arith.mulf %164, %164 : vector<128x128xf32>
    %cst_89 = arith.constant -1.000000e+01 : f32
    %176 = vector.broadcast %cst_89 : f32 to vector<128x128xf32>
    %177 = arith.mulf %175, %176 : vector<128x128xf32>
    %178 = math.exp %177 : vector<128x128xf32>
    %cst_90 = arith.constant 1.000000e+00 : f32
    %179 = vector.broadcast %cst_90 : f32 to vector<128x128xf32>
    %180 = arith.subf %179, %178 : vector<128x128xf32>
    %181 = arith.mulf %174, %174 : vector<128x128xf32>
    %182 = arith.negf %181 : vector<128x128xf32>
    %183 = math.exp %182 : vector<128x128xf32>
    %cst_91 = arith.constant 1.000000e+00 : f32
    %184 = vector.broadcast %cst_91 : f32 to vector<128x128xf32>
    %185 = arith.addf %184, %183 : vector<128x128xf32>
    %186 = arith.divf %184, %185 : vector<128x128xf32>
    %c0_92 = arith.constant 0 : index
    %c0_93 = arith.constant 0 : index
    %c0_94 = arith.constant 0 : index
    %187 = vector.load %arg4[%c0_92, %c0_93, %c0_94] : memref<1x128x128xf32, #tpu.memory_space<vmem>>, vector<1x128x128xf32>
    %188 = vector.shape_cast %187 : vector<1x128x128xf32> to vector<128x128xf32>
    %189 = arith.subf %152, %188 : vector<128x128xf32>
    %cst_95 = arith.constant 1.000000e+01 : f32
    %190 = vector.broadcast %cst_95 : f32 to vector<128x128xf32>
    %191 = arith.mulf %190, %189 : vector<128x128xf32>
    %192 = arith.negf %191 : vector<128x128xf32>
    %193 = math.exp %192 : vector<128x128xf32>
    %cst_96 = arith.constant 1.000000e+00 : f32
    %194 = vector.broadcast %cst_96 : f32 to vector<128x128xf32>
    %195 = arith.addf %194, %193 : vector<128x128xf32>
    %196 = arith.divf %194, %195 : vector<128x128xf32>
    %c0_97 = arith.constant 0 : index
    %c0_98 = arith.constant 0 : index
    %c0_99 = arith.constant 0 : index
    %197 = vector.load %arg3[%c0_97, %c0_98, %c0_99] : memref<1x128x128xf32, #tpu.memory_space<vmem>>, vector<1x128x128xf32>
    %198 = vector.shape_cast %197 : vector<1x128x128xf32> to vector<128x128xf32>
    %199 = arith.mulf %198, %155 : vector<128x128xf32>
    %200 = arith.addf %199, %149 : vector<128x128xf32>
    %201 = arith.mulf %196, %200 : vector<128x128xf32>
    %202 = arith.mulf %186, %180 : vector<128x128xf32>
    %cst_100 = arith.constant 1.000000e+00 : f32
    %203 = vector.broadcast %cst_100 : f32 to vector<128x128xf32>
    %204 = arith.subf %203, %202 : vector<128x128xf32>
    %cst_101 = arith.constant 1.000000e-30 : f32
    %205 = vector.broadcast %cst_101 : f32 to vector<128x128xf32>
    %206 = arith.maximumf %204, %205 : vector<128x128xf32>
    %207 = math.log %206 : vector<128x128xf32>
    %208 = tpu.concatenate %146, %207 in 0 : vector<128x128xf32>, vector<128x128xf32> -> vector<256x128xf32>
    %209 = arith.truncf %208 : vector<256x128xf32> to vector<256x128xbf16>
    %c0_102 = arith.constant 0 : index
    %c0_103 = arith.constant 0 : index
    %210 = vector.load %arg6[%c0_102, %c0_103] : memref<128x128xbf16, #tpu.memory_space<vmem>>, vector<128x128xbf16>
    %cst_104 = arith.constant dense<0.000000e+00> : vector<256x128xf32>
    %211 = tpu.matmul %209, %210, %cst_104 {dimension_numbers = #tpu.dot_dimension_numbers<[1], [0], [0], [1], [0, 0, 1, 1], [], []>} : vector<256x128xbf16>, vector<128x128xbf16>, vector<256x128xf32> -> vector<256x128xf32>
    %212 = math.exp %211 : vector<256x128xf32>
    %213 = vector.extract_strided_slice %212 {offsets = [0, 0], sizes = [128, 128], strides = [1, 1]} : vector<256x128xf32> to vector<128x128xf32>
    %c0_105 = arith.constant 0 : index
    %c0_106 = arith.constant 0 : index
    %214 = vector.load %arg5[%c0_105, %c0_106] : memref<1x128xf32, #tpu.memory_space<vmem>>, vector<1x128xf32>
    %215 = vector.broadcast %214 : vector<1x128xf32> to vector<128x128xf32>
    %216 = arith.mulf %213, %215 : vector<128x128xf32>
    %217 = vector.extract_strided_slice %212 {offsets = [128, 0], sizes = [128, 128], strides = [1, 1]} : vector<256x128xf32> to vector<128x128xf32>
    %c0_107 = arith.constant 0 : index
    %c0_108 = arith.constant 0 : index
    %218 = vector.load %arg7[%c0_107, %c0_108] : memref<128x128xbf16, #tpu.memory_space<vmem>>, vector<128x128xbf16>
    %219 = tpu.concatenate %201, %180 in 0 : vector<128x128xf32>, vector<128x128xf32> -> vector<256x128xf32>
    %220 = arith.truncf %219 : vector<256x128xf32> to vector<256x128xbf16>
    %cst_109 = arith.constant dense<0.000000e+00> : vector<256x128xf32>
    %221 = tpu.matmul %220, %218, %cst_109 {dimension_numbers = #tpu.dot_dimension_numbers<[1], [0], [0], [1], [0, 0, 1, 1], [], []>} : vector<256x128xbf16>, vector<128x128xbf16>, vector<256x128xf32> -> vector<256x128xf32>
    %222 = vector.extract_strided_slice %221 {offsets = [0, 0], sizes = [128, 128], strides = [1, 1]} : vector<256x128xf32> to vector<128x128xf32>
    %223 = arith.truncf %222 : vector<128x128xf32> to vector<128x128xbf16>
    %cst_110 = arith.constant dense<0.000000e+00> : vector<128x128xf32>
    %224 = tpu.matmul %218, %223, %cst_110 {dimension_numbers = #tpu.dot_dimension_numbers<[1], [0], [0], [1], [0, 0, 1, 1], [], []>} : vector<128x128xbf16>, vector<128x128xbf16>, vector<128x128xf32> -> vector<128x128xf32>
    %225 = vector.extract_strided_slice %221 {offsets = [128, 0], sizes = [128, 128], strides = [1, 1]} : vector<256x128xf32> to vector<128x128xf32>
    %226 = arith.truncf %225 : vector<128x128xf32> to vector<128x128xbf16>
    %cst_111 = arith.constant dense<0.000000e+00> : vector<128x128xf32>
    %227 = tpu.matmul %218, %226, %cst_111 {dimension_numbers = #tpu.dot_dimension_numbers<[1], [0], [0], [1], [0, 0, 1, 1], [], []>} : vector<128x128xbf16>, vector<128x128xbf16>, vector<128x128xf32> -> vector<128x128xf32>
    %228 = arith.mulf %216, %224 : vector<128x128xf32>
    %229 = arith.mulf %216, %217 : vector<128x128xf32>
    %230 = arith.mulf %229, %186 : vector<128x128xf32>
    %231 = arith.mulf %230, %227 : vector<128x128xf32>
    %232 = arith.addf %228, %231 : vector<128x128xf32>
    %cst_112 = arith.constant 0.000000e+00 : f32
    %cst_113 = arith.constant 1.000000e+00 : f32
    %233 = vector.broadcast %cst_112 : f32 to vector<128x128xf32>
    %234 = arith.maximumf %233, %232 : vector<128x128xf32>
    %235 = vector.broadcast %cst_113 : f32 to vector<128x128xf32>
    %236 = arith.minimumf %235, %234 : vector<128x128xf32>
    %237 = arith.truncf %236 : vector<128x128xf32> to vector<128x128xbf16>
    %c0_114 = arith.constant 0 : index
    %c0_115 = arith.constant 0 : index
    %238 = vector.load %arg8[%c0_114, %c0_115] : memref<128x128xbf16, #tpu.memory_space<vmem>>, vector<128x128xbf16>
    %cst_116 = arith.constant dense<0.000000e+00> : vector<128x128xf32>
    %239 = tpu.matmul %237, %238, %cst_116 {dimension_numbers = #tpu.dot_dimension_numbers<[0], [0], [1], [1], [0, 1, 1, 1], [], []>} : vector<128x128xbf16>, vector<128x128xbf16>, vector<128x128xf32> -> vector<128x128xf32>
    %c0_117 = arith.constant 0 : index
    %c0_118 = arith.constant 0 : index
    %240 = vector.load %arg9[%c0_117, %c0_118] : memref<128x128xf32, #tpu.memory_space<vmem>>, vector<128x128xf32>
    %241 = arith.mulf %239, %240 : vector<128x128xf32>
    %c0_119 = arith.constant 0 : index
    %c0_120 = arith.constant 0 : index
    %c0_121 = arith.constant 0 : index
    %242 = vector.load %arg10[%c0_119, %c0_120, %c0_121] : memref<1x128x128xf32, #tpu.memory_space<vmem>>, vector<1x128x128xf32>
    %243 = vector.shape_cast %242 : vector<1x128x128xf32> to vector<128x128xf32>
    %244 = vector.shape_cast %241 : vector<128x128xf32> to vector<1x128x128xf32>
    tpu.vector_store %arg10[%c0_119, %c0_120, %c0_121], %244 {strides = array<i32>} : memref<1x128x128xf32, #tpu.memory_space<vmem>>, vector<1x128x128xf32>,
    return
  }
  func.func @transform_0(%arg0: i32, %arg1: memref<5x9xf32, #tpu.memory_space<smem>>) -> (i32, i32, i32) {
    %c0_i32 = arith.constant 0 : i32
    %c0_i32_0 = arith.constant 0 : i32
    %c0_i32_1 = arith.constant 0 : i32
    return %arg0, %c0_i32, %c0_i32_0 : i32, i32, i32
  }
  func.func @transform_1(%arg0: i32, %arg1: memref<5x9xf32, #tpu.memory_space<smem>>) -> (i32, i32, i32) {
    %c0_i32 = arith.constant 0 : i32
    %c0_i32_0 = arith.constant 0 : i32
    %c0_i32_1 = arith.constant 0 : i32
    return %arg0, %c0_i32, %c0_i32_0 : i32, i32, i32
  }
  func.func @transform_2(%arg0: i32, %arg1: memref<5x9xf32, #tpu.memory_space<smem>>) -> (i32, i32, i32) {
    %c0_i32 = arith.constant 0 : i32
    %c0_i32_0 = arith.constant 0 : i32
    %c0_i32_1 = arith.constant 0 : i32
    return %arg0, %c0_i32, %c0_i32_0 : i32, i32, i32
  }
  func.func @transform_3(%arg0: i32, %arg1: memref<5x9xf32, #tpu.memory_space<smem>>) -> (i32, i32) {
    %c0_i32 = arith.constant 0 : i32
    %c0_i32_0 = arith.constant 0 : i32
    %c0_i32_1 = arith.constant 0 : i32
    return %c0_i32, %c0_i32_0 : i32, i32
  }
  func.func @transform_4(%arg0: i32, %arg1: memref<5x9xf32, #tpu.memory_space<smem>>) -> (i32, i32) {
    %c0_i32 = arith.constant 0 : i32
    %c0_i32_0 = arith.constant 0 : i32
    %c0_i32_1 = arith.constant 0 : i32
    return %c0_i32, %c0_i32_0 : i32, i32
  }
  func.func @transform_5(%arg0: i32, %arg1: memref<5x9xf32, #tpu.memory_space<smem>>) -> (i32, i32) {
    %c0_i32 = arith.constant 0 : i32
    %c0_i32_0 = arith.constant 0 : i32
    %c0_i32_1 = arith.constant 0 : i32
    return %c0_i32, %c0_i32_0 : i32, i32
  }
  func.func @transform_6(%arg0: i32, %arg1: memref<5x9xf32, #tpu.memory_space<smem>>) -> (i32, i32) {
    %c0_i32 = arith.constant 0 : i32
    %c0_i32_0 = arith.constant 0 : i32
    %c0_i32_1 = arith.constant 0 : i32
    return %c0_i32, %c0_i32_0 : i32, i32
  }
  func.func @transform_7(%arg0: i32, %arg1: memref<5x9xf32, #tpu.memory_space<smem>>) -> (i32, i32) {
    %c0_i32 = arith.constant 0 : i32
    %c0_i32_0 = arith.constant 0 : i32
    %c0_i32_1 = arith.constant 0 : i32
    return %c0_i32, %c0_i32_0 : i32, i32
  }
  func.func @transform_8(%arg0: i32, %arg1: memref<5x9xf32, #tpu.memory_space<smem>>) -> (i32, i32, i32) {
    %c0_i32 = arith.constant 0 : i32
    %c0_i32_0 = arith.constant 0 : i32
    %c0_i32_1 = arith.constant 0 : i32
    return %arg0, %c0_i32, %c0_i32_0 : i32, i32, i32
  }
}

</mosaic_0001>

<llo_original>
// kernel: tpu_custom_call.1
$region0: #{tpu_custom_call.1}
  #allocation0 [shape = 'u32[]', space=smem, size = 0x4, offset = 0x4, fixed_abs, tag = 'smem constant byte address 0x4 - core index']
  #allocation1 [shape = 'u32[144,128]{1,0:T(1,128)}', space=vmem, size = 0x12000, scoped, tag = 'internal scratch']
  #allocation2 [shape = 's32[1]{0}', space=sflag, size = 0x4, scoped, tag = 'scoped memory for tpu_custom_call.1']
  #allocation3 [shape = 'u8[4096]{0}', space=smem, size = 0x1000, scoped, tag = 'prefetched SMEM operand 0']
  %s0 = inlined_call_operand.hbm [shape: f32[5,9], index: 0, kind: input, shape index: {}]
  %s1 = inlined_call_operand.hbm [shape: s32[2,128,128], index: 1, kind: input, shape index: {}]
  %s2 = inlined_call_operand.hbm [shape: f32[2,128,128], index: 2, kind: input, shape index: {}]
  %s3 = inlined_call_operand.hbm [shape: f32[2,128,128], index: 3, kind: input, shape index: {}]
  %s4 = inlined_call_operand.vmem [shape: f32[1,128], index: 4, kind: input, shape index: {}]
  %s5 = inlined_call_operand.hbm [shape: bf16[128,128], index: 5, kind: input, shape index: {}]
  %s6 = inlined_call_operand.hbm [shape: bf16[128,128], index: 6, kind: input, shape index: {}]
  %s7 = inlined_call_operand.hbm [shape: bf16[128,128], index: 7, kind: input, shape index: {}]
  %s8 = inlined_call_operand.hbm [shape: f32[128,128], index: 8, kind: input, shape index: {}]
  %s9 = inlined_call_operand.hbm [shape: f32[2,128,128], index: 9, kind: output, shape index: {}]
  %s10 = sld [smem:[#allocation0]]
  $region93: #{tpu_custom_call.1} parent=0
    _
  %s12 = ssub.s32 1, %s10
  %s13 = scalar_select 0, %s12, %s10
  %15 = dma.hbm_to_smem %s0, 128, [#allocation3], [#allocation2]
  %16 = dma.done [#allocation2], 128
  %17 = sfence
  $region1: #{tpu_custom_call.1} parent=0
    #allocation4 [shape = 'u8[131072]{0}', space=vmem, size = 0x20000, scoped, tag = 'input window, operand 1']
    #allocation5 [shape = 's32[2]{0}', space=sflag, size = 0x8, scoped, tag = 'scoped memory for tpu_custom_call.1']
    #allocation6 [shape = 's32[2]{0}', space=sflag, size = 0x8, scoped, tag = 'scoped memory for tpu_custom_call.1']
    #allocation7 [shape = 'u8[131072]{0}', space=vmem, size = 0x20000, scoped, tag = 'input window, operand 2']
    #allocation8 [shape = 's32[2]{0}', space=sflag, size = 0x8, scoped, tag = 'scoped memory for tpu_custom_call.1']
    #allocation9 [shape = 'u8[131072]{0}', space=vmem, size = 0x20000, scoped, tag = 'input window, operand 3']
    #allocation10 [shape = 'u8[32768]{0}', space=vmem, size = 0x8000, scoped, tag = 'input window, operand 5, single buffered']
    #allocation11 [shape = 's32[1]{0}', space=sflag, size = 0x4, scoped, tag = 'scoped memory for tpu_custom_call.1']
    #allocation12 [shape = 'u8[32768]{0}', space=vmem, size = 0x8000, scoped, tag = 'input window, operand 6, single buffered']
    #allocation13 [shape = 'u8[32768]{0}', space=vmem, size = 0x8000, scoped, tag = 'input window, operand 7, single buffered']
    #allocation14 [shape = 's32[1]{0}', space=sflag, size = 0x4, scoped, tag = 'scoped memory for tpu_custom_call.1']
    #allocation15 [shape = 'u8[65536]{0}', space=vmem, size = 0x10000, scoped, tag = 'input window, operand 8, single buffered']
    #allocation16 [shape = 'u8[131072]{0}', space=vmem, size = 0x20000, scoped, tag = 'output window, operand 0']
    %18 = vsyncpa [#allocation5], 0
    %s19 = scalar_lea.sflag [#allocation5], 1
    %20 = vsyncpa %s19, 0
    %21 = vsyncpa [#allocation8], 0
    %s22 = scalar_lea.sflag [#allocation8], 1
    %23 = vsyncpa %s22, 0
    %24 = vsyncpa [#allocation11], 0
    %25 = vsyncpa [#allocation14], 0
    %26 = vsyncpa [#allocation6], 0
    %s27 = scalar_lea.sflag [#allocation6], 1
    %28 = vsyncpa %s27, 0
    loop: start=0, step=1, limit=4
    $region2: #{tpu_custom_call.1} parent=1 // loop_pre_header
      _
    $region3: #{tpu_custom_call.1} parent=1 // loop_header
      %s30 = sphi 0, %s34
      %p31 = scmp.ge.s32.totalorder %s30, 4
      %s40 = sphi 0, %s42
      %s43 = sphi 0, %s40
      %s44 = sphi 0, %s43
      %s60 = sphi 0, %s44
      %s66 = sphi 0, %s68
      %s69 = sphi 0, %s66
      %s70 = sphi 0, %s69
      %s86 = sphi 0, %s70
      %s92 = sphi 0, %s94
      %s95 = sphi 0, %s92
      %s96 = sphi 0, %s95
      %s112 = sphi 0, %s96
      %s116 = sphi 0, %s116
      %s118 = sphi 0, %s116
      %s119 = sphi 0, %s118
      %s133 = sphi 0, %s119
      %s137 = sphi 0, %s137
      %s139 = sphi 0, %s137
      %s140 = sphi 0, %s139
      %s154 = sphi 0, %s140
      %s158 = sphi 0, %s158
      %s160 = sphi 0, %s158
      %s161 = sphi 0, %s160
      %s175 = sphi 0, %s161
      %s179 = sphi 0, %s179
      %s181 = sphi 0, %s179
      %s182 = sphi 0, %s181
      %s196 = sphi 0, %s182
      %s200 = sphi 0, %s200
      %s202 = sphi 0, %s200
      %s203 = sphi 0, %s202
      %s217 = sphi 0, %s203
      %s223 = sphi 0, %s225
      %s226 = sphi 0, %s223
      %s227 = sphi 0, %s226
      %s243 = sphi 0, %s227
    $region4: #{tpu_custom_call.1} parent=1 // loop_header_branch
      %33 = sbr.rel (%p31) target = $region8
    $region5: #{tpu_custom_call.1} parent=1 // loop_body
      %s35 = ssub.s32 %s30, 1
      %s36 = ssub.s32 %s30, 2
      %s37 = sadd.s32 %s30, 1
      %s38 = ssub.s32 %s30, %s37
      %p39 = scmp.eq.s32.totalorder %s38, 0
      %s41 = sadd.s32 %s40, 1
      %s42 = scalar_select %p39, %s40, %s41
      %p45 = pneg %p39
      %p46 = scmp.eq.s32.totalorder %s30, 1
      %p47 = por %p45, %p46
      %p48 = scmp.ne.s32.totalorder %s40, %s43
      %p49 = scmp.eq.s32.totalorder %s30, 0
      %p50 = por %p48, %p49
      %p51 = scmp.ne.s32.totalorder %s40, %s43
      %p52 = scmp.eq.s32.totalorder %s35, 1
      %p53 = por %p51, %p52
      %p54 = scmp.ne.s32.totalorder %s43, %s44
      %p55 = scmp.eq.s32.totalorder %s35, 0
      %p56 = por %p54, %p55
      %p57 = scmp.ne.s32.totalorder %s43, %s44
      %p58 = scmp.eq.s32.totalorder %s36, 1
      %p59 = por %p57, %p58
      %p61 = scmp.ne.s32.totalorder %s44, %s60
      %p62 = scmp.eq.s32.totalorder %s36, 0
      %p63 = por %p61, %p62
      %s64 = ssub.s32 %s30, %s37
      %p65 = scmp.eq.s32.totalorder %s64, 0
      %s67 = sadd.s32 %s66, 1
      %s68 = scalar_select %p65, %s66, %s67
      %p71 = pneg %p65
      %p72 = scmp.eq.s32.totalorder %s30, 1
      %p73 = por %p71, %p72
      %p74 = scmp.ne.s32.totalorder %s66, %s69
      %p75 = scmp.eq.s32.totalorder %s30, 0
      %p76 = por %p74, %p75
      %p77 = scmp.ne.s32.totalorder %s66, %s69
      %p78 = scmp.eq.s32.totalorder %s35, 1
      %p79 = por %p77, %p78
      %p80 = scmp.ne.s32.totalorder %s69, %s70
      %p81 = scmp.eq.s32.totalorder %s35, 0
      %p82 = por %p80, %p81
      %p83 = scmp.ne.s32.totalorder %s69, %s70
      %p84 = scmp.eq.s32.totalorder %s36, 1
      %p85 = por %p83, %p84
      %p87 = scmp.ne.s32.totalorder %s70, %s86
      %p88 = scmp.eq.s32.totalorder %s36, 0
      %p89 = por %p87, %p88
      %s90 = ssub.s32 %s30, %s37
      %p91 = scmp.eq.s32.totalorder %s90, 0
      %s93 = sadd.s32 %s92, 1
      %s94 = scalar_select %p91, %s92, %s93
      %p97 = pneg %p91
      %p98 = scmp.eq.s32.totalorder %s30, 1
      %p99 = por %p97, %p98
      %p100 = scmp.ne.s32.totalorder %s92, %s95
      %p101 = scmp.eq.s32.totalorder %s30, 0
      %p102 = por %p100, %p101
      %p103 = scmp.ne.s32.totalorder %s92, %s95
      %p104 = scmp.eq.s32.totalorder %s35, 1
      %p105 = por %p103, %p104
      %p106 = scmp.ne.s32.totalorder %s95, %s96
      %p107 = scmp.eq.s32.totalorder %s35, 0
      %p108 = por %p106, %p107
      %p109 = scmp.ne.s32.totalorder %s95, %s96
      %p110 = scmp.eq.s32.totalorder %s36, 1
      %p111 = por %p109, %p110
      %p113 = scmp.ne.s32.totalorder %s96, %s112
      %p114 = scmp.eq.s32.totalorder %s36, 0
      %p115 = por %p113, %p114
      %s117 = sadd.s32 %s116, 1
      %p120 = scmp.eq.s32.totalorder %s30, 1
      %p121 = scmp.ne.s32.totalorder %s116, %s118
      %p122 = scmp.eq.s32.totalorder %s30, 0
      %p123 = por %p121, %p122
      %p124 = scmp.ne.s32.totalorder %s116, %s118
      %p125 = scmp.eq.s32.totalorder %s35, 1
      %p126 = por %p124, %p125
      %p127 = scmp.ne.s32.totalorder %s118, %s119
      %p128 = scmp.eq.s32.totalorder %s35, 0
      %p129 = por %p127, %p128
      %p130 = scmp.ne.s32.totalorder %s118, %s119
      %p131 = scmp.eq.s32.totalorder %s36, 1
      %p132 = por %p130, %p131
      %p134 = scmp.ne.s32.totalorder %s119, %s133
      %p135 = scmp.eq.s32.totalorder %s36, 0
      %p136 = por %p134, %p135
      %s138 = sadd.s32 %s137, 1
      %p141 = scmp.eq.s32.totalorder %s30, 1
      %p142 = scmp.ne.s32.totalorder %s137, %s139
      %p143 = scmp.eq.s32.totalorder %s30, 0
      %p144 = por %p142, %p143
      %p145 = scmp.ne.s32.totalorder %s137, %s139
      %p146 = scmp.eq.s32.totalorder %s35, 1
      %p147 = por %p145, %p146
      %p148 = scmp.ne.s32.totalorder %s139, %s140
      %p149 = scmp.eq.s32.totalorder %s35, 0
      %p150 = por %p148, %p149
      %p151 = scmp.ne.s32.totalorder %s139, %s140
      %p152 = scmp.eq.s32.totalorder %s36, 1
      %p153 = por %p151, %p152
      %p155 = scmp.ne.s32.totalorder %s140, %s154
      %p156 = scmp.eq.s32.totalorder %s36, 0
      %p157 = por %p155, %p156
      %s159 = sadd.s32 %s158, 1
      %p162 = scmp.eq.s32.totalorder %s30, 1
      %p163 = scmp.ne.s32.totalorder %s158, %s160
      %p164 = scmp.eq.s32.totalorder %s30, 0
      %p165 = por %p163, %p164
      %p166 = scmp.ne.s32.totalorder %s158, %s160
      %p167 = scmp.eq.s32.totalorder %s35, 1
      %p168 = por %p166, %p167
      %p169 = scmp.ne.s32.totalorder %s160, %s161
      %p170 = scmp.eq.s32.totalorder %s35, 0
      %p171 = por %p169, %p170
      %p172 = scmp.ne.s32.totalorder %s160, %s161
      %p173 = scmp.eq.s32.totalorder %s36, 1
      %p174 = por %p172, %p173
      %p176 = scmp.ne.s32.totalorder %s161, %s175
      %p177 = scmp.eq.s32.totalorder %s36, 0
      %p178 = por %p176, %p177
      %s180 = sadd.s32 %s179, 1
      %p183 = scmp.eq.s32.totalorder %s30, 1
      %p184 = scmp.ne.s32.totalorder %s179, %s181
      %p185 = scmp.eq.s32.totalorder %s30, 0
      %p186 = por %p184, %p185
      %p187 = scmp.ne.s32.totalorder %s179, %s181
      %p188 = scmp.eq.s32.totalorder %s35, 1
      %p189 = por %p187, %p188
      %p190 = scmp.ne.s32.totalorder %s181, %s182
      %p191 = scmp.eq.s32.totalorder %s35, 0
      %p192 = por %p190, %p191
      %p193 = scmp.ne.s32.totalorder %s181, %s182
      %p194 = scmp.eq.s32.totalorder %s36, 1
      %p195 = por %p193, %p194
      %p197 = scmp.ne.s32.totalorder %s182, %s196
      %p198 = scmp.eq.s32.totalorder %s36, 0
      %p199 = por %p197, %p198
      %s201 = sadd.s32 %s200, 1
      %p204 = scmp.eq.s32.totalorder %s30, 1
      %p205 = scmp.ne.s32.totalorder %s200, %s202
      %p206 = scmp.eq.s32.totalorder %s30, 0
      %p207 = por %p205, %p206
      %p208 = scmp.ne.s32.totalorder %s200, %s202
      %p209 = scmp.eq.s32.totalorder %s35, 1
      %p210 = por %p208, %p209
      %p211 = scmp.ne.s32.totalorder %s202, %s203
      %p212 = scmp.eq.s32.totalorder %s35, 0
      %p213 = por %p211, %p212
      %p214 = scmp.ne.s32.totalorder %s202, %s203
      %p215 = scmp.eq.s32.totalorder %s36, 1
      %p216 = por %p214, %p215
      %p218 = scmp.ne.s32.totalorder %s203, %s217
      %p219 = scmp.eq.s32.totalorder %s36, 0
      %p220 = por %p218, %p219
      %s221 = ssub.s32 %s30, %s37
      %p222 = scmp.eq.s32.totalorder %s221, 0
      %s224 = sadd.s32 %s223, 1
      %s225 = scalar_select %p222, %s223, %s224
      %p228 = pneg %p222
      %p229 = scmp.eq.s32.totalorder %s30, 1
      %p230 = por %p228, %p229
      %p231 = scmp.ne.s32.totalorder %s223, %s226
      %p232 = scmp.eq.s32.totalorder %s30, 0
      %p233 = por %p231, %p232
      %p234 = scmp.ne.s32.totalorder %s223, %s226
      %p235 = scmp.eq.s32.totalorder %s35, 1
      %p236 = por %p234, %p235
      %p237 = scmp.ne.s32.totalorder %s226, %s227
      %p238 = scmp.eq.s32.totalorder %s35, 0
      %p239 = por %p237, %p238
      %p240 = scmp.ne.s32.totalorder %s226, %s227
      %p241 = scmp.eq.s32.totalorder %s36, 1
      %p242 = por %p240, %p241
      %p244 = scmp.ne.s32.totalorder %s227, %s243
      %p245 = scmp.eq.s32.totalorder %s36, 0
      %p246 = por %p244, %p245
      %p247 = scmp.le.s32.totalorder 1, %s30
      %p248 = scmp.lt.s32.totalorder %s30, 3
      %p249 = pnand %p247, %p248
      %p250 = pneg %p249
      // Predicated region
      $region9: #{tpu_custom_call.1} parent=5 // pred_check
        _
      $region10: #{tpu_custom_call.1} parent=5 // pred_check_branch
        %252 = sbr.rel (%p249) target = $region12
      $region11: #{tpu_custom_call.1} parent=5 // pred_region
        %s253 = ssub.s32 %s30, 1
        // Predicated region
        $region13: #{tpu_custom_call.1} parent=11 // pred_check
          %p254 = pneg %p129
        $region14: #{tpu_custom_call.1} parent=11 // pred_check_branch
          %256 = sbr.rel (%p254) target = $region16
        $region15: #{tpu_custom_call.1} parent=11 // pred_region
          _
        $region16: #{tpu_custom_call.1} parent=11 // pred_fallthru
          _
        // Predicated region
        $region17: #{tpu_custom_call.1} parent=11 // pred_check
          %p257 = pneg %p150
        $region18: #{tpu_custom_call.1} parent=11 // pred_check_branch
          %259 = sbr.rel (%p257) target = $region20
        $region19: #{tpu_custom_call.1} parent=11 // pred_region
          %s261 = ssub.s32 1024, 1024
          %262 = vsyncadd [#allocation11], %s261
          %s263 = sshll.u32 [#allocation10], 4
          %s264 = int_to_ptr.vmem [resolvable:$true] %s263
          %269 = dma.hbm_to_vmem [thread:$0]  %s5, 1024, %s264, [#allocation11], 64, 64, 4
        $region20: #{tpu_custom_call.1} parent=11 // pred_fallthru
          _
        // Predicated region
        $region21: #{tpu_custom_call.1} parent=11 // pred_check
          %p270 = pneg %p171
        $region22: #{tpu_custom_call.1} parent=11 // pred_check_branch
          %272 = sbr.rel (%p270) target = $region24
        $region23: #{tpu_custom_call.1} parent=11 // pred_region
          %s274 = ssub.s32 1024, 1024
          %275 = vsyncadd [#allocation11], %s274
          %s276 = sshll.u32 [#allocation12], 4
          %s277 = int_to_ptr.vmem [resolvable:$true] %s276
          %282 = dma.hbm_to_vmem [thread:$0]  %s6, 1024, %s277, [#allocation11], 64, 64, 4
        $region24: #{tpu_custom_call.1} parent=11 // pred_fallthru
          _
        // Predicated region
        $region25: #{tpu_custom_call.1} parent=11 // pred_check
          %p283 = pneg %p192
        $region26: #{tpu_custom_call.1} parent=11 // pred_check_branch
          %285 = sbr.rel (%p283) target = $region28
        $region27: #{tpu_custom_call.1} parent=11 // pred_region
          %s287 = ssub.s32 1024, 1024
          %288 = vsyncadd [#allocation14], %s287
          %s289 = sshll.u32 [#allocation13], 4
          %s290 = int_to_ptr.vmem [resolvable:$true] %s289
          %295 = dma.hbm_to_vmem [thread:$0]  %s7, 1024, %s290, [#allocation14], 64, 64, 4
        $region28: #{tpu_custom_call.1} parent=11 // pred_fallthru
          _
        // Predicated region
        $region29: #{tpu_custom_call.1} parent=11 // pred_check
          %p296 = pneg %p213
        $region30: #{tpu_custom_call.1} parent=11 // pred_check_branch
          %298 = sbr.rel (%p296) target = $region32
        $region31: #{tpu_custom_call.1} parent=11 // pred_region
          %s300 = ssub.s32 2048, 2048
          %301 = vsyncadd [#allocation14], %s300
          %s302 = sshll.u32 [#allocation15], 4
          %s303 = int_to_ptr.vmem [resolvable:$true] %s302
          %308 = dma.hbm_to_vmem [thread:$0]  %s8, 2048, %s303, [#allocation14], 128, 128, 8
        $region32: #{tpu_custom_call.1} parent=11 // pred_fallthru
          _
      $region12: #{tpu_custom_call.1} parent=5 // pred_fallthru
        _
      %p309 = scmp.lt.s32.totalorder %s30, 2
      // Predicated region
      $region33: #{tpu_custom_call.1} parent=5 // pred_check
        %p310 = pneg %p309
      $region34: #{tpu_custom_call.1} parent=5 // pred_check_branch
        %312 = sbr.rel (%p310) target = $region36
      $region35: #{tpu_custom_call.1} parent=5 // pred_region
        // Predicated region
        $region37: #{tpu_custom_call.1} parent=35 // pred_check
          %p313 = pneg %p50
        $region38: #{tpu_custom_call.1} parent=35 // pred_check_branch
          %315 = sbr.rel (%p313) target = $region40
        $region39: #{tpu_custom_call.1} parent=35 // pred_region
          %s316 = sand.u32 %s40, 1
          %s317 = scalar_lea.sflag [#allocation5], %s316
          %s318 = sand.u32 %s40, 1
          %s319 = smul.addr %s318, 128
          %s320 = scalar_lea.vmem [#allocation4], %s319
          %s322 = ssub.s32 2048, 2048
          %323 = vsyncadd %s317, %s322
          %s324 = smul.addr %s30, 16
          %s325 = smul.addr %s324, 128
          %s326 = scalar_lea.hbm %s1, %s325
          %s327 = sshll.u32 %s320, 4
          %s328 = int_to_ptr.vmem [resolvable:$true] %s327
          %333 = dma.hbm_to_vmem [thread:$0]  %s326, 2048, %s328, %s317, 128, 128, 8
        $region40: #{tpu_custom_call.1} parent=35 // pred_fallthru
          _
        // Predicated region
        $region41: #{tpu_custom_call.1} parent=35 // pred_check
          %p334 = pneg %p76
        $region42: #{tpu_custom_call.1} parent=35 // pred_check_branch
          %336 = sbr.rel (%p334) target = $region44
        $region43: #{tpu_custom_call.1} parent=35 // pred_region
          %s337 = sand.u32 %s30, 1
          %s338 = scalar_lea.sflag [#allocation8], %s337
          %s339 = sand.u32 %s66, 1
          %s340 = smul.addr %s339, 128
          %s341 = scalar_lea.vmem [#allocation7], %s340
          %s343 = ssub.s32 2048, 2048
          %344 = vsyncadd %s338, %s343
          %s345 = smul.addr %s30, 16
          %s346 = smul.addr %s345, 128
          %s347 = scalar_lea.hbm %s2, %s346
          %s348 = sshll.u32 %s341, 4
          %s349 = int_to_ptr.vmem [resolvable:$true] %s348
          %354 = dma.hbm_to_vmem [thread:$0]  %s347, 2048, %s349, %s338, 128, 128, 8
        $region44: #{tpu_custom_call.1} parent=35 // pred_fallthru
          _
        // Predicated region
        $region45: #{tpu_custom_call.1} parent=35 // pred_check
          %p355 = pneg %p102
        $region46: #{tpu_custom_call.1} parent=35 // pred_check_branch
          %357 = sbr.rel (%p355) target = $region48
        $region47: #{tpu_custom_call.1} parent=35 // pred_region
          %s358 = sand.u32 %s30, 1
          %s359 = scalar_lea.sflag [#allocation8], %s358
          %s360 = sand.u32 %s92, 1
          %s361 = smul.addr %s360, 128
          %s362 = scalar_lea.vmem [#allocation9], %s361
          %s364 = ssub.s32 2048, 2048
          %365 = vsyncadd %s359, %s364
          %s366 = smul.addr %s30, 16
          %s367 = smul.addr %s366, 128
          %s368 = scalar_lea.hbm %s3, %s367
          %s369 = sshll.u32 %s362, 4
          %s370 = int_to_ptr.vmem [resolvable:$true] %s369
          %375 = dma.hbm_to_vmem [thread:$0]  %s368, 2048, %s370, %s359, 128, 128, 8
        $region48: #{tpu_custom_call.1} parent=35 // pred_fallthru
          _
      $region36: #{tpu_custom_call.1} parent=5 // pred_fallthru
        _
      %p376 = scmp.le.s32.totalorder 1, %s30
      %p377 = scmp.lt.s32.totalorder %s30, 3
      %p378 = pnand %p376, %p377
      %p379 = pneg %p378
      // Predicated region
      $region49: #{tpu_custom_call.1} parent=5 // pred_check
        _
      $region50: #{tpu_custom_call.1} parent=5 // pred_check_branch
        %381 = sbr.rel (%p378) target = $region52
      $region51: #{tpu_custom_call.1} parent=5 // pred_region
        %s382 = ssub.s32 %s30, 1
        %s383 = sand.u32 %s43, 1
        %s384 = scalar_lea.sflag [#allocation5], %s383
        %s385 = sand.u32 %s43, 1
        %s386 = smul.addr %s385, 128
        %s387 = scalar_lea.vmem [#allocation4], %s386
        // Predicated region
        $region53: #{tpu_custom_call.1} parent=51 // pred_check
          %p388 = pneg %p56
        $region54: #{tpu_custom_call.1} parent=51 // pred_check_branch
          %390 = sbr.rel (%p388) target = $region56
        $region55: #{tpu_custom_call.1} parent=51 // pred_region
          %391 = dma.done %s384, 2048
        $region56: #{tpu_custom_call.1} parent=51 // pred_fallthru
          _
        %s392 = sand.u32 %s35, 1
        %s393 = scalar_lea.sflag [#allocation8], %s392
        %s394 = sand.u32 %s69, 1
        %s395 = smul.addr %s394, 128
        %s396 = scalar_lea.vmem [#allocation7], %s395
        // Predicated region
        $region57: #{tpu_custom_call.1} parent=51 // pred_check
          %p397 = pneg %p82
        $region58: #{tpu_custom_call.1} parent=51 // pred_check_branch
          %399 = sbr.rel (%p397) target = $region60
        $region59: #{tpu_custom_call.1} parent=51 // pred_region
          %400 = dma.done %s393, 2048
        $region60: #{tpu_custom_call.1} parent=51 // pred_fallthru
          _
        %s401 = sand.u32 %s35, 1
        %s402 = scalar_lea.sflag [#allocation8], %s401
        %s403 = sand.u32 %s95, 1
        %s404 = smul.addr %s403, 128
        %s405 = scalar_lea.vmem [#allocation9], %s404
        // Predicated region
        $region61: #{tpu_custom_call.1} parent=51 // pred_check
          %p406 = pneg %p108
        $region62: #{tpu_custom_call.1} parent=51 // pred_check_branch
          %408 = sbr.rel (%p406) target = $region64
        $region63: #{tpu_custom_call.1} parent=51 // pred_region
          %409 = dma.done %s402, 2048
        $region64: #{tpu_custom_call.1} parent=51 // pred_fallthru
          _
        // Predicated region
        $region65: #{tpu_custom_call.1} parent=51 // pred_check
          %p410 = pneg %p150
        $region66: #{tpu_custom_call.1} parent=51 // pred_check_branch
          %412 = sbr.rel (%p410) target = $region68
        $region67: #{tpu_custom_call.1} parent=51 // pred_region
          %413 = dma.done [#allocation11], 1024
        $region68: #{tpu_custom_call.1} parent=51 // pred_fallthru
          _
        // Predicated region
        $region69: #{tpu_custom_call.1} parent=51 // pred_check
          %p414 = pneg %p171
        $region70: #{tpu_custom_call.1} parent=51 // pred_check_branch
          %416 = sbr.rel (%p414) target = $region72
        $region71: #{tpu_custom_call.1} parent=51 // pred_region
          %417 = dma.done [#allocation11], 1024
        $region72: #{tpu_custom_call.1} parent=51 // pred_fallthru
          _
        // Predicated region
        $region73: #{tpu_custom_call.1} parent=51 // pred_check
          %p418 = pneg %p192
        $region74: #{tpu_custom_call.1} parent=51 // pred_check_branch
          %420 = sbr.rel (%p418) target = $region76
        $region75: #{tpu_custom_call.1} parent=51 // pred_region
          %421 = dma.done [#allocation14], 1024
        $region76: #{tpu_custom_call.1} parent=51 // pred_fallthru
          _
        // Predicated region
        $region77: #{tpu_custom_call.1} parent=51 // pred_check
          %p422 = pneg %p213
        $region78: #{tpu_custom_call.1} parent=51 // pred_check_branch
          %424 = sbr.rel (%p422) target = $region80
        $region79: #{tpu_custom_call.1} parent=51 // pred_region
          %425 = dma.done [#allocation14], 2048
        $region80: #{tpu_custom_call.1} parent=51 // pred_fallthru
          _
        %s426 = sand.u32 %s43, 1
        %s427 = scalar_lea.sflag [#allocation5], %s426
        %s428 = sand.u32 %s43, 1
        %s429 = smul.addr %s428, 128
        %s430 = scalar_lea.vmem [#allocation4], %s429
        %p431 = pneg %p56
        %p432 = pneg %p53
        %s433 = sand.u32 %s35, 1
        %s434 = scalar_lea.sflag [#allocation8], %s433
        %s435 = sand.u32 %s69, 1
        %s436 = smul.addr %s435, 128
        %s437 = scalar_lea.vmem [#allocation7], %s436
        %p438 = pneg %p82
        %p439 = pneg %p79
        %s440 = sand.u32 %s35, 1
        %s441 = scalar_lea.sflag [#allocation8], %s440
        %s442 = sand.u32 %s95, 1
        %s443 = smul.addr %s442, 128
        %s444 = scalar_lea.vmem [#allocation9], %s443
        %p445 = pneg %p108
        %p446 = pneg %p105
        %p447 = pneg %p129
        %p448 = pneg %p126
        %p449 = pneg %p150
        %p450 = pneg %p147
        %p451 = pneg %p171
        %p452 = pneg %p168
        %p453 = pneg %p192
        %p454 = pneg %p189
        %p455 = pneg %p213
        %p456 = pneg %p210
        %p457 = pneg %p239
        %p458 = pneg %p236
        %s459 = sand.u32 %s226, 1
        %s460 = scalar_lea.sflag [#allocation6], %s459
        %s461 = sand.u32 %s226, 1
        %s462 = smul.addr %s461, 128
        %s463 = scalar_lea.vmem [#allocation16], %s462
        %v465 = vld [vmem:[%s387] sm:$0xff]
        %v466 = vld [vmem:[%s387 + $0x8] sm:$0xff]
        %v467 = vld [vmem:[%s387 + $0x10] sm:$0xff]
        %v468 = vld [vmem:[%s387 + $0x18] sm:$0xff]
        %v469 = vld [vmem:[%s387 + $0x20] sm:$0xff]
        %v470 = vld [vmem:[%s387 + $0x28] sm:$0xff]
        %v471 = vld [vmem:[%s387 + $0x30] sm:$0xff]
        %v472 = vld [vmem:[%s387 + $0x38] sm:$0xff]
        %v473 = vld [vmem:[%s387 + $0x40] sm:$0xff]
        %v474 = vld [vmem:[%s387 + $0x48] sm:$0xff]
        %v475 = vld [vmem:[%s387 + $0x50] sm:$0xff]
        %v476 = vld [vmem:[%s387 + $0x58] sm:$0xff]
        %v477 = vld [vmem:[%s387 + $0x60] sm:$0xff]
        %v478 = vld [vmem:[%s387 + $0x68] sm:$0xff]
        %v479 = vld [vmem:[%s387 + $0x70] sm:$0xff]
        %v480 = vld [vmem:[%s387 + $0x78] sm:$0xff]
        %vm481 = vcmp.eq.s32.totalorder %v465, 2
        %vm482 = vcmp.eq.s32.totalorder %v466, 2
        %vm483 = vcmp.eq.s32.totalorder %v467, 2
        %vm484 = vcmp.eq.s32.totalorder %v468, 2
        %vm485 = vcmp.eq.s32.totalorder %v469, 2
        %vm486 = vcmp.eq.s32.totalorder %v470, 2
        %vm487 = vcmp.eq.s32.totalorder %v471, 2
        %vm488 = vcmp.eq.s32.totalorder %v472, 2
        %vm489 = vcmp.eq.s32.totalorder %v473, 2
        %vm490 = vcmp.eq.s32.totalorder %v474, 2
        %vm491 = vcmp.eq.s32.totalorder %v475, 2
        %vm492 = vcmp.eq.s32.totalorder %v476, 2
        %vm493 = vcmp.eq.s32.totalorder %v477, 2
        %vm494 = vcmp.eq.s32.totalorder %v478, 2
        %vm495 = vcmp.eq.s32.totalorder %v479, 2
        %vm496 = vcmp.eq.s32.totalorder %v480, 2
        %s497 = sld [smem:[#allocation3]]
        %v498 = vstv %s497
        %v499 = vsel %vm481, %v498, 0.0
        %v500 = vsel %vm482, %v498, 0.0
        %v501 = vsel %vm483, %v498, 0.0
        %v502 = vsel %vm484, %v498, 0.0
        %v503 = vsel %vm485, %v498, 0.0
        %v504 = vsel %vm486, %v498, 0.0
        %v505 = vsel %vm487, %v498, 0.0
        %v506 = vsel %vm488, %v498, 0.0
        %v507 = vsel %vm489, %v498, 0.0
        %v508 = vsel %vm490, %v498, 0.0
        %v509 = vsel %vm491, %v498, 0.0
        %v510 = vsel %vm492, %v498, 0.0
        %v511 = vsel %vm493, %v498, 0.0
        %v512 = vsel %vm494, %v498, 0.0
        %v513 = vsel %vm495, %v498, 0.0
        %v514 = vsel %vm496, %v498, 0.0
        %s515 = sld [smem:[#allocation3 + $0x80]]
        %v516 = vstv %s515
        %v517 = vsel %vm481, %v516, 0.0
        %v518 = vsel %vm482, %v516, 0.0
        %v519 = vsel %vm483, %v516, 0.0
        %v520 = vsel %vm484, %v516, 0.0
        %v521 = vsel %vm485, %v516, 0.0
        %v522 = vsel %vm486, %v516, 0.0
        %v523 = vsel %vm487, %v516, 0.0
        %v524 = vsel %vm488, %v516, 0.0
        %v525 = vsel %vm489, %v516, 0.0
        %v526 = vsel %vm490, %v516, 0.0
        %v527 = vsel %vm491, %v516, 0.0
        %v528 = vsel %vm492, %v516, 0.0
        %v529 = vsel %vm493, %v516, 0.0
        %v530 = vsel %vm494, %v516, 0.0
        %v531 = vsel %vm495, %v516, 0.0
        %v532 = vsel %vm496, %v516, 0.0
        %s533 = sld [smem:[#allocation3 + $0x100]]
        %v534 = vstv %s533
        %v535 = vsel %vm481, %v534, 0.0
        %v536 = vsel %vm482, %v534, 0.0
        %v537 = vsel %vm483, %v534, 0.0
        %v538 = vsel %vm484, %v534, 0.0
        %v539 = vsel %vm485, %v534, 0.0
        %v540 = vsel %vm486, %v534, 0.0
        %v541 = vsel %vm487, %v534, 0.0
        %v542 = vsel %vm488, %v534, 0.0
        %v543 = vsel %vm489, %v534, 0.0
        %v544 = vsel %vm490, %v534, 0.0
        %v545 = vsel %vm491, %v534, 0.0
        %v546 = vsel %vm492, %v534, 0.0
        %v547 = vsel %vm493, %v534, 0.0
        %v548 = vsel %vm494, %v534, 0.0
        %v549 = vsel %vm495, %v534, 0.0
        %v550 = vsel %vm496, %v534, 0.0
        %s551 = sld [smem:[#allocation3 + $0x180]]
        %v552 = vstv %s551
        %v553 = vsel %vm481, %v552, 0.0
        %v554 = vsel %vm482, %v552, 0.0
        %v555 = vsel %vm483, %v552, 0.0
        %v556 = vsel %vm484, %v552, 0.0
        %v557 = vsel %vm485, %v552, 0.0
        %v558 = vsel %vm486, %v552, 0.0
        %v559 = vsel %vm487, %v552, 0.0
        %v560 = vsel %vm488, %v552, 0.0
        %v561 = vsel %vm489, %v552, 0.0
        %v562 = vsel %vm490, %v552, 0.0
        %v563 = vsel %vm491, %v552, 0.0
        %v564 = vsel %vm492, %v552, 0.0
        %v565 = vsel %vm493, %v552, 0.0
        %v566 = vsel %vm494, %v552, 0.0
        %v567 = vsel %vm495, %v552, 0.0
        %v568 = vsel %vm496, %v552, 0.0
        %s569 = sld [smem:[#allocation3 + $0x200]]
        %v570 = vstv %s569
        %v571 = vsel %vm481, %v570, 0.0
        %v572 = vsel %vm482, %v570, 0.0
        %v573 = vsel %vm483, %v570, 0.0
        %v574 = vsel %vm484, %v570, 0.0
        %v575 = vsel %vm485, %v570, 0.0
        %v576 = vsel %vm486, %v570, 0.0
        %v577 = vsel %vm487, %v570, 0.0
        %v578 = vsel %vm488, %v570, 0.0
        %v579 = vsel %vm489, %v570, 0.0
        %v580 = vsel %vm490, %v570, 0.0
        %v581 = vsel %vm491, %v570, 0.0
        %v582 = vsel %vm492, %v570, 0.0
        %v583 = vsel %vm493, %v570, 0.0
        %v584 = vsel %vm494, %v570, 0.0
        %v585 = vsel %vm495, %v570, 0.0
        %v586 = vsel %vm496, %v570, 0.0
        %vm587 = vcmp.eq.s32.totalorder %v465, 3
        %vm588 = vcmp.eq.s32.totalorder %v466, 3
        %vm589 = vcmp.eq.s32.totalorder %v467, 3
        %vm590 = vcmp.eq.s32.totalorder %v468, 3
        %vm591 = vcmp.eq.s32.totalorder %v469, 3
        %vm592 = vcmp.eq.s32.totalorder %v470, 3
        %vm593 = vcmp.eq.s32.totalorder %v471, 3
        %vm594 = vcmp.eq.s32.totalorder %v472, 3
        %vm595 = vcmp.eq.s32.totalorder %v473, 3
        %vm596 = vcmp.eq.s32.totalorder %v474, 3
        %vm597 = vcmp.eq.s32.totalorder %v475, 3
        %vm598 = vcmp.eq.s32.totalorder %v476, 3
        %vm599 = vcmp.eq.s32.totalorder %v477, 3
        %vm600 = vcmp.eq.s32.totalorder %v478, 3
        %vm601 = vcmp.eq.s32.totalorder %v479, 3
        %vm602 = vcmp.eq.s32.totalorder %v480, 3
        %s603 = sld [smem:[#allocation3 + $0x1]]
        %v604 = vstv %s603
        %v605 = vsel %vm587, %v604, %v499
        %v606 = vsel %vm588, %v604, %v500
        %v607 = vsel %vm589, %v604, %v501
        %v608 = vsel %vm590, %v604, %v502
        %v609 = vsel %vm591, %v604, %v503
        %v610 = vsel %vm592, %v604, %v504
        %v611 = vsel %vm593, %v604, %v505
        %v612 = vsel %vm594, %v604, %v506
        %v613 = vsel %vm595, %v604, %v507
        %v614 = vsel %vm596, %v604, %v508
        %v615 = vsel %vm597, %v604, %v509
        %v616 = vsel %vm598, %v604, %v510
        %v617 = vsel %vm599, %v604, %v511
        %v618 = vsel %vm600, %v604, %v512
        %v619 = vsel %vm601, %v604, %v513
        %v620 = vsel %vm602, %v604, %v514
        %s621 = sld [smem:[#allocation3 + $0x81]]
        %v622 = vstv %s621
        %v623 = vsel %vm587, %v622, %v517
        %v624 = vsel %vm588, %v622, %v518
        %v625 = vsel %vm589, %v622, %v519
        %v626 = vsel %vm590, %v622, %v520
        %v627 = vsel %vm591, %v622, %v521
        %v628 = vsel %vm592, %v622, %v522
        %v629 = vsel %vm593, %v622, %v523
        %v630 = vsel %vm594, %v622, %v524
        %v631 = vsel %vm595, %v622, %v525
        %v632 = vsel %vm596, %v622, %v526
        %v633 = vsel %vm597, %v622, %v527
        %v634 = vsel %vm598, %v622, %v528
        %v635 = vsel %vm599, %v622, %v529
        %v636 = vsel %vm600, %v622, %v530
        %v637 = vsel %vm601, %v622, %v531
        %v638 = vsel %vm602, %v622, %v532
        %s639 = sld [smem:[#allocation3 + $0x101]]
        %v640 = vstv %s639
        %v641 = vsel %vm587, %v640, %v535
        %v642 = vsel %vm588, %v640, %v536
        %v643 = vsel %vm589, %v640, %v537
        %v644 = vsel %vm590, %v640, %v538
        %v645 = vsel %vm591, %v640, %v539
        %v646 = vsel %vm592, %v640, %v540
        %v647 = vsel %vm593, %v640, %v541
        %v648 = vsel %vm594, %v640, %v542
        %v649 = vsel %vm595, %v640, %v543
        %v650 = vsel %vm596, %v640, %v544
        %v651 = vsel %vm597, %v640, %v545
        %v652 = vsel %vm598, %v640, %v546
        %v653 = vsel %vm599, %v640, %v547
        %v654 = vsel %vm600, %v640, %v548
        %v655 = vsel %vm601, %v640, %v549
        %v656 = vsel %vm602, %v640, %v550
        %s657 = sld [smem:[#allocation3 + $0x181]]
        %v658 = vstv %s657
        %v659 = vsel %vm587, %v658, %v553
        %v660 = vsel %vm588, %v658, %v554
        %v661 = vsel %vm589, %v658, %v555
        %v662 = vsel %vm590, %v658, %v556
        %v663 = vsel %vm591, %v658, %v557
        %v664 = vsel %vm592, %v658, %v558
        %v665 = vsel %vm593, %v658, %v559
        %v666 = vsel %vm594, %v658, %v560
        %v667 = vsel %vm595, %v658, %v561
        %v668 = vsel %vm596, %v658, %v562
        %v669 = vsel %vm597, %v658, %v563
        %v670 = vsel %vm598, %v658, %v564
        %v671 = vsel %vm599, %v658, %v565
        %v672 = vsel %vm600, %v658, %v566
        %v673 = vsel %vm601, %v658, %v567
        %v674 = vsel %vm602, %v658, %v568
        %s675 = sld [smem:[#allocation3 + $0x201]]
        %v676 = vstv %s675
        %v677 = vsel %vm587, %v676, %v571
        %v678 = vsel %vm588, %v676, %v572
        %v679 = vsel %vm589, %v676, %v573
        %v680 = vsel %vm590, %v676, %v574
        %v681 = vsel %vm591, %v676, %v575
        %v682 = vsel %vm592, %v676, %v576
        %v683 = vsel %vm593, %v676, %v577
        %v684 = vsel %vm594, %v676, %v578
        %v685 = vsel %vm595, %v676, %v579
        %v686 = vsel %vm596, %v676, %v580
        %v687 = vsel %vm597, %v676, %v581
        %v688 = vsel %vm598, %v676, %v582
        %v689 = vsel %vm599, %v676, %v583
        %v690 = vsel %vm600, %v676, %v584
        %v691 = vsel %vm601, %v676, %v585
        %v692 = vsel %vm602, %v676, %v586
        %vm693 = vcmp.eq.s32.totalorder %v465, 4
        %vm694 = vcmp.eq.s32.totalorder %v466, 4
        %vm695 = vcmp.eq.s32.totalorder %v467, 4
        %vm696 = vcmp.eq.s32.totalorder %v468, 4
        %vm697 = vcmp.eq.s32.totalorder %v469, 4
        %vm698 = vcmp.eq.s32.totalorder %v470, 4
        %vm699 = vcmp.eq.s32.totalorder %v471, 4
        %vm700 = vcmp.eq.s32.totalorder %v472, 4
        %vm701 = vcmp.eq.s32.totalorder %v473, 4
        %vm702 = vcmp.eq.s32.totalorder %v474, 4
        %vm703 = vcmp.eq.s32.totalorder %v475, 4
        %vm704 = vcmp.eq.s32.totalorder %v476, 4
        %vm705 = vcmp.eq.s32.totalorder %v477, 4
        %vm706 = vcmp.eq.s32.totalorder %v478, 4
        %vm707 = vcmp.eq.s32.totalorder %v479, 4
        %vm708 = vcmp.eq.s32.totalorder %v480, 4
        %s709 = sld [smem:[#allocation3 + $0x2]]
        %v710 = vstv %s709
        %v711 = vsel %vm693, %v710, %v605
        %v712 = vsel %vm694, %v710, %v606
        %v713 = vsel %vm695, %v710, %v607
        %v714 = vsel %vm696, %v710, %v608
        %v715 = vsel %vm697, %v710, %v609
        %v716 = vsel %vm698, %v710, %v610
        %v717 = vsel %vm699, %v710, %v611
        %v718 = vsel %vm700, %v710, %v612
        %v719 = vsel %vm701, %v710, %v613
        %v720 = vsel %vm702, %v710, %v614
        %v721 = vsel %vm703, %v710, %v615
        %v722 = vsel %vm704, %v710, %v616
        %v723 = vsel %vm705, %v710, %v617
        %v724 = vsel %vm706, %v710, %v618
        %v725 = vsel %vm707, %v710, %v619
        %v726 = vsel %vm708, %v710, %v620
        %s727 = sld [smem:[#allocation3 + $0x82]]
        %v728 = vstv %s727
        %v729 = vsel %vm693, %v728, %v623
        %v730 = vsel %vm694, %v728, %v624
        %v731 = vsel %vm695, %v728, %v625
        %v732 = vsel %vm696, %v728, %v626
        %v733 = vsel %vm697, %v728, %v627
        %v734 = vsel %vm698, %v728, %v628
        %v735 = vsel %vm699, %v728, %v629
        %v736 = vsel %vm700, %v728, %v630
        %v737 = vsel %vm701, %v728, %v631
        %v738 = vsel %vm702, %v728, %v632
        %v739 = vsel %vm703, %v728, %v633
        %v740 = vsel %vm704, %v728, %v634
        %v741 = vsel %vm705, %v728, %v635
        %v742 = vsel %vm706, %v728, %v636
        %v743 = vsel %vm707, %v728, %v637
        %v744 = vsel %vm708, %v728, %v638
        %s745 = sld [smem:[#allocation3 + $0x102]]
        %v746 = vstv %s745
        %v747 = vsel %vm693, %v746, %v641
        %v748 = vsel %vm694, %v746, %v642
        %v749 = vsel %vm695, %v746, %v643
        %v750 = vsel %vm696, %v746, %v644
        %v751 = vsel %vm697, %v746, %v645
        %v752 = vsel %vm698, %v746, %v646
        %v753 = vsel %vm699, %v746, %v647
        %v754 = vsel %vm700, %v746, %v648
        %v755 = vsel %vm701, %v746, %v649
        %v756 = vsel %vm702, %v746, %v650
        %v757 = vsel %vm703, %v746, %v651
        %v758 = vsel %vm704, %v746, %v652
        %v759 = vsel %vm705, %v746, %v653
        %v760 = vsel %vm706, %v746, %v654
        %v761 = vsel %vm707, %v746, %v655
        %v762 = vsel %vm708, %v746, %v656
        %s763 = sld [smem:[#allocation3 + $0x182]]
        %v764 = vstv %s763
        %v765 = vsel %vm693, %v764, %v659
        %v766 = vsel %vm694, %v764, %v660
        %v767 = vsel %vm695, %v764, %v661
        %v768 = vsel %vm696, %v764, %v662
        %v769 = vsel %vm697, %v764, %v663
        %v770 = vsel %vm698, %v764, %v664
        %v771 = vsel %vm699, %v764, %v665
        %v772 = vsel %vm700, %v764, %v666
        %v773 = vsel %vm701, %v764, %v667
        %v774 = vsel %vm702, %v764, %v668
        %v775 = vsel %vm703, %v764, %v669
        %v776 = vsel %vm704, %v764, %v670
        %v777 = vsel %vm705, %v764, %v671
        %v778 = vsel %vm706, %v764, %v672
        %v779 = vsel %vm707, %v764, %v673
        %v780 = vsel %vm708, %v764, %v674
        %s781 = sld [smem:[#allocation3 + $0x202]]
        %v782 = vstv %s781
        %v783 = vsel %vm693, %v782, %v677
        %v784 = vsel %vm694, %v782, %v678
        %v785 = vsel %vm695, %v782, %v679
        %v786 = vsel %vm696, %v782, %v680
        %v787 = vsel %vm697, %v782, %v681
        %v788 = vsel %vm698, %v782, %v682
        %v789 = vsel %vm699, %v782, %v683
        %v790 = vsel %vm700, %v782, %v684
        %v791 = vsel %vm701, %v782, %v685
        %v792 = vsel %vm702, %v782, %v686
        %v793 = vsel %vm703, %v782, %v687
        %v794 = vsel %vm704, %v782, %v688
        %v795 = vsel %vm705, %v782, %v689
        %v796 = vsel %vm706, %v782, %v690
        %v797 = vsel %vm707, %v782, %v691
        %v798 = vsel %vm708, %v782, %v692
        %vm799 = vcmp.eq.s32.totalorder %v465, 6
        %vm800 = vcmp.eq.s32.totalorder %v466, 6
        %vm801 = vcmp.eq.s32.totalorder %v467, 6
        %vm802 = vcmp.eq.s32.totalorder %v468, 6
        %vm803 = vcmp.eq.s32.totalorder %v469, 6
        %vm804 = vcmp.eq.s32.totalorder %v470, 6
        %vm805 = vcmp.eq.s32.totalorder %v471, 6
        %vm806 = vcmp.eq.s32.totalorder %v472, 6
        %vm807 = vcmp.eq.s32.totalorder %v473, 6
        %vm808 = vcmp.eq.s32.totalorder %v474, 6
        %vm809 = vcmp.eq.s32.totalorder %v475, 6
        %vm810 = vcmp.eq.s32.totalorder %v476, 6
        %vm811 = vcmp.eq.s32.totalorder %v477, 6
        %vm812 = vcmp.eq.s32.totalorder %v478, 6
        %vm813 = vcmp.eq.s32.totalorder %v479, 6
        %vm814 = vcmp.eq.s32.totalorder %v480, 6
        %s815 = sld [smem:[#allocation3 + $0x3]]
        %v816 = vstv %s815
        %v817 = vsel %vm799, %v816, %v711
        %v818 = vsel %vm800, %v816, %v712
        %v819 = vsel %vm801, %v816, %v713
        %v820 = vsel %vm802, %v816, %v714
        %v821 = vsel %vm803, %v816, %v715
        %v822 = vsel %vm804, %v816, %v716
        %v823 = vsel %vm805, %v816, %v717
        %v824 = vsel %vm806, %v816, %v718
        %v825 = vsel %vm807, %v816, %v719
        %v826 = vsel %vm808, %v816, %v720
        %v827 = vsel %vm809, %v816, %v721
        %v828 = vsel %vm810, %v816, %v722
        %v829 = vsel %vm811, %v816, %v723
        %v830 = vsel %vm812, %v816, %v724
        %v831 = vsel %vm813, %v816, %v725
        %v832 = vsel %vm814, %v816, %v726
        %s833 = sld [smem:[#allocation3 + $0x83]]
        %v834 = vstv %s833
        %v835 = vsel %vm799, %v834, %v729
        %v836 = vsel %vm800, %v834, %v730
        %v837 = vsel %vm801, %v834, %v731
        %v838 = vsel %vm802, %v834, %v732
        %v839 = vsel %vm803, %v834, %v733
        %v840 = vsel %vm804, %v834, %v734
        %v841 = vsel %vm805, %v834, %v735
        %v842 = vsel %vm806, %v834, %v736
        %v843 = vsel %vm807, %v834, %v737
        %v844 = vsel %vm808, %v834, %v738
        %v845 = vsel %vm809, %v834, %v739
        %v846 = vsel %vm810, %v834, %v740
        %v847 = vsel %vm811, %v834, %v741
        %v848 = vsel %vm812, %v834, %v742
        %v849 = vsel %vm813, %v834, %v743
        %v850 = vsel %vm814, %v834, %v744
        %s851 = sld [smem:[#allocation3 + $0x103]]
        %v852 = vstv %s851
        %v853 = vsel %vm799, %v852, %v747
        %v854 = vsel %vm800, %v852, %v748
        %v855 = vsel %vm801, %v852, %v749
        %v856 = vsel %vm802, %v852, %v750
        %v857 = vsel %vm803, %v852, %v751
        %v858 = vsel %vm804, %v852, %v752
        %v859 = vsel %vm805, %v852, %v753
        %v860 = vsel %vm806, %v852, %v754
        %v861 = vsel %vm807, %v852, %v755
        %v862 = vsel %vm808, %v852, %v756
        %v863 = vsel %vm809, %v852, %v757
        %v864 = vsel %vm810, %v852, %v758
        %v865 = vsel %vm811, %v852, %v759
        %v866 = vsel %vm812, %v852, %v760
        %v867 = vsel %vm813, %v852, %v761
        %v868 = vsel %vm814, %v852, %v762
        %s869 = sld [smem:[#allocation3 + $0x183]]
        %v870 = vstv %s869
        %v871 = vsel %vm799, %v870, %v765
        %v872 = vsel %vm800, %v870, %v766
        %v873 = vsel %vm801, %v870, %v767
        %v874 = vsel %vm802, %v870, %v768
        %v875 = vsel %vm803, %v870, %v769
        %v876 = vsel %vm804, %v870, %v770
        %v877 = vsel %vm805, %v870, %v771
        %v878 = vsel %vm806, %v870, %v772
        %v879 = vsel %vm807, %v870, %v773
        %v880 = vsel %vm808, %v870, %v774
        %v881 = vsel %vm809, %v870, %v775
        %v882 = vsel %vm810, %v870, %v776
        %v883 = vsel %vm811, %v870, %v777
        %v884 = vsel %vm812, %v870, %v778
        %v885 = vsel %vm813, %v870, %v779
        %v886 = vsel %vm814, %v870, %v780
        %s887 = sld [smem:[#allocation3 + $0x203]]
        %v888 = vstv %s887
        %v889 = vsel %vm799, %v888, %v783
        %v890 = vsel %vm800, %v888, %v784
        %v891 = vsel %vm801, %v888, %v785
        %v892 = vsel %vm802, %v888, %v786
        %v893 = vsel %vm803, %v888, %v787
        %v894 = vsel %vm804, %v888, %v788
        %v895 = vsel %vm805, %v888, %v789
        %v896 = vsel %vm806, %v888, %v790
        %v897 = vsel %vm807, %v888, %v791
        %v898 = vsel %vm808, %v888, %v792
        %v899 = vsel %vm809, %v888, %v793
        %v900 = vsel %vm810, %v888, %v794
        %v901 = vsel %vm811, %v888, %v795
        %v902 = vsel %vm812, %v888, %v796
        %v903 = vsel %vm813, %v888, %v797
        %v904 = vsel %vm814, %v888, %v798
        %vm905 = vcmp.eq.s32.totalorder %v465, 8
        %vm906 = vcmp.eq.s32.totalorder %v466, 8
        %vm907 = vcmp.eq.s32.totalorder %v467, 8
        %vm908 = vcmp.eq.s32.totalorder %v468, 8
        %vm909 = vcmp.eq.s32.totalorder %v469, 8
        %vm910 = vcmp.eq.s32.totalorder %v470, 8
        %vm911 = vcmp.eq.s32.totalorder %v471, 8
        %vm912 = vcmp.eq.s32.totalorder %v472, 8
        %vm913 = vcmp.eq.s32.totalorder %v473, 8
        %vm914 = vcmp.eq.s32.totalorder %v474, 8
        %vm915 = vcmp.eq.s32.totalorder %v475, 8
        %vm916 = vcmp.eq.s32.totalorder %v476, 8
        %vm917 = vcmp.eq.s32.totalorder %v477, 8
        %vm918 = vcmp.eq.s32.totalorder %v478, 8
        %vm919 = vcmp.eq.s32.totalorder %v479, 8
        %vm920 = vcmp.eq.s32.totalorder %v480, 8
        %s921 = sld [smem:[#allocation3 + $0x4]]
        %v922 = vstv %s921
        %v923 = vsel %vm905, %v922, %v817
        %v924 = vsel %vm906, %v922, %v818
        %v925 = vsel %vm907, %v922, %v819
        %v926 = vsel %vm908, %v922, %v820
        %v927 = vsel %vm909, %v922, %v821
        %v928 = vsel %vm910, %v922, %v822
        %v929 = vsel %vm911, %v922, %v823
        %v930 = vsel %vm912, %v922, %v824
        %v931 = vsel %vm913, %v922, %v825
        %v932 = vsel %vm914, %v922, %v826
        %v933 = vsel %vm915, %v922, %v827
        %v934 = vsel %vm916, %v922, %v828
        %v935 = vsel %vm917, %v922, %v829
        %v936 = vsel %vm918, %v922, %v830
        %v937 = vsel %vm919, %v922, %v831
        %v938 = vsel %vm920, %v922, %v832
        %s939 = sld [smem:[#allocation3 + $0x84]]
        %v940 = vstv %s939
        %v941 = vsel %vm905, %v940, %v835
        %v942 = vsel %vm906, %v940, %v836
        %v943 = vsel %vm907, %v940, %v837
        %v944 = vsel %vm908, %v940, %v838
        %v945 = vsel %vm909, %v940, %v839
        %v946 = vsel %vm910, %v940, %v840
        %v947 = vsel %vm911, %v940, %v841
        %v948 = vsel %vm912, %v940, %v842
        %v949 = vsel %vm913, %v940, %v843
        %v950 = vsel %vm914, %v940, %v844
        %v951 = vsel %vm915, %v940, %v845
        %v952 = vsel %vm916, %v940, %v846
        %v953 = vsel %vm917, %v940, %v847
        %v954 = vsel %vm918, %v940, %v848
        %v955 = vsel %vm919, %v940, %v849
        %v956 = vsel %vm920, %v940, %v850
        %s957 = sld [smem:[#allocation3 + $0x104]]
        %v958 = vstv %s957
        %v959 = vsel %vm905, %v958, %v853
        %v960 = vsel %vm906, %v958, %v854
        %v961 = vsel %vm907, %v958, %v855
        %v962 = vsel %vm908, %v958, %v856
        %v963 = vsel %vm909, %v958, %v857
        %v964 = vsel %vm910, %v958, %v858
        %v965 = vsel %vm911, %v958, %v859
        %v966 = vsel %vm912, %v958, %v860
        %v967 = vsel %vm913, %v958, %v861
        %v968 = vsel %vm914, %v958, %v862
        %v969 = vsel %vm915, %v958, %v863
        %v970 = vsel %vm916, %v958, %v864
        %v971 = vsel %vm917, %v958, %v865
        %v972 = vsel %vm918, %v958, %v866
        %v973 = vsel %vm919, %v958, %v867
        %v974 = vsel %vm920, %v958, %v868
        %s975 = sld [smem:[#allocation3 + $0x184]]
        %v976 = vstv %s975
        %v977 = vsel %vm905, %v976, %v871
        %v978 = vsel %vm906, %v976, %v872
        %v979 = vsel %vm907, %v976, %v873
        %v980 = vsel %vm908, %v976, %v874
        %v981 = vsel %vm909, %v976, %v875
        %v982 = vsel %vm910, %v976, %v876
        %v983 = vsel %vm911, %v976, %v877
        %v984 = vsel %vm912, %v976, %v878
        %v985 = vsel %vm913, %v976, %v879
        %v986 = vsel %vm914, %v976, %v880
        %v987 = vsel %vm915, %v976, %v881
        %v988 = vsel %vm916, %v976, %v882
        %v989 = vsel %vm917, %v976, %v883
        %v990 = vsel %vm918, %v976, %v884
        %v991 = vsel %vm919, %v976, %v885
        %v992 = vsel %vm920, %v976, %v886
        %s993 = sld [smem:[#allocation3 + $0x204]]
        %v994 = vstv %s993
        %v995 = vsel %vm905, %v994, %v889
        %v996 = vsel %vm906, %v994, %v890
        %v997 = vsel %vm907, %v994, %v891
        %v998 = vsel %vm908, %v994, %v892
        %v999 = vsel %vm909, %v994, %v893
        %v1000 = vsel %vm910, %v994, %v894
        %v1001 = vsel %vm911, %v994, %v895
        %v1002 = vsel %vm912, %v994, %v896
        %v1003 = vsel %vm913, %v994, %v897
        %v1004 = vsel %vm914, %v994, %v898
        %v1005 = vsel %vm915, %v994, %v899
        %v1006 = vsel %vm916, %v994, %v900
        %v1007 = vsel %vm917, %v994, %v901
        %v1008 = vsel %vm918, %v994, %v902
        %v1009 = vsel %vm919, %v994, %v903
        %v1010 = vsel %vm920, %v994, %v904
        %vm1011 = vcmp.eq.s32.totalorder %v465, 9
        %vm1012 = vcmp.eq.s32.totalorder %v466, 9
        %vm1013 = vcmp.eq.s32.totalorder %v467, 9
        %vm1014 = vcmp.eq.s32.totalorder %v468, 9
        %vm1015 = vcmp.eq.s32.totalorder %v469, 9
        %vm1016 = vcmp.eq.s32.totalorder %v470, 9
        %vm1017 = vcmp.eq.s32.totalorder %v471, 9
        %vm1018 = vcmp.eq.s32.totalorder %v472, 9
        %vm1019 = vcmp.eq.s32.totalorder %v473, 9
        %vm1020 = vcmp.eq.s32.totalorder %v474, 9
        %vm1021 = vcmp.eq.s32.totalorder %v475, 9
        %vm1022 = vcmp.eq.s32.totalorder %v476, 9
        %vm1023 = vcmp.eq.s32.totalorder %v477, 9
        %vm1024 = vcmp.eq.s32.totalorder %v478, 9
        %vm1025 = vcmp.eq.s32.totalorder %v479, 9
        %vm1026 = vcmp.eq.s32.totalorder %v480, 9
        %s1027 = sld [smem:[#allocation3 + $0x5]]
        %v1028 = vstv %s1027
        %v1029 = vsel %vm1011, %v1028, %v923
        %v1030 = vsel %vm1012, %v1028, %v924
        %v1031 = vsel %vm1013, %v1028, %v925
        %v1032 = vsel %vm1014, %v1028, %v926
        %v1033 = vsel %vm1015, %v1028, %v927
        %v1034 = vsel %vm1016, %v1028, %v928
        %v1035 = vsel %vm1017, %v1028, %v929
        %v1036 = vsel %vm1018, %v1028, %v930
        %v1037 = vsel %vm1019, %v1028, %v931
        %v1038 = vsel %vm1020, %v1028, %v932
        %v1039 = vsel %vm1021, %v1028, %v933
        %v1040 = vsel %vm1022, %v1028, %v934
        %v1041 = vsel %vm1023, %v1028, %v935
        %v1042 = vsel %vm1024, %v1028, %v936
        %v1043 = vsel %vm1025, %v1028, %v937
        %v1044 = vsel %vm1026, %v1028, %v938
        %s1045 = sld [smem:[#allocation3 + $0x85]]
        %v1046 = vstv %s1045
        %v1047 = vsel %vm1011, %v1046, %v941
        %v1048 = vsel %vm1012, %v1046, %v942
        %v1049 = vsel %vm1013, %v1046, %v943
        %v1050 = vsel %vm1014, %v1046, %v944
        %v1051 = vsel %vm1015, %v1046, %v945
        %v1052 = vsel %vm1016, %v1046, %v946
        %v1053 = vsel %vm1017, %v1046, %v947
        %v1054 = vsel %vm1018, %v1046, %v948
        %v1055 = vsel %vm1019, %v1046, %v949
        %v1056 = vsel %vm1020, %v1046, %v950
        %v1057 = vsel %vm1021, %v1046, %v951
        %v1058 = vsel %vm1022, %v1046, %v952
        %v1059 = vsel %vm1023, %v1046, %v953
        %v1060 = vsel %vm1024, %v1046, %v954
        %v1061 = vsel %vm1025, %v1046, %v955
        %v1062 = vsel %vm1026, %v1046, %v956
        %s1063 = sld [smem:[#allocation3 + $0x105]]
        %v1064 = vstv %s1063
        %v1065 = vsel %vm1011, %v1064, %v959
        %v1066 = vsel %vm1012, %v1064, %v960
        %v1067 = vsel %vm1013, %v1064, %v961
        %v1068 = vsel %vm1014, %v1064, %v962
        %v1069 = vsel %vm1015, %v1064, %v963
        %v1070 = vsel %vm1016, %v1064, %v964
        %v1071 = vsel %vm1017, %v1064, %v965
        %v1072 = vsel %vm1018, %v1064, %v966
        %v1073 = vsel %vm1019, %v1064, %v967
        %v1074 = vsel %vm1020, %v1064, %v968
        %v1075 = vsel %vm1021, %v1064, %v969
        %v1076 = vsel %vm1022, %v1064, %v970
        %v1077 = vsel %vm1023, %v1064, %v971
        %v1078 = vsel %vm1024, %v1064, %v972
        %v1079 = vsel %vm1025, %v1064, %v973
        %v1080 = vsel %vm1026, %v1064, %v974
        %s1081 = sld [smem:[#allocation3 + $0x185]]
        %v1082 = vstv %s1081
        %v1083 = vsel %vm1011, %v1082, %v977
        %v1084 = vsel %vm1012, %v1082, %v978
        %v1085 = vsel %vm1013, %v1082, %v979
        %v1086 = vsel %vm1014, %v1082, %v980
        %v1087 = vsel %vm1015, %v1082, %v981
        %v1088 = vsel %vm1016, %v1082, %v982
        %v1089 = vsel %vm1017, %v1082, %v983
        %v1090 = vsel %vm1018, %v1082, %v984
        %v1091 = vsel %vm1019, %v1082, %v985
        %v1092 = vsel %vm1020, %v1082, %v986
        %v1093 = vsel %vm1021, %v1082, %v987
        %v1094 = vsel %vm1022, %v1082, %v988
        %v1095 = vsel %vm1023, %v1082, %v989
        %v1096 = vsel %vm1024, %v1082, %v990
        %v1097 = vsel %vm1025, %v1082, %v991
        %v1098 = vsel %vm1026, %v1082, %v992
        %s1099 = sld [smem:[#allocation3 + $0x205]]
        %v1100 = vstv %s1099
        %v1101 = vsel %vm1011, %v1100, %v995
        %v1102 = vsel %vm1012, %v1100, %v996
        %v1103 = vsel %vm1013, %v1100, %v997
        %v1104 = vsel %vm1014, %v1100, %v998
        %v1105 = vsel %vm1015, %v1100, %v999
        %v1106 = vsel %vm1016, %v1100, %v1000
        %v1107 = vsel %vm1017, %v1100, %v1001
        %v1108 = vsel %vm1018, %v1100, %v1002
        %v1109 = vsel %vm1019, %v1100, %v1003
        %v1110 = vsel %vm1020, %v1100, %v1004
        %v1111 = vsel %vm1021, %v1100, %v1005
        %v1112 = vsel %vm1022, %v1100, %v1006
        %v1113 = vsel %vm1023, %v1100, %v1007
        %v1114 = vsel %vm1024, %v1100, %v1008
        %v1115 = vsel %vm1025, %v1100, %v1009
        %v1116 = vsel %vm1026, %v1100, %v1010
        %vm1117 = vcmp.eq.s32.totalorder %v465, 11
        %vm1118 = vcmp.eq.s32.totalorder %v466, 11
        %vm1119 = vcmp.eq.s32.totalorder %v467, 11
        %vm1120 = vcmp.eq.s32.totalorder %v468, 11
        %vm1121 = vcmp.eq.s32.totalorder %v469, 11
        %vm1122 = vcmp.eq.s32.totalorder %v470, 11
        %vm1123 = vcmp.eq.s32.totalorder %v471, 11
        %vm1124 = vcmp.eq.s32.totalorder %v472, 11
        %vm1125 = vcmp.eq.s32.totalorder %v473, 11
        %vm1126 = vcmp.eq.s32.totalorder %v474, 11
        %vm1127 = vcmp.eq.s32.totalorder %v475, 11
        %vm1128 = vcmp.eq.s32.totalorder %v476, 11
        %vm1129 = vcmp.eq.s32.totalorder %v477, 11
        %vm1130 = vcmp.eq.s32.totalorder %v478, 11
        %vm1131 = vcmp.eq.s32.totalorder %v479, 11
        %vm1132 = vcmp.eq.s32.totalorder %v480, 11
        %s1133 = sld [smem:[#allocation3 + $0x6]]
        %v1134 = vstv %s1133
        %v1135 = vsel %vm1117, %v1134, %v1029
        %v1136 = vsel %vm1118, %v1134, %v1030
        %v1137 = vsel %vm1119, %v1134, %v1031
        %v1138 = vsel %vm1120, %v1134, %v1032
        %v1139 = vsel %vm1121, %v1134, %v1033
        %v1140 = vsel %vm1122, %v1134, %v1034
        %v1141 = vsel %vm1123, %v1134, %v1035
        %v1142 = vsel %vm1124, %v1134, %v1036
        %v1143 = vsel %vm1125, %v1134, %v1037
        %v1144 = vsel %vm1126, %v1134, %v1038
        %v1145 = vsel %vm1127, %v1134, %v1039
        %v1146 = vsel %vm1128, %v1134, %v1040
        %v1147 = vsel %vm1129, %v1134, %v1041
        %v1148 = vsel %vm1130, %v1134, %v1042
        %v1149 = vsel %vm1131, %v1134, %v1043
        %v1150 = vsel %vm1132, %v1134, %v1044
        %s1151 = sld [smem:[#allocation3 + $0x86]]
        %v1152 = vstv %s1151
        %v1153 = vsel %vm1117, %v1152, %v1047
        %v1154 = vsel %vm1118, %v1152, %v1048
        %v1155 = vsel %vm1119, %v1152, %v1049
        %v1156 = vsel %vm1120, %v1152, %v1050
        %v1157 = vsel %vm1121, %v1152, %v1051
        %v1158 = vsel %vm1122, %v1152, %v1052
        %v1159 = vsel %vm1123, %v1152, %v1053
        %v1160 = vsel %vm1124, %v1152, %v1054
        %v1161 = vsel %vm1125, %v1152, %v1055
        %v1162 = vsel %vm1126, %v1152, %v1056
        %v1163 = vsel %vm1127, %v1152, %v1057
        %v1164 = vsel %vm1128, %v1152, %v1058
        %v1165 = vsel %vm1129, %v1152, %v1059
        %v1166 = vsel %vm1130, %v1152, %v1060
        %v1167 = vsel %vm1131, %v1152, %v1061
        %v1168 = vsel %vm1132, %v1152, %v1062
        %s1169 = sld [smem:[#allocation3 + $0x106]]
        %v1170 = vstv %s1169
        %v1171 = vsel %vm1117, %v1170, %v1065
        %v1172 = vsel %vm1118, %v1170, %v1066
        %v1173 = vsel %vm1119, %v1170, %v1067
        %v1174 = vsel %vm1120, %v1170, %v1068
        %v1175 = vsel %vm1121, %v1170, %v1069
        %v1176 = vsel %vm1122, %v1170, %v1070
        %v1177 = vsel %vm1123, %v1170, %v1071
        %v1178 = vsel %vm1124, %v1170, %v1072
        %v1179 = vsel %vm1125, %v1170, %v1073
        %v1180 = vsel %vm1126, %v1170, %v1074
        %v1181 = vsel %vm1127, %v1170, %v1075
        %v1182 = vsel %vm1128, %v1170, %v1076
        %v1183 = vsel %vm1129, %v1170, %v1077
        %v1184 = vsel %vm1130, %v1170, %v1078
        %v1185 = vsel %vm1131, %v1170, %v1079
        %v1186 = vsel %vm1132, %v1170, %v1080
        %s1187 = sld [smem:[#allocation3 + $0x186]]
        %v1188 = vstv %s1187
        %v1189 = vsel %vm1117, %v1188, %v1083
        %v1190 = vsel %vm1118, %v1188, %v1084
        %v1191 = vsel %vm1119, %v1188, %v1085
        %v1192 = vsel %vm1120, %v1188, %v1086
        %v1193 = vsel %vm1121, %v1188, %v1087
        %v1194 = vsel %vm1122, %v1188, %v1088
        %v1195 = vsel %vm1123, %v1188, %v1089
        %v1196 = vsel %vm1124, %v1188, %v1090
        %v1197 = vsel %vm1125, %v1188, %v1091
        %v1198 = vsel %vm1126, %v1188, %v1092
        %v1199 = vsel %vm1127, %v1188, %v1093
        %v1200 = vsel %vm1128, %v1188, %v1094
        %v1201 = vsel %vm1129, %v1188, %v1095
        %v1202 = vsel %vm1130, %v1188, %v1096
        %v1203 = vsel %vm1131, %v1188, %v1097
        %v1204 = vsel %vm1132, %v1188, %v1098
        %s1205 = sld [smem:[#allocation3 + $0x206]]
        %v1206 = vstv %s1205
        %v1207 = vsel %vm1117, %v1206, %v1101
        %v1208 = vsel %vm1118, %v1206, %v1102
        %v1209 = vsel %vm1119, %v1206, %v1103
        %v1210 = vsel %vm1120, %v1206, %v1104
        %v1211 = vsel %vm1121, %v1206, %v1105
        %v1212 = vsel %vm1122, %v1206, %v1106
        %v1213 = vsel %vm1123, %v1206, %v1107
        %v1214 = vsel %vm1124, %v1206, %v1108
        %v1215 = vsel %vm1125, %v1206, %v1109
        %v1216 = vsel %vm1126, %v1206, %v1110
        %v1217 = vsel %vm1127, %v1206, %v1111
        %v1218 = vsel %vm1128, %v1206, %v1112
        %v1219 = vsel %vm1129, %v1206, %v1113
        %v1220 = vsel %vm1130, %v1206, %v1114
        %v1221 = vsel %vm1131, %v1206, %v1115
        %v1222 = vsel %vm1132, %v1206, %v1116
        %vm1223 = vcmp.eq.s32.totalorder %v465, 12
        %vm1224 = vcmp.eq.s32.totalorder %v466, 12
        %vm1225 = vcmp.eq.s32.totalorder %v467, 12
        %vm1226 = vcmp.eq.s32.totalorder %v468, 12
        %vm1227 = vcmp.eq.s32.totalorder %v469, 12
        %vm1228 = vcmp.eq.s32.totalorder %v470, 12
        %vm1229 = vcmp.eq.s32.totalorder %v471, 12
        %vm1230 = vcmp.eq.s32.totalorder %v472, 12
        %vm1231 = vcmp.eq.s32.totalorder %v473, 12
        %vm1232 = vcmp.eq.s32.totalorder %v474, 12
        %vm1233 = vcmp.eq.s32.totalorder %v475, 12
        %vm1234 = vcmp.eq.s32.totalorder %v476, 12
        %vm1235 = vcmp.eq.s32.totalorder %v477, 12
        %vm1236 = vcmp.eq.s32.totalorder %v478, 12
        %vm1237 = vcmp.eq.s32.totalorder %v479, 12
        %vm1238 = vcmp.eq.s32.totalorder %v480, 12
        %s1239 = sld [smem:[#allocation3 + $0x7]]
        %v1240 = vstv %s1239
        %v1241 = vsel %vm1223, %v1240, %v1135
        %v1242 = vsel %vm1224, %v1240, %v1136
        %v1243 = vsel %vm1225, %v1240, %v1137
        %v1244 = vsel %vm1226, %v1240, %v1138
        %v1245 = vsel %vm1227, %v1240, %v1139
        %v1246 = vsel %vm1228, %v1240, %v1140
        %v1247 = vsel %vm1229, %v1240, %v1141
        %v1248 = vsel %vm1230, %v1240, %v1142
        %v1249 = vsel %vm1231, %v1240, %v1143
        %v1250 = vsel %vm1232, %v1240, %v1144
        %v1251 = vsel %vm1233, %v1240, %v1145
        %v1252 = vsel %vm1234, %v1240, %v1146
        %v1253 = vsel %vm1235, %v1240, %v1147
        %v1254 = vsel %vm1236, %v1240, %v1148
        %v1255 = vsel %vm1237, %v1240, %v1149
        %v1256 = vsel %vm1238, %v1240, %v1150
        %s1257 = sld [smem:[#allocation3 + $0x87]]
        %v1258 = vstv %s1257
        %v1259 = vsel %vm1223, %v1258, %v1153
        %v1260 = vsel %vm1224, %v1258, %v1154
        %v1261 = vsel %vm1225, %v1258, %v1155
        %v1262 = vsel %vm1226, %v1258, %v1156
        %v1263 = vsel %vm1227, %v1258, %v1157
        %v1264 = vsel %vm1228, %v1258, %v1158
        %v1265 = vsel %vm1229, %v1258, %v1159
        %v1266 = vsel %vm1230, %v1258, %v1160
        %v1267 = vsel %vm1231, %v1258, %v1161
        %v1268 = vsel %vm1232, %v1258, %v1162
        %v1269 = vsel %vm1233, %v1258, %v1163
        %v1270 = vsel %vm1234, %v1258, %v1164
        %v1271 = vsel %vm1235, %v1258, %v1165
        %v1272 = vsel %vm1236, %v1258, %v1166
        %v1273 = vsel %vm1237, %v1258, %v1167
        %v1274 = vsel %vm1238, %v1258, %v1168
        %s1275 = sld [smem:[#allocation3 + $0x107]]
        %v1276 = vstv %s1275
        %v1277 = vsel %vm1223, %v1276, %v1171
        %v1278 = vsel %vm1224, %v1276, %v1172
        %v1279 = vsel %vm1225, %v1276, %v1173
        %v1280 = vsel %vm1226, %v1276, %v1174
        %v1281 = vsel %vm1227, %v1276, %v1175
        %v1282 = vsel %vm1228, %v1276, %v1176
        %v1283 = vsel %vm1229, %v1276, %v1177
        %v1284 = vsel %vm1230, %v1276, %v1178
        %v1285 = vsel %vm1231, %v1276, %v1179
        %v1286 = vsel %vm1232, %v1276, %v1180
        %v1287 = vsel %vm1233, %v1276, %v1181
        %v1288 = vsel %vm1234, %v1276, %v1182
        %v1289 = vsel %vm1235, %v1276, %v1183
        %v1290 = vsel %vm1236, %v1276, %v1184
        %v1291 = vsel %vm1237, %v1276, %v1185
        %v1292 = vsel %vm1238, %v1276, %v1186
        %s1293 = sld [smem:[#allocation3 + $0x187]]
        %v1294 = vstv %s1293
        %v1295 = vsel %vm1223, %v1294, %v1189
        %v1296 = vsel %vm1224, %v1294, %v1190
        %v1297 = vsel %vm1225, %v1294, %v1191
        %v1298 = vsel %vm1226, %v1294, %v1192
        %v1299 = vsel %vm1227, %v1294, %v1193
        %v1300 = vsel %vm1228, %v1294, %v1194
        %v1301 = vsel %vm1229, %v1294, %v1195
        %v1302 = vsel %vm1230, %v1294, %v1196
        %v1303 = vsel %vm1231, %v1294, %v1197
        %v1304 = vsel %vm1232, %v1294, %v1198
        %v1305 = vsel %vm1233, %v1294, %v1199
        %v1306 = vsel %vm1234, %v1294, %v1200
        %v1307 = vsel %vm1235, %v1294, %v1201
        %v1308 = vsel %vm1236, %v1294, %v1202
        %v1309 = vsel %vm1237, %v1294, %v1203
        %v1310 = vsel %vm1238, %v1294, %v1204
        %s1311 = sld [smem:[#allocation3 + $0x207]]
        %v1312 = vstv %s1311
        %v1313 = vsel %vm1223, %v1312, %v1207
        %v1314 = vsel %vm1224, %v1312, %v1208
        %v1315 = vsel %vm1225, %v1312, %v1209
        %v1316 = vsel %vm1226, %v1312, %v1210
        %v1317 = vsel %vm1227, %v1312, %v1211
        %v1318 = vsel %vm1228, %v1312, %v1212
        %v1319 = vsel %vm1229, %v1312, %v1213
        %v1320 = vsel %vm1230, %v1312, %v1214
        %v1321 = vsel %vm1231, %v1312, %v1215
        %v1322 = vsel %vm1232, %v1312, %v1216
        %v1323 = vsel %vm1233, %v1312, %v1217
        %v1324 = vsel %vm1234, %v1312, %v1218
        %v1325 = vsel %vm1235, %v1312, %v1219
        %v1326 = vsel %vm1236, %v1312, %v1220
        %v1327 = vsel %vm1237, %v1312, %v1221
        %v1328 = vsel %vm1238, %v1312, %v1222
        %vm1329 = vcmp.eq.s32.totalorder %v465, 13
        %vm1330 = vcmp.eq.s32.totalorder %v466, 13
        %vm1331 = vcmp.eq.s32.totalorder %v467, 13
        %vm1332 = vcmp.eq.s32.totalorder %v468, 13
        %vm1333 = vcmp.eq.s32.totalorder %v469, 13
        %vm1334 = vcmp.eq.s32.totalorder %v470, 13
        %vm1335 = vcmp.eq.s32.totalorder %v471, 13
        %vm1336 = vcmp.eq.s32.totalorder %v472, 13
        %vm1337 = vcmp.eq.s32.totalorder %v473, 13
        %vm1338 = vcmp.eq.s32.totalorder %v474, 13
        %vm1339 = vcmp.eq.s32.totalorder %v475, 13
        %vm1340 = vcmp.eq.s32.totalorder %v476, 13
        %vm1341 = vcmp.eq.s32.totalorder %v477, 13
        %vm1342 = vcmp.eq.s32.totalorder %v478, 13
        %vm1343 = vcmp.eq.s32.totalorder %v479, 13
        %vm1344 = vcmp.eq.s32.totalorder %v480, 13
        %s1345 = sld [smem:[#allocation3 + $0x8]]
        %v1346 = vstv %s1345
        %v1347 = vsel %vm1329, %v1346, %v1241
        %v1348 = vsel %vm1330, %v1346, %v1242
        %v1349 = vsel %vm1331, %v1346, %v1243
        %v1350 = vsel %vm1332, %v1346, %v1244
        %v1351 = vsel %vm1333, %v1346, %v1245
        %v1352 = vsel %vm1334, %v1346, %v1246
        %v1353 = vsel %vm1335, %v1346, %v1247
        %v1354 = vsel %vm1336, %v1346, %v1248
        %v1355 = vsel %vm1337, %v1346, %v1249
        %v1356 = vsel %vm1338, %v1346, %v1250
        %v1357 = vsel %vm1339, %v1346, %v1251
        %v1358 = vsel %vm1340, %v1346, %v1252
        %v1359 = vsel %vm1341, %v1346, %v1253
        %v1360 = vsel %vm1342, %v1346, %v1254
        %v1361 = vsel %vm1343, %v1346, %v1255
        %v1362 = vsel %vm1344, %v1346, %v1256
        %s1363 = sld [smem:[#allocation3 + $0x88]]
        %v1364 = vstv %s1363
        %v1365 = vsel %vm1329, %v1364, %v1259
        %v1366 = vsel %vm1330, %v1364, %v1260
        %v1367 = vsel %vm1331, %v1364, %v1261
        %v1368 = vsel %vm1332, %v1364, %v1262
        %v1369 = vsel %vm1333, %v1364, %v1263
        %v1370 = vsel %vm1334, %v1364, %v1264
        %v1371 = vsel %vm1335, %v1364, %v1265
        %v1372 = vsel %vm1336, %v1364, %v1266
        %v1373 = vsel %vm1337, %v1364, %v1267
        %v1374 = vsel %vm1338, %v1364, %v1268
        %v1375 = vsel %vm1339, %v1364, %v1269
        %v1376 = vsel %vm1340, %v1364, %v1270
        %v1377 = vsel %vm1341, %v1364, %v1271
        %v1378 = vsel %vm1342, %v1364, %v1272
        %v1379 = vsel %vm1343, %v1364, %v1273
        %v1380 = vsel %vm1344, %v1364, %v1274
        %s1381 = sld [smem:[#allocation3 + $0x108]]
        %v1382 = vstv %s1381
        %v1383 = vsel %vm1329, %v1382, %v1277
        %v1384 = vsel %vm1330, %v1382, %v1278
        %v1385 = vsel %vm1331, %v1382, %v1279
        %v1386 = vsel %vm1332, %v1382, %v1280
        %v1387 = vsel %vm1333, %v1382, %v1281
        %v1388 = vsel %vm1334, %v1382, %v1282
        %v1389 = vsel %vm1335, %v1382, %v1283
        %v1390 = vsel %vm1336, %v1382, %v1284
        %v1391 = vsel %vm1337, %v1382, %v1285
        %v1392 = vsel %vm1338, %v1382, %v1286
        %v1393 = vsel %vm1339, %v1382, %v1287
        %v1394 = vsel %vm1340, %v1382, %v1288
        %v1395 = vsel %vm1341, %v1382, %v1289
        %v1396 = vsel %vm1342, %v1382, %v1290
        %v1397 = vsel %vm1343, %v1382, %v1291
        %v1398 = vsel %vm1344, %v1382, %v1292
        %s1399 = sld [smem:[#allocation3 + $0x188]]
        %v1400 = vstv %s1399
        %v1401 = vsel %vm1329, %v1400, %v1295
        %v1402 = vsel %vm1330, %v1400, %v1296
        %v1403 = vsel %vm1331, %v1400, %v1297
        %v1404 = vsel %vm1332, %v1400, %v1298
        %v1405 = vsel %vm1333, %v1400, %v1299
        %v1406 = vsel %vm1334, %v1400, %v1300
        %v1407 = vsel %vm1335, %v1400, %v1301
        %v1408 = vsel %vm1336, %v1400, %v1302
        %v1409 = vsel %vm1337, %v1400, %v1303
        %v1410 = vsel %vm1338, %v1400, %v1304
        %v1411 = vsel %vm1339, %v1400, %v1305
        %v1412 = vsel %vm1340, %v1400, %v1306
        %v1413 = vsel %vm1341, %v1400, %v1307
        %v1414 = vsel %vm1342, %v1400, %v1308
        %v1415 = vsel %vm1343, %v1400, %v1309
        %v1416 = vsel %vm1344, %v1400, %v1310
        %s1417 = sld [smem:[#allocation3 + $0x208]]
        %v1418 = vstv %s1417
        %v1419 = vsel %vm1329, %v1418, %v1313
        %v1420 = vsel %vm1330, %v1418, %v1314
        %v1421 = vsel %vm1331, %v1418, %v1315
        %v1422 = vsel %vm1332, %v1418, %v1316
        %v1423 = vsel %vm1333, %v1418, %v1317
        %v1424 = vsel %vm1334, %v1418, %v1318
        %v1425 = vsel %vm1335, %v1418, %v1319
        %v1426 = vsel %vm1336, %v1418, %v1320
        %v1427 = vsel %vm1337, %v1418, %v1321
        %v1428 = vsel %vm1338, %v1418, %v1322
        %v1429 = vsel %vm1339, %v1418, %v1323
        %v1430 = vsel %vm1340, %v1418, %v1324
        %v1431 = vsel %vm1341, %v1418, %v1325
        %v1432 = vsel %vm1342, %v1418, %v1326
        %v1433 = vsel %vm1343, %v1418, %v1327
        %v1434 = vsel %vm1344, %v1418, %v1328
        %v1435 = vlaneseq
        %v1436 = vand.u32 %v1435, 127
        %vm1437 = vcmp.lt.s32.totalorder %v1436, 127
        %vm1438 = vcmp.gt.s32.totalorder %v1436, 0
        %1439 = vrot.lane.b32.xlu0 %v1347, 127
        %v1440 = vpop.permute.xlu0 %1439
        %1441 = vrot.lane.b32.xlu0 %v1348, 127
        %v1442 = vpop.permute.xlu0 %1441
        %1443 = vrot.lane.b32.xlu0 %v1349, 127
        %v1444 = vpop.permute.xlu0 %1443
        %1445 = vrot.lane.b32.xlu0 %v1350, 127
        %v1446 = vpop.permute.xlu0 %1445
        %1447 = vrot.lane.b32.xlu0 %v1351, 127
        %v1448 = vpop.permute.xlu0 %1447
        %1449 = vrot.lane.b32.xlu0 %v1352, 127
        %v1450 = vpop.permute.xlu0 %1449
        %1451 = vrot.lane.b32.xlu0 %v1353, 127
        %v1452 = vpop.permute.xlu0 %1451
        %1453 = vrot.lane.b32.xlu0 %v1354, 127
        %v1454 = vpop.permute.xlu0 %1453
        %1455 = vrot.lane.b32.xlu0 %v1355, 127
        %v1456 = vpop.permute.xlu0 %1455
        %1457 = vrot.lane.b32.xlu0 %v1356, 127
        %v1458 = vpop.permute.xlu0 %1457
        %1459 = vrot.lane.b32.xlu0 %v1357, 127
        %v1460 = vpop.permute.xlu0 %1459
        %1461 = vrot.lane.b32.xlu0 %v1358, 127
        %v1462 = vpop.permute.xlu0 %1461
        %1463 = vrot.lane.b32.xlu0 %v1359, 127
        %v1464 = vpop.permute.xlu0 %1463
        %1465 = vrot.lane.b32.xlu0 %v1360, 127
        %v1466 = vpop.permute.xlu0 %1465
        %1467 = vrot.lane.b32.xlu0 %v1361, 127
        %v1468 = vpop.permute.xlu0 %1467
        %1469 = vrot.lane.b32.xlu0 %v1362, 127
        %v1470 = vpop.permute.xlu0 %1469
        %v1471 = vsub.f32 %v1347, %v1440
        %v1472 = vsub.f32 %v1348, %v1442
        %v1473 = vsub.f32 %v1349, %v1444
        %v1474 = vsub.f32 %v1350, %v1446
        %v1475 = vsub.f32 %v1351, %v1448
        %v1476 = vsub.f32 %v1352, %v1450
        %v1477 = vsub.f32 %v1353, %v1452
        %v1478 = vsub.f32 %v1354, %v1454
        %v1479 = vsub.f32 %v1355, %v1456
        %v1480 = vsub.f32 %v1356, %v1458
        %v1481 = vsub.f32 %v1357, %v1460
        %v1482 = vsub.f32 %v1358, %v1462
        %v1483 = vsub.f32 %v1359, %v1464
        %v1484 = vsub.f32 %v1360, %v1466
        %v1485 = vsub.f32 %v1361, %v1468
        %v1486 = vsub.f32 %v1362, %v1470
        %v1487 = vsel %vm1437, %v1471, 0.0
        %v1488 = vsel %vm1437, %v1472, 0.0
        %v1489 = vsel %vm1437, %v1473, 0.0
        %v1490 = vsel %vm1437, %v1474, 0.0
        %v1491 = vsel %vm1437, %v1475, 0.0
        %v1492 = vsel %vm1437, %v1476, 0.0
        %v1493 = vsel %vm1437, %v1477, 0.0
        %v1494 = vsel %vm1437, %v1478, 0.0
        %v1495 = vsel %vm1437, %v1479, 0.0
        %v1496 = vsel %vm1437, %v1480, 0.0
        %v1497 = vsel %vm1437, %v1481, 0.0
        %v1498 = vsel %vm1437, %v1482, 0.0
        %v1499 = vsel %vm1437, %v1483, 0.0
        %v1500 = vsel %vm1437, %v1484, 0.0
        %v1501 = vsel %vm1437, %v1485, 0.0
        %v1502 = vsel %vm1437, %v1486, 0.0
        %1503 = vrot.lane.b32.xlu0 %v1347, 1
        %v1504 = vpop.permute.xlu0 %1503
        %1505 = vrot.lane.b32.xlu0 %v1348, 1
        %v1506 = vpop.permute.xlu0 %1505
        %1507 = vrot.lane.b32.xlu0 %v1349, 1
        %v1508 = vpop.permute.xlu0 %1507
        %1509 = vrot.lane.b32.xlu0 %v1350, 1
        %v1510 = vpop.permute.xlu0 %1509
        %1511 = vrot.lane.b32.xlu0 %v1351, 1
        %v1512 = vpop.permute.xlu0 %1511
        %1513 = vrot.lane.b32.xlu0 %v1352, 1
        %v1514 = vpop.permute.xlu0 %1513
        %1515 = vrot.lane.b32.xlu0 %v1353, 1
        %v1516 = vpop.permute.xlu0 %1515
        %1517 = vrot.lane.b32.xlu0 %v1354, 1
        %v1518 = vpop.permute.xlu0 %1517
        %1519 = vrot.lane.b32.xlu0 %v1355, 1
        %v1520 = vpop.permute.xlu0 %1519
        %1521 = vrot.lane.b32.xlu0 %v1356, 1
        %v1522 = vpop.permute.xlu0 %1521
        %1523 = vrot.lane.b32.xlu0 %v1357, 1
        %v1524 = vpop.permute.xlu0 %1523
        %1525 = vrot.lane.b32.xlu0 %v1358, 1
        %v1526 = vpop.permute.xlu0 %1525
        %1527 = vrot.lane.b32.xlu0 %v1359, 1
        %v1528 = vpop.permute.xlu0 %1527
        %1529 = vrot.lane.b32.xlu0 %v1360, 1
        %v1530 = vpop.permute.xlu0 %1529
        %1531 = vrot.lane.b32.xlu0 %v1361, 1
        %v1532 = vpop.permute.xlu0 %1531
        %1533 = vrot.lane.b32.xlu0 %v1362, 1
        %v1534 = vpop.permute.xlu0 %1533
        %v1535 = vsel %vm1438, %v1504, 0.0
        %v1536 = vsel %vm1438, %v1506, 0.0
        %v1537 = vsel %vm1438, %v1508, 0.0
        %v1538 = vsel %vm1438, %v1510, 0.0
        %v1539 = vsel %vm1438, %v1512, 0.0
        %v1540 = vsel %vm1438, %v1514, 0.0
        %v1541 = vsel %vm1438, %v1516, 0.0
        %v1542 = vsel %vm1438, %v1518, 0.0
        %v1543 = vsel %vm1438, %v1520, 0.0
        %v1544 = vsel %vm1438, %v1522, 0.0
        %v1545 = vsel %vm1438, %v1524, 0.0
        %v1546 = vsel %vm1438, %v1526, 0.0
        %v1547 = vsel %vm1438, %v1528, 0.0
        %v1548 = vsel %vm1438, %v1530, 0.0
        %v1549 = vsel %vm1438, %v1532, 0.0
        %v1550 = vsel %vm1438, %v1534, 0.0
        %v1551 = vadd.f32 %v1347, %v1535
        %v1552 = vadd.f32 %v1348, %v1536
        %v1553 = vadd.f32 %v1349, %v1537
        %v1554 = vadd.f32 %v1350, %v1538
        %v1555 = vadd.f32 %v1351, %v1539
        %v1556 = vadd.f32 %v1352, %v1540
        %v1557 = vadd.f32 %v1353, %v1541
        %v1558 = vadd.f32 %v1354, %v1542
        %v1559 = vadd.f32 %v1355, %v1543
        %v1560 = vadd.f32 %v1356, %v1544
        %v1561 = vadd.f32 %v1357, %v1545
        %v1562 = vadd.f32 %v1358, %v1546
        %v1563 = vadd.f32 %v1359, %v1547
        %v1564 = vadd.f32 %v1360, %v1548
        %v1565 = vadd.f32 %v1361, %v1549
        %v1566 = vadd.f32 %v1362, %v1550
        %vm1567 = vcmp.eq.f32.partialorder %v1551, 0.0
        %vm1568 = vcmp.eq.f32.partialorder %v1552, 0.0
        %vm1569 = vcmp.eq.f32.partialorder %v1553, 0.0
        %vm1570 = vcmp.eq.f32.partialorder %v1554, 0.0
        %vm1571 = vcmp.eq.f32.partialorder %v1555, 0.0
        %vm1572 = vcmp.eq.f32.partialorder %v1556, 0.0
        %vm1573 = vcmp.eq.f32.partialorder %v1557, 0.0
        %vm1574 = vcmp.eq.f32.partialorder %v1558, 0.0
        %vm1575 = vcmp.eq.f32.partialorder %v1559, 0.0
        %vm1576 = vcmp.eq.f32.partialorder %v1560, 0.0
        %vm1577 = vcmp.eq.f32.partialorder %v1561, 0.0
        %vm1578 = vcmp.eq.f32.partialorder %v1562, 0.0
        %vm1579 = vcmp.eq.f32.partialorder %v1563, 0.0
        %vm1580 = vcmp.eq.f32.partialorder %v1564, 0.0
        %vm1581 = vcmp.eq.f32.partialorder %v1565, 0.0
        %vm1582 = vcmp.eq.f32.partialorder %v1566, 0.0
        %v1583 = vsel %vm1567, 1.0, %v1551
        %v1584 = vsel %vm1568, 1.0, %v1552
        %v1585 = vsel %vm1569, 1.0, %v1553
        %v1586 = vsel %vm1570, 1.0, %v1554
        %v1587 = vsel %vm1571, 1.0, %v1555
        %v1588 = vsel %vm1572, 1.0, %v1556
        %v1589 = vsel %vm1573, 1.0, %v1557
        %v1590 = vsel %vm1574, 1.0, %v1558
        %v1591 = vsel %vm1575, 1.0, %v1559
        %v1592 = vsel %vm1576, 1.0, %v1560
        %v1593 = vsel %vm1577, 1.0, %v1561
        %v1594 = vsel %vm1578, 1.0, %v1562
        %v1595 = vsel %vm1579, 1.0, %v1563
        %v1596 = vsel %vm1580, 1.0, %v1564
        %v1597 = vsel %vm1581, 1.0, %v1565
        %v1598 = vsel %vm1582, 1.0, %v1566
        %v1599 = vrcp.pop %v1583
        %v1600 = vrcp.pop %v1584
        %v1601 = vrcp.pop %v1585
        %v1602 = vrcp.pop %v1586
        %v1603 = vrcp.pop %v1587
        %v1604 = vrcp.pop %v1588
        %v1605 = vrcp.pop %v1589
        %v1606 = vrcp.pop %v1590
        %v1607 = vrcp.pop %v1591
        %v1608 = vrcp.pop %v1592
        %v1609 = vrcp.pop %v1593
        %v1610 = vrcp.pop %v1594
        %v1611 = vrcp.pop %v1595
        %v1612 = vrcp.pop %v1596
        %v1613 = vrcp.pop %v1597
        %v1614 = vrcp.pop %v1598
        %v1615 = vmul.f32 %v1487, %v1599
        %v1616 = vmul.f32 %v1488, %v1600
        %v1617 = vmul.f32 %v1489, %v1601
        %v1618 = vmul.f32 %v1490, %v1602
        %v1619 = vmul.f32 %v1491, %v1603
        %v1620 = vmul.f32 %v1492, %v1604
        %v1621 = vmul.f32 %v1493, %v1605
        %v1622 = vmul.f32 %v1494, %v1606
        %v1623 = vmul.f32 %v1495, %v1607
        %v1624 = vmul.f32 %v1496, %v1608
        %v1625 = vmul.f32 %v1497, %v1609
        %v1626 = vmul.f32 %v1498, %v1610
        %v1627 = vmul.f32 %v1499, %v1611
        %v1628 = vmul.f32 %v1500, %v1612
        %v1629 = vmul.f32 %v1501, %v1613
        %v1630 = vmul.f32 %v1502, %v1614
        %v1631 = vmul.f32 %v1487, %v1487
        %v1632 = vmul.f32 %v1488, %v1488
        %v1633 = vmul.f32 %v1489, %v1489
        %v1634 = vmul.f32 %v1490, %v1490
        %v1635 = vmul.f32 %v1491, %v1491
        %v1636 = vmul.f32 %v1492, %v1492
        %v1637 = vmul.f32 %v1493, %v1493
        %v1638 = vmul.f32 %v1494, %v1494
        %v1639 = vmul.f32 %v1495, %v1495
        %v1640 = vmul.f32 %v1496, %v1496
        %v1641 = vmul.f32 %v1497, %v1497
        %v1642 = vmul.f32 %v1498, %v1498
        %v1643 = vmul.f32 %v1499, %v1499
        %v1644 = vmul.f32 %v1500, %v1500
        %v1645 = vmul.f32 %v1501, %v1501
        %v1646 = vmul.f32 %v1502, %v1502
        %v1647 = vmul.f32 %v1631, -10.0
        %v1648 = vmul.f32 %v1632, -10.0
        %v1649 = vmul.f32 %v1633, -10.0
        %v1650 = vmul.f32 %v1634, -10.0
        %v1651 = vmul.f32 %v1635, -10.0
        %v1652 = vmul.f32 %v1636, -10.0
        %v1653 = vmul.f32 %v1637, -10.0
        %v1654 = vmul.f32 %v1638, -10.0
        %v1655 = vmul.f32 %v1639, -10.0
        %v1656 = vmul.f32 %v1640, -10.0
        %v1657 = vmul.f32 %v1641, -10.0
        %v1658 = vmul.f32 %v1642, -10.0
        %v1659 = vmul.f32 %v1643, -10.0
        %v1660 = vmul.f32 %v1644, -10.0
        %v1661 = vmul.f32 %v1645, -10.0
        %v1662 = vmul.f32 %v1646, -10.0
        %v1663 = vmul.f32 %v1647, 1.442695
        %v1664 = vpow.pop %v1663
        %v1665 = vmul.f32 %v1648, 1.442695
        %v1666 = vpow.pop %v1665
        %v1667 = vmul.f32 %v1649, 1.442695
        %v1668 = vpow.pop %v1667
        %v1669 = vmul.f32 %v1650, 1.442695
        %v1670 = vpow.pop %v1669
        %v1671 = vmul.f32 %v1651, 1.442695
        %v1672 = vpow.pop %v1671
        %v1673 = vmul.f32 %v1652, 1.442695
        %v1674 = vpow.pop %v1673
        %v1675 = vmul.f32 %v1653, 1.442695
        %v1676 = vpow.pop %v1675
        %v1677 = vmul.f32 %v1654, 1.442695
        %v1678 = vpow.pop %v1677
        %v1679 = vmul.f32 %v1655, 1.442695
        %v1680 = vpow.pop %v1679
        %v1681 = vmul.f32 %v1656, 1.442695
        %v1682 = vpow.pop %v1681
        %v1683 = vmul.f32 %v1657, 1.442695
        %v1684 = vpow.pop %v1683
        %v1685 = vmul.f32 %v1658, 1.442695
        %v1686 = vpow.pop %v1685
        %v1687 = vmul.f32 %v1659, 1.442695
        %v1688 = vpow.pop %v1687
        %v1689 = vmul.f32 %v1660, 1.442695
        %v1690 = vpow.pop %v1689
        %v1691 = vmul.f32 %v1661, 1.442695
        %v1692 = vpow.pop %v1691
        %v1693 = vmul.f32 %v1662, 1.442695
        %v1694 = vpow.pop %v1693
        %v1695 = vsub.f32 1.0, %v1664
        %v1696 = vsub.f32 1.0, %v1666
        %v1697 = vsub.f32 1.0, %v1668
        %v1698 = vsub.f32 1.0, %v1670
        %v1699 = vsub.f32 1.0, %v1672
        %v1700 = vsub.f32 1.0, %v1674
        %v1701 = vsub.f32 1.0, %v1676
        %v1702 = vsub.f32 1.0, %v1678
        %v1703 = vsub.f32 1.0, %v1680
        %v1704 = vsub.f32 1.0, %v1682
        %v1705 = vsub.f32 1.0, %v1684
        %v1706 = vsub.f32 1.0, %v1686
        %v1707 = vsub.f32 1.0, %v1688
        %v1708 = vsub.f32 1.0, %v1690
        %v1709 = vsub.f32 1.0, %v1692
        %v1710 = vsub.f32 1.0, %v1694
        %v1711 = vmul.f32 %v1615, %v1615
        %v1712 = vmul.f32 %v1616, %v1616
        %v1713 = vmul.f32 %v1617, %v1617
        %v1714 = vmul.f32 %v1618, %v1618
        %v1715 = vmul.f32 %v1619, %v1619
        %v1716 = vmul.f32 %v1620, %v1620
        %v1717 = vmul.f32 %v1621, %v1621
        %v1718 = vmul.f32 %v1622, %v1622
        %v1719 = vmul.f32 %v1623, %v1623
        %v1720 = vmul.f32 %v1624, %v1624
        %v1721 = vmul.f32 %v1625, %v1625
        %v1722 = vmul.f32 %v1626, %v1626
        %v1723 = vmul.f32 %v1627, %v1627
        %v1724 = vmul.f32 %v1628, %v1628
        %v1725 = vmul.f32 %v1629, %v1629
        %v1726 = vmul.f32 %v1630, %v1630
        %v1727 = vxor.u32 %v1711, 2147483648
        %v1728 = vxor.u32 %v1712, 2147483648
        %v1729 = vxor.u32 %v1713, 2147483648
        %v1730 = vxor.u32 %v1714, 2147483648
        %v1731 = vxor.u32 %v1715, 2147483648
        %v1732 = vxor.u32 %v1716, 2147483648
        %v1733 = vxor.u32 %v1717, 2147483648
        %v1734 = vxor.u32 %v1718, 2147483648
        %v1735 = vxor.u32 %v1719, 2147483648
        %v1736 = vxor.u32 %v1720, 2147483648
        %v1737 = vxor.u32 %v1721, 2147483648
        %v1738 = vxor.u32 %v1722, 2147483648
        %v1739 = vxor.u32 %v1723, 2147483648
        %v1740 = vxor.u32 %v1724, 2147483648
        %v1741 = vxor.u32 %v1725, 2147483648
        %v1742 = vxor.u32 %v1726, 2147483648
        %v1743 = vmul.f32 %v1727, 1.442695
        %v1744 = vpow.pop %v1743
        %v1745 = vmul.f32 %v1728, 1.442695
        %v1746 = vpow.pop %v1745
        %v1747 = vmul.f32 %v1729, 1.442695
        %v1748 = vpow.pop %v1747
        %v1749 = vmul.f32 %v1730, 1.442695
        %v1750 = vpow.pop %v1749
        %v1751 = vmul.f32 %v1731, 1.442695
        %v1752 = vpow.pop %v1751
        %v1753 = vmul.f32 %v1732, 1.442695
        %v1754 = vpow.pop %v1753
        %v1755 = vmul.f32 %v1733, 1.442695
        %v1756 = vpow.pop %v1755
        %v1757 = vmul.f32 %v1734, 1.442695
        %v1758 = vpow.pop %v1757
        %v1759 = vmul.f32 %v1735, 1.442695
        %v1760 = vpow.pop %v1759
        %v1761 = vmul.f32 %v1736, 1.442695
        %v1762 = vpow.pop %v1761
        %v1763 = vmul.f32 %v1737, 1.442695
        %v1764 = vpow.pop %v1763
        %v1765 = vmul.f32 %v1738, 1.442695
        %v1766 = vpow.pop %v1765
        %v1767 = vmul.f32 %v1739, 1.442695
        %v1768 = vpow.pop %v1767
        %v1769 = vmul.f32 %v1740, 1.442695
        %v1770 = vpow.pop %v1769
        %v1771 = vmul.f32 %v1741, 1.442695
        %v1772 = vpow.pop %v1771
        %v1773 = vmul.f32 %v1742, 1.442695
        %v1774 = vpow.pop %v1773
        %v1775 = vadd.f32 %v1744, 1.0
        %v1776 = vadd.f32 %v1746, 1.0
        %v1777 = vadd.f32 %v1748, 1.0
        %v1778 = vadd.f32 %v1750, 1.0
        %v1779 = vadd.f32 %v1752, 1.0
        %v1780 = vadd.f32 %v1754, 1.0
        %v1781 = vadd.f32 %v1756, 1.0
        %v1782 = vadd.f32 %v1758, 1.0
        %v1783 = vadd.f32 %v1760, 1.0
        %v1784 = vadd.f32 %v1762, 1.0
        %v1785 = vadd.f32 %v1764, 1.0
        %v1786 = vadd.f32 %v1766, 1.0
        %v1787 = vadd.f32 %v1768, 1.0
        %v1788 = vadd.f32 %v1770, 1.0
        %v1789 = vadd.f32 %v1772, 1.0
        %v1790 = vadd.f32 %v1774, 1.0
        %v1791 = vrcp.pop %v1775
        %v1792 = vmul.f32 1.0, %v1791
        %v1793 = vrcp.pop %v1776
        %v1794 = vmul.f32 1.0, %v1793
        %v1795 = vrcp.pop %v1777
        %v1796 = vmul.f32 1.0, %v1795
        %v1797 = vrcp.pop %v1778
        %v1798 = vmul.f32 1.0, %v1797
        %v1799 = vrcp.pop %v1779
        %v1800 = vmul.f32 1.0, %v1799
        %v1801 = vrcp.pop %v1780
        %v1802 = vmul.f32 1.0, %v1801
        %v1803 = vrcp.pop %v1781
        %v1804 = vmul.f32 1.0, %v1803
        %v1805 = vrcp.pop %v1782
        %v1806 = vmul.f32 1.0, %v1805
        %v1807 = vrcp.pop %v1783
        %v1808 = vmul.f32 1.0, %v1807
        %v1809 = vrcp.pop %v1784
        %v1810 = vmul.f32 1.0, %v1809
        %v1811 = vrcp.pop %v1785
        %v1812 = vmul.f32 1.0, %v1811
        %v1813 = vrcp.pop %v1786
        %v1814 = vmul.f32 1.0, %v1813
        %v1815 = vrcp.pop %v1787
        %v1816 = vmul.f32 1.0, %v1815
        %v1817 = vrcp.pop %v1788
        %v1818 = vmul.f32 1.0, %v1817
        %v1819 = vrcp.pop %v1789
        %v1820 = vmul.f32 1.0, %v1819
        %v1821 = vrcp.pop %v1790
        %v1822 = vmul.f32 1.0, %v1821
        %v1823 = vld [vmem:[%s405] sm:$0xff]
        %v1824 = vld [vmem:[%s405 + $0x8] sm:$0xff]
        %v1825 = vld [vmem:[%s405 + $0x10] sm:$0xff]
        %v1826 = vld [vmem:[%s405 + $0x18] sm:$0xff]
        %v1827 = vld [vmem:[%s405 + $0x20] sm:$0xff]
        %v1828 = vld [vmem:[%s405 + $0x28] sm:$0xff]
        %v1829 = vld [vmem:[%s405 + $0x30] sm:$0xff]
        %v1830 = vld [vmem:[%s405 + $0x38] sm:$0xff]
        %v1831 = vld [vmem:[%s405 + $0x40] sm:$0xff]
        %v1832 = vld [vmem:[%s405 + $0x48] sm:$0xff]
        %v1833 = vld [vmem:[%s405 + $0x50] sm:$0xff]
        %v1834 = vld [vmem:[%s405 + $0x58] sm:$0xff]
        %v1835 = vld [vmem:[%s405 + $0x60] sm:$0xff]
        %v1836 = vld [vmem:[%s405 + $0x68] sm:$0xff]
        %v1837 = vld [vmem:[%s405 + $0x70] sm:$0xff]
        %v1838 = vld [vmem:[%s405 + $0x78] sm:$0xff]
        %v1839 = vsub.f32 %v1401, %v1823
        %v1840 = vsub.f32 %v1402, %v1824
        %v1841 = vsub.f32 %v1403, %v1825
        %v1842 = vsub.f32 %v1404, %v1826
        %v1843 = vsub.f32 %v1405, %v1827
        %v1844 = vsub.f32 %v1406, %v1828
        %v1845 = vsub.f32 %v1407, %v1829
        %v1846 = vsub.f32 %v1408, %v1830
        %v1847 = vsub.f32 %v1409, %v1831
        %v1848 = vsub.f32 %v1410, %v1832
        %v1849 = vsub.f32 %v1411, %v1833
        %v1850 = vsub.f32 %v1412, %v1834
        %v1851 = vsub.f32 %v1413, %v1835
        %v1852 = vsub.f32 %v1414, %v1836
        %v1853 = vsub.f32 %v1415, %v1837
        %v1854 = vsub.f32 %v1416, %v1838
        %v1855 = vmul.f32 %v1839, 10.0
        %v1856 = vmul.f32 %v1840, 10.0
        %v1857 = vmul.f32 %v1841, 10.0
        %v1858 = vmul.f32 %v1842, 10.0
        %v1859 = vmul.f32 %v1843, 10.0
        %v1860 = vmul.f32 %v1844, 10.0
        %v1861 = vmul.f32 %v1845, 10.0
        %v1862 = vmul.f32 %v1846, 10.0
        %v1863 = vmul.f32 %v1847, 10.0
        %v1864 = vmul.f32 %v1848, 10.0
        %v1865 = vmul.f32 %v1849, 10.0
        %v1866 = vmul.f32 %v1850, 10.0
        %v1867 = vmul.f32 %v1851, 10.0
        %v1868 = vmul.f32 %v1852, 10.0
        %v1869 = vmul.f32 %v1853, 10.0
        %v1870 = vmul.f32 %v1854, 10.0
        %v1871 = vxor.u32 %v1855, 2147483648
        %v1872 = vxor.u32 %v1856, 2147483648
        %v1873 = vxor.u32 %v1857, 2147483648
        %v1874 = vxor.u32 %v1858, 2147483648
        %v1875 = vxor.u32 %v1859, 2147483648
        %v1876 = vxor.u32 %v1860, 2147483648
        %v1877 = vxor.u32 %v1861, 2147483648
        %v1878 = vxor.u32 %v1862, 2147483648
        %v1879 = vxor.u32 %v1863, 2147483648
        %v1880 = vxor.u32 %v1864, 2147483648
        %v1881 = vxor.u32 %v1865, 2147483648
        %v1882 = vxor.u32 %v1866, 2147483648
        %v1883 = vxor.u32 %v1867, 2147483648
        %v1884 = vxor.u32 %v1868, 2147483648
        %v1885 = vxor.u32 %v1869, 2147483648
        %v1886 = vxor.u32 %v1870, 2147483648
        %v1887 = vmul.f32 %v1871, 1.442695
        %v1888 = vpow.pop %v1887
        %v1889 = vmul.f32 %v1872, 1.442695
        %v1890 = vpow.pop %v1889
        %v1891 = vmul.f32 %v1873, 1.442695
        %v1892 = vpow.pop %v1891
        %v1893 = vmul.f32 %v1874, 1.442695
        %v1894 = vpow.pop %v1893
        %v1895 = vmul.f32 %v1875, 1.442695
        %v1896 = vpow.pop %v1895
        %v1897 = vmul.f32 %v1876, 1.442695
        %v1898 = vpow.pop %v1897
        %v1899 = vmul.f32 %v1877, 1.442695
        %v1900 = vpow.pop %v1899
        %v1901 = vmul.f32 %v1878, 1.442695
        %v1902 = vpow.pop %v1901
        %v1903 = vmul.f32 %v1879, 1.442695
        %v1904 = vpow.pop %v1903
        %v1905 = vmul.f32 %v1880, 1.442695
        %v1906 = vpow.pop %v1905
        %v1907 = vmul.f32 %v1881, 1.442695
        %v1908 = vpow.pop %v1907
        %v1909 = vmul.f32 %v1882, 1.442695
        %v1910 = vpow.pop %v1909
        %v1911 = vmul.f32 %v1883, 1.442695
        %v1912 = vpow.pop %v1911
        %v1913 = vmul.f32 %v1884, 1.442695
        %v1914 = vpow.pop %v1913
        %v1915 = vmul.f32 %v1885, 1.442695
        %v1916 = vpow.pop %v1915
        %v1917 = vmul.f32 %v1886, 1.442695
        %v1918 = vpow.pop %v1917
        %v1919 = vadd.f32 %v1888, 1.0
        %v1920 = vadd.f32 %v1890, 1.0
        %v1921 = vadd.f32 %v1892, 1.0
        %v1922 = vadd.f32 %v1894, 1.0
        %v1923 = vadd.f32 %v1896, 1.0
        %v1924 = vadd.f32 %v1898, 1.0
        %v1925 = vadd.f32 %v1900, 1.0
        %v1926 = vadd.f32 %v1902, 1.0
        %v1927 = vadd.f32 %v1904, 1.0
        %v1928 = vadd.f32 %v1906, 1.0
        %v1929 = vadd.f32 %v1908, 1.0
        %v1930 = vadd.f32 %v1910, 1.0
        %v1931 = vadd.f32 %v1912, 1.0
        %v1932 = vadd.f32 %v1914, 1.0
        %v1933 = vadd.f32 %v1916, 1.0
        %v1934 = vadd.f32 %v1918, 1.0
        %v1935 = vrcp.pop %v1919
        %v1936 = vmul.f32 1.0, %v1935
        %v1937 = vrcp.pop %v1920
        %v1938 = vmul.f32 1.0, %v1937
        %v1939 = vrcp.pop %v1921
        %v1940 = vmul.f32 1.0, %v1939
        %v1941 = vrcp.pop %v1922
        %v1942 = vmul.f32 1.0, %v1941
        %v1943 = vrcp.pop %v1923
        %v1944 = vmul.f32 1.0, %v1943
        %v1945 = vrcp.pop %v1924
        %v1946 = vmul.f32 1.0, %v1945
        %v1947 = vrcp.pop %v1925
        %v1948 = vmul.f32 1.0, %v1947
        %v1949 = vrcp.pop %v1926
        %v1950 = vmul.f32 1.0, %v1949
        %v1951 = vrcp.pop %v1927
        %v1952 = vmul.f32 1.0, %v1951
        %v1953 = vrcp.pop %v1928
        %v1954 = vmul.f32 1.0, %v1953
        %v1955 = vrcp.pop %v1929
        %v1956 = vmul.f32 1.0, %v1955
        %v1957 = vrcp.pop %v1930
        %v1958 = vmul.f32 1.0, %v1957
        %v1959 = vrcp.pop %v1931
        %v1960 = vmul.f32 1.0, %v1959
        %v1961 = vrcp.pop %v1932
        %v1962 = vmul.f32 1.0, %v1961
        %v1963 = vrcp.pop %v1933
        %v1964 = vmul.f32 1.0, %v1963
        %v1965 = vrcp.pop %v1934
        %v1966 = vmul.f32 1.0, %v1965
        %v1967 = vld [vmem:[%s396] sm:$0xff]
        %v1968 = vld [vmem:[%s396 + $0x8] sm:$0xff]
        %v1969 = vld [vmem:[%s396 + $0x10] sm:$0xff]
        %v1970 = vld [vmem:[%s396 + $0x18] sm:$0xff]
        %v1971 = vld [vmem:[%s396 + $0x20] sm:$0xff]
        %v1972 = vld [vmem:[%s396 + $0x28] sm:$0xff]
        %v1973 = vld [vmem:[%s396 + $0x30] sm:$0xff]
        %v1974 = vld [vmem:[%s396 + $0x38] sm:$0xff]
        %v1975 = vld [vmem:[%s396 + $0x40] sm:$0xff]
        %v1976 = vld [vmem:[%s396 + $0x48] sm:$0xff]
        %v1977 = vld [vmem:[%s396 + $0x50] sm:$0xff]
        %v1978 = vld [vmem:[%s396 + $0x58] sm:$0xff]
        %v1979 = vld [vmem:[%s396 + $0x60] sm:$0xff]
        %v1980 = vld [vmem:[%s396 + $0x68] sm:$0xff]
        %v1981 = vld [vmem:[%s396 + $0x70] sm:$0xff]
        %v1982 = vld [vmem:[%s396 + $0x78] sm:$0xff]
        %v1983 = vmul.f32 %v1967, %v1419
        %v1984 = vmul.f32 %v1968, %v1420
        %v1985 = vmul.f32 %v1969, %v1421
        %v1986 = vmul.f32 %v1970, %v1422
        %v1987 = vmul.f32 %v1971, %v1423
        %v1988 = vmul.f32 %v1972, %v1424
        %v1989 = vmul.f32 %v1973, %v1425
        %v1990 = vmul.f32 %v1974, %v1426
        %v1991 = vmul.f32 %v1975, %v1427
        %v1992 = vmul.f32 %v1976, %v1428
        %v1993 = vmul.f32 %v1977, %v1429
        %v1994 = vmul.f32 %v1978, %v1430
        %v1995 = vmul.f32 %v1979, %v1431
        %v1996 = vmul.f32 %v1980, %v1432
        %v1997 = vmul.f32 %v1981, %v1433
        %v1998 = vmul.f32 %v1982, %v1434
        %v1999 = vadd.f32 %v1983, %v1383
        %v2000 = vadd.f32 %v1984, %v1384
        %v2001 = vadd.f32 %v1985, %v1385
        %v2002 = vadd.f32 %v1986, %v1386
        %v2003 = vadd.f32 %v1987, %v1387
        %v2004 = vadd.f32 %v1988, %v1388
        %v2005 = vadd.f32 %v1989, %v1389
        %v2006 = vadd.f32 %v1990, %v1390
        %v2007 = vadd.f32 %v1991, %v1391
        %v2008 = vadd.f32 %v1992, %v1392
        %v2009 = vadd.f32 %v1993, %v1393
        %v2010 = vadd.f32 %v1994, %v1394
        %v2011 = vadd.f32 %v1995, %v1395
        %v2012 = vadd.f32 %v1996, %v1396
        %v2013 = vadd.f32 %v1997, %v1397
        %v2014 = vadd.f32 %v1998, %v1398
        %v2015 = vmul.f32 %v1936, %v1999
        %v2016 = vmul.f32 %v1938, %v2000
        %v2017 = vmul.f32 %v1940, %v2001
        %v2018 = vmul.f32 %v1942, %v2002
        %v2019 = vmul.f32 %v1944, %v2003
        %v2020 = vmul.f32 %v1946, %v2004
        %v2021 = vmul.f32 %v1948, %v2005
        %v2022 = vmul.f32 %v1950, %v2006
        %v2023 = vmul.f32 %v1952, %v2007
        %v2024 = vmul.f32 %v1954, %v2008
        %v2025 = vmul.f32 %v1956, %v2009
        %v2026 = vmul.f32 %v1958, %v2010
        %v2027 = vmul.f32 %v1960, %v2011
        %v2028 = vmul.f32 %v1962, %v2012
        %v2029 = vmul.f32 %v1964, %v2013
        %v2030 = vmul.f32 %v1966, %v2014
        %v2031 = vmul.f32 %v1792, %v1695
        %v2032 = vmul.f32 %v1794, %v1696
        %v2033 = vmul.f32 %v1796, %v1697
        %v2034 = vmul.f32 %v1798, %v1698
        %v2035 = vmul.f32 %v1800, %v1699
        %v2036 = vmul.f32 %v1802, %v1700
        %v2037 = vmul.f32 %v1804, %v1701
        %v2038 = vmul.f32 %v1806, %v1702
        %v2039 = vmul.f32 %v1808, %v1703
        %v2040 = vmul.f32 %v1810, %v1704
        %v2041 = vmul.f32 %v1812, %v1705
        %v2042 = vmul.f32 %v1814, %v1706
        %v2043 = vmul.f32 %v1816, %v1707
        %v2044 = vmul.f32 %v1818, %v1708
        %v2045 = vmul.f32 %v1820, %v1709
        %v2046 = vmul.f32 %v1822, %v1710
        %v2047 = vsub.f32 1.0, %v2031
        %v2048 = vsub.f32 1.0, %v2032
        %v2049 = vsub.f32 1.0, %v2033
        %v2050 = vsub.f32 1.0, %v2034
        %v2051 = vsub.f32 1.0, %v2035
        %v2052 = vsub.f32 1.0, %v2036
        %v2053 = vsub.f32 1.0, %v2037
        %v2054 = vsub.f32 1.0, %v2038
        %v2055 = vsub.f32 1.0, %v2039
        %v2056 = vsub.f32 1.0, %v2040
        %v2057 = vsub.f32 1.0, %v2041
        %v2058 = vsub.f32 1.0, %v2042
        %v2059 = vsub.f32 1.0, %v2043
        %v2060 = vsub.f32 1.0, %v2044
        %v2061 = vsub.f32 1.0, %v2045
        %v2062 = vsub.f32 1.0, %v2046
        %v2063 = vmax.f32 %v2047, 1e-30
        %v2064 = vmax.f32 %v2048, 1e-30
        %v2065 = vmax.f32 %v2049, 1e-30
        %v2066 = vmax.f32 %v2050, 1e-30
        %v2067 = vmax.f32 %v2051, 1e-30
        %v2068 = vmax.f32 %v2052, 1e-30
        %v2069 = vmax.f32 %v2053, 1e-30
        %v2070 = vmax.f32 %v2054, 1e-30
        %v2071 = vmax.f32 %v2055, 1e-30
        %v2072 = vmax.f32 %v2056, 1e-30
        %v2073 = vmax.f32 %v2057, 1e-30
        %v2074 = vmax.f32 %v2058, 1e-30
        %v2075 = vmax.f32 %v2059, 1e-30
        %v2076 = vmax.f32 %v2060, 1e-30
        %v2077 = vmax.f32 %v2061, 1e-30
        %v2078 = vmax.f32 %v2062, 1e-30
        %v2079 = vlog2.pop %v2063
        %v2080 = vmul.f32 %v2079, 0.6931472
        %v2081 = vlog2.pop %v2064
        %v2082 = vmul.f32 %v2081, 0.6931472
        %v2083 = vlog2.pop %v2065
        %v2084 = vmul.f32 %v2083, 0.6931472
        %v2085 = vlog2.pop %v2066
        %v2086 = vmul.f32 %v2085, 0.6931472
        %v2087 = vlog2.pop %v2067
        %v2088 = vmul.f32 %v2087, 0.6931472
        %v2089 = vlog2.pop %v2068
        %v2090 = vmul.f32 %v2089, 0.6931472
        %v2091 = vlog2.pop %v2069
        %v2092 = vmul.f32 %v2091, 0.6931472
        %v2093 = vlog2.pop %v2070
        %v2094 = vmul.f32 %v2093, 0.6931472
        %v2095 = vlog2.pop %v2071
        %v2096 = vmul.f32 %v2095, 0.6931472
        %v2097 = vlog2.pop %v2072
        %v2098 = vmul.f32 %v2097, 0.6931472
        %v2099 = vlog2.pop %v2073
        %v2100 = vmul.f32 %v2099, 0.6931472
        %v2101 = vlog2.pop %v2074
        %v2102 = vmul.f32 %v2101, 0.6931472
        %v2103 = vlog2.pop %v2075
        %v2104 = vmul.f32 %v2103, 0.6931472
        %v2105 = vlog2.pop %v2076
        %v2106 = vmul.f32 %v2105, 0.6931472
        %v2107 = vlog2.pop %v2077
        %v2108 = vmul.f32 %v2107, 0.6931472
        %v2109 = vlog2.pop %v2078
        %v2110 = vmul.f32 %v2109, 0.6931472
        %v2111 = vpack.c.bf16 %v1366, %v1365
        %v2112 = vpack.c.bf16 %v1368, %v1367
        %v2113 = vpack.c.bf16 %v1370, %v1369
        %v2114 = vpack.c.bf16 %v1372, %v1371
        %v2115 = vpack.c.bf16 %v1374, %v1373
        %v2116 = vpack.c.bf16 %v1376, %v1375
        %v2117 = vpack.c.bf16 %v1378, %v1377
        %v2118 = vpack.c.bf16 %v1380, %v1379
        %v2119 = vpack.c.bf16 %v2082, %v2080
        %v2120 = vpack.c.bf16 %v2086, %v2084
        %v2121 = vpack.c.bf16 %v2090, %v2088
        %v2122 = vpack.c.bf16 %v2094, %v2092
        %v2123 = vpack.c.bf16 %v2098, %v2096
        %v2124 = vpack.c.bf16 %v2102, %v2100
        %v2125 = vpack.c.bf16 %v2106, %v2104
        %v2126 = vpack.c.bf16 %v2110, %v2108
        %v2127 = vld [vmem:[#allocation10] sm:$0xf]
        %v2128 = vld [vmem:[#allocation10 + $0x4] sm:$0xf]
        %v2129 = vld [vmem:[#allocation10 + $0x8] sm:$0xf]
        %v2130 = vld [vmem:[#allocation10 + $0xc] sm:$0xf]
        %v2131 = vld [vmem:[#allocation10 + $0x10] sm:$0xf]
        %v2132 = vld [vmem:[#allocation10 + $0x14] sm:$0xf]
        %v2133 = vld [vmem:[#allocation10 + $0x18] sm:$0xf]
        %v2134 = vld [vmem:[#allocation10 + $0x1c] sm:$0xf]
        %v2135 = vld [vmem:[#allocation10 + $0x20] sm:$0xf]
        %v2136 = vld [vmem:[#allocation10 + $0x24] sm:$0xf]
        %v2137 = vld [vmem:[#allocation10 + $0x28] sm:$0xf]
        %v2138 = vld [vmem:[#allocation10 + $0x2c] sm:$0xf]
        %v2139 = vld [vmem:[#allocation10 + $0x30] sm:$0xf]
        %v2140 = vld [vmem:[#allocation10 + $0x34] sm:$0xf]
        %v2141 = vld [vmem:[#allocation10 + $0x38] sm:$0xf]
        %v2142 = vld [vmem:[#allocation10 + $0x3c] sm:$0xf]
        %v2159 = vunpack.c.l.b16 %v2127
        %v2160 = vunpack.c.l.b16 %v2128
        %v2161 = vunpack.c.l.b16 %v2129
        %v2162 = vunpack.c.l.b16 %v2130
        %v2163 = vunpack.c.l.b16 %v2131
        %v2164 = vunpack.c.l.b16 %v2132
        %v2165 = vunpack.c.l.b16 %v2133
        %v2166 = vunpack.c.l.b16 %v2134
        %v2167 = vunpack.c.l.b16 %v2135
        %v2168 = vunpack.c.l.b16 %v2136
        %v2169 = vunpack.c.l.b16 %v2137
        %v2170 = vunpack.c.l.b16 %v2138
        %v2171 = vunpack.c.l.b16 %v2139
        %v2172 = vunpack.c.l.b16 %v2140
        %v2173 = vunpack.c.l.b16 %v2141
        %v2174 = vunpack.c.l.b16 %v2142
        %v2175 = vpack.c.b16 %v2160, %v2159
        %v2176 = vpack.c.b16 %v2162, %v2161
        %v2177 = vpack.c.b16 %v2164, %v2163
        %v2178 = vpack.c.b16 %v2166, %v2165
        %v2179 = vpack.c.b16 %v2168, %v2167
        %v2180 = vpack.c.b16 %v2170, %v2169
        %v2181 = vpack.c.b16 %v2172, %v2171
        %v2182 = vpack.c.b16 %v2174, %v2173
        %2191 = vmatprep.subr.bf16.mxu0 0
        %2192 = vmatpush1.bf16.msra.mxu0 %v2175
        %2193 = vmatprep.subr.bf16.mxu0 0
        %2194 = vmatpush1.bf16.msra.mxu0 %v2176
        %2195 = vmatprep.subr.bf16.mxu0 0
        %2196 = vmatpush1.bf16.msra.mxu0 %v2177
        %2197 = vmatprep.subr.bf16.mxu0 0
        %2198 = vmatpush1.bf16.msra.mxu0 %v2178
        %2199 = vmatprep.subr.bf16.mxu0 0
        %2200 = vmatpush1.bf16.msra.mxu0 %v2179
        %2201 = vmatprep.subr.bf16.mxu0 0
        %2202 = vmatpush1.bf16.msra.mxu0 %v2180
        %2203 = vmatprep.subr.bf16.mxu0 0
        %2204 = vmatpush1.bf16.msra.mxu0 %v2181
        %2205 = vmatprep.subr.bf16.mxu0 0
        %2206 = vmatpush1.bf16.msra.mxu0 %v2182
        %2207 = vmatprep.subr.bf16.mxu0 0
        %2208 = vmatpush1.bf16.msra.mxu0 0
        %2209 = vmatprep.subr.bf16.mxu0 0
        %2210 = vmatpush1.bf16.msra.mxu0 0
        %2211 = vmatprep.subr.bf16.mxu0 0
        %2212 = vmatpush1.bf16.msra.mxu0 0
        %2213 = vmatprep.subr.bf16.mxu0 0
        %2214 = vmatpush1.bf16.msra.mxu0 0
        %2215 = vmatprep.subr.bf16.mxu0 0
        %2216 = vmatpush1.bf16.msra.mxu0 0
        %2217 = vmatprep.subr.bf16.mxu0 0
        %2218 = vmatpush1.bf16.msra.mxu0 0
        %2219 = vmatprep.subr.bf16.mxu0 0
        %2220 = vmatpush1.bf16.msra.mxu0 0
        %2221 = vmatprep.subr.bf16.mxu0 0
        %2222 = vmatpush1.bf16.msra.mxu0 0
        %2223 = vmatprep.mubr.bf16.mxu0 0
        %2224 = vmatmul.mubr.bf16.gmra.mrb[0].mxu0 %v2111
        %v2225 = vpop.f32.mrb[0].mxu0
        %v2226 = vadd.f32 0.0, %v2225
        %v2227 = vpop.f32.mrb[0].mxu0
        %v2228 = vpop.f32.mrb[0].mxu0
        %v2229 = vadd.f32 0.0, %v2228
        %v2230 = vpop.f32.mrb[0].mxu0
        %2231 = vmatprep.mubr.bf16.mxu0 0
        %2232 = vmatmul.mubr.bf16.gmra.mrb[0].mxu0 %v2112
        %v2233 = vpop.f32.mrb[0].mxu0
        %v2234 = vadd.f32 0.0, %v2233
        %v2235 = vpop.f32.mrb[0].mxu0
        %v2236 = vpop.f32.mrb[0].mxu0
        %v2237 = vadd.f32 0.0, %v2236
        %v2238 = vpop.f32.mrb[0].mxu0
        %2239 = vmatprep.mubr.bf16.mxu0 0
        %2240 = vmatmul.mubr.bf16.gmra.mrb[0].mxu0 %v2113
        %v2241 = vpop.f32.mrb[0].mxu0
        %v2242 = vadd.f32 0.0, %v2241
        %v2243 = vpop.f32.mrb[0].mxu0
        %v2244 = vpop.f32.mrb[0].mxu0
        %v2245 = vadd.f32 0.0, %v2244
        %v2246 = vpop.f32.mrb[0].mxu0
        %2247 = vmatprep.mubr.bf16.mxu0 0
        %2248 = vmatmul.mubr.bf16.gmra.mrb[0].mxu0 %v2114
        %v2249 = vpop.f32.mrb[0].mxu0
        %v2250 = vadd.f32 0.0, %v2249
        %v2251 = vpop.f32.mrb[0].mxu0
        %v2252 = vpop.f32.mrb[0].mxu0
        %v2253 = vadd.f32 0.0, %v2252
        %v2254 = vpop.f32.mrb[0].mxu0
        %2255 = vmatprep.mubr.bf16.mxu0 0
        %2256 = vmatmul.mubr.bf16.gmra.mrb[0].mxu0 %v2115
        %v2257 = vpop.f32.mrb[0].mxu0
        %v2258 = vadd.f32 0.0, %v2257
        %v2259 = vpop.f32.mrb[0].mxu0
        %v2260 = vpop.f32.mrb[0].mxu0
        %v2261 = vadd.f32 0.0, %v2260
        %v2262 = vpop.f32.mrb[0].mxu0
        %2263 = vmatprep.mubr.bf16.mxu0 0
        %2264 = vmatmul.mubr.bf16.gmra.mrb[0].mxu0 %v2116
        %v2265 = vpop.f32.mrb[0].mxu0
        %v2266 = vadd.f32 0.0, %v2265
        %v2267 = vpop.f32.mrb[0].mxu0
        %v2268 = vpop.f32.mrb[0].mxu0
        %v2269 = vadd.f32 0.0, %v2268
        %v2270 = vpop.f32.mrb[0].mxu0
        %2271 = vmatprep.mubr.bf16.mxu0 0
        %2272 = vmatmul.mubr.bf16.gmra.mrb[0].mxu0 %v2117
        %v2273 = vpop.f32.mrb[0].mxu0
        %v2274 = vadd.f32 0.0, %v2273
        %v2275 = vpop.f32.mrb[0].mxu0
        %v2276 = vpop.f32.mrb[0].mxu0
        %v2277 = vadd.f32 0.0, %v2276
        %v2278 = vpop.f32.mrb[0].mxu0
        %2279 = vmatprep.mubr.bf16.mxu0 0
        %2280 = vmatmul.mubr.bf16.gmra.mrb[0].mxu0 %v2118
        %v2281 = vpop.f32.mrb[0].mxu0
        %v2282 = vadd.f32 0.0, %v2281
        %v2283 = vpop.f32.mrb[0].mxu0
        %v2284 = vpop.f32.mrb[0].mxu0
        %v2285 = vadd.f32 0.0, %v2284
        %v2286 = vpop.f32.mrb[0].mxu0
        %2287 = vmatprep.mubr.bf16.mxu0 0
        %2288 = vmatmul.mubr.bf16.gmra.mrb[0].mxu0 %v2119
        %v2289 = vpop.f32.mrb[0].mxu0
        %v2290 = vadd.f32 0.0, %v2289
        %v2291 = vpop.f32.mrb[0].mxu0
        %v2292 = vpop.f32.mrb[0].mxu0
        %v2293 = vadd.f32 0.0, %v2292
        %v2294 = vpop.f32.mrb[0].mxu0
        %2295 = vmatprep.mubr.bf16.mxu0 0
        %2296 = vmatmul.mubr.bf16.gmra.mrb[0].mxu0 %v2120
        %v2297 = vpop.f32.mrb[0].mxu0
        %v2298 = vadd.f32 0.0, %v2297
        %v2299 = vpop.f32.mrb[0].mxu0
        %v2300 = vpop.f32.mrb[0].mxu0
        %v2301 = vadd.f32 0.0, %v2300
        %v2302 = vpop.f32.mrb[0].mxu0
        %2303 = vmatprep.mubr.bf16.mxu0 0
        %2304 = vmatmul.mubr.bf16.gmra.mrb[0].mxu0 %v2121
        %v2305 = vpop.f32.mrb[0].mxu0
        %v2306 = vadd.f32 0.0, %v2305
        %v2307 = vpop.f32.mrb[0].mxu0
        %v2308 = vpop.f32.mrb[0].mxu0
        %v2309 = vadd.f32 0.0, %v2308
        %v2310 = vpop.f32.mrb[0].mxu0
        %2311 = vmatprep.mubr.bf16.mxu0 0
        %2312 = vmatmul.mubr.bf16.gmra.mrb[0].mxu0 %v2122
        %v2313 = vpop.f32.mrb[0].mxu0
        %v2314 = vadd.f32 0.0, %v2313
        %v2315 = vpop.f32.mrb[0].mxu0
        %v2316 = vpop.f32.mrb[0].mxu0
        %v2317 = vadd.f32 0.0, %v2316
        %v2318 = vpop.f32.mrb[0].mxu0
        %2319 = vmatprep.mubr.bf16.mxu0 0
        %2320 = vmatmul.mubr.bf16.gmra.mrb[0].mxu0 %v2123
        %v2321 = vpop.f32.mrb[0].mxu0
        %v2322 = vadd.f32 0.0, %v2321
        %v2323 = vpop.f32.mrb[0].mxu0
        %v2324 = vpop.f32.mrb[0].mxu0
        %v2325 = vadd.f32 0.0, %v2324
        %v2326 = vpop.f32.mrb[0].mxu0
        %2327 = vmatprep.mubr.bf16.mxu0 0
        %2328 = vmatmul.mubr.bf16.gmra.mrb[0].mxu0 %v2124
        %v2329 = vpop.f32.mrb[0].mxu0
        %v2330 = vadd.f32 0.0, %v2329
        %v2331 = vpop.f32.mrb[0].mxu0
        %v2332 = vpop.f32.mrb[0].mxu0
        %v2333 = vadd.f32 0.0, %v2332
        %v2334 = vpop.f32.mrb[0].mxu0
        %2335 = vmatprep.mubr.bf16.mxu0 0
        %2336 = vmatmul.mubr.bf16.gmra.mrb[0].mxu0 %v2125
        %v2337 = vpop.f32.mrb[0].mxu0
        %v2338 = vadd.f32 0.0, %v2337
        %v2339 = vpop.f32.mrb[0].mxu0
        %v2340 = vpop.f32.mrb[0].mxu0
        %v2341 = vadd.f32 0.0, %v2340
        %v2342 = vpop.f32.mrb[0].mxu0
        %2343 = vmatprep.mubr.bf16.mxu0 0
        %2344 = vmatmul.mubr.bf16.gmra.mrb[0].mxu0 %v2126
        %v2345 = vpop.f32.mrb[0].mxu0
        %v2346 = vadd.f32 0.0, %v2345
        %v2347 = vpop.f32.mrb[0].mxu0
        %v2348 = vpop.f32.mrb[0].mxu0
        %v2349 = vadd.f32 0.0, %v2348
        %v2350 = vpop.f32.mrb[0].mxu0
        %2351 = vdwg.mxu0
        %v2352 = vmul.f32 %v2226, 1.442695
        %v2353 = vpow.pop %v2352
        %v2354 = vmul.f32 %v2229, 1.442695
        %v2355 = vpow.pop %v2354
        %v2356 = vmul.f32 %v2234, 1.442695
        %v2357 = vpow.pop %v2356
        %v2358 = vmul.f32 %v2237, 1.442695
        %v2359 = vpow.pop %v2358
        %v2360 = vmul.f32 %v2242, 1.442695
        %v2361 = vpow.pop %v2360
        %v2362 = vmul.f32 %v2245, 1.442695
        %v2363 = vpow.pop %v2362
        %v2364 = vmul.f32 %v2250, 1.442695
        %v2365 = vpow.pop %v2364
        %v2366 = vmul.f32 %v2253, 1.442695
        %v2367 = vpow.pop %v2366
        %v2368 = vmul.f32 %v2258, 1.442695
        %v2369 = vpow.pop %v2368
        %v2370 = vmul.f32 %v2261, 1.442695
        %v2371 = vpow.pop %v2370
        %v2372 = vmul.f32 %v2266, 1.442695
        %v2373 = vpow.pop %v2372
        %v2374 = vmul.f32 %v2269, 1.442695
        %v2375 = vpow.pop %v2374
        %v2376 = vmul.f32 %v2274, 1.442695
        %v2377 = vpow.pop %v2376
        %v2378 = vmul.f32 %v2277, 1.442695
        %v2379 = vpow.pop %v2378
        %v2380 = vmul.f32 %v2282, 1.442695
        %v2381 = vpow.pop %v2380
        %v2382 = vmul.f32 %v2285, 1.442695
        %v2383 = vpow.pop %v2382
        %v2384 = vmul.f32 %v2290, 1.442695
        %v2385 = vpow.pop %v2384
        %v2386 = vmul.f32 %v2293, 1.442695
        %v2387 = vpow.pop %v2386
        %v2388 = vmul.f32 %v2298, 1.442695
        %v2389 = vpow.pop %v2388
        %v2390 = vmul.f32 %v2301, 1.442695
        %v2391 = vpow.pop %v2390
        %v2392 = vmul.f32 %v2306, 1.442695
        %v2393 = vpow.pop %v2392
        %v2394 = vmul.f32 %v2309, 1.442695
        %v2395 = vpow.pop %v2394
        %v2396 = vmul.f32 %v2314, 1.442695
        %v2397 = vpow.pop %v2396
        %v2398 = vmul.f32 %v2317, 1.442695
        %v2399 = vpow.pop %v2398
        %v2400 = vmul.f32 %v2322, 1.442695
        %v2401 = vpow.pop %v2400
        %v2402 = vmul.f32 %v2325, 1.442695
        %v2403 = vpow.pop %v2402
        %v2404 = vmul.f32 %v2330, 1.442695
        %v2405 = vpow.pop %v2404
        %v2406 = vmul.f32 %v2333, 1.442695
        %v2407 = vpow.pop %v2406
        %v2408 = vmul.f32 %v2338, 1.442695
        %v2409 = vpow.pop %v2408
        %v2410 = vmul.f32 %v2341, 1.442695
        %v2411 = vpow.pop %v2410
        %v2412 = vmul.f32 %v2346, 1.442695
        %v2413 = vpow.pop %v2412
        %v2414 = vmul.f32 %v2349, 1.442695
        %v2415 = vpow.pop %v2414
        %v2416 = vld [vmem:[%s4] sm:$0x1]
        %v2418 = vlaneseq
        %v2419 = vshrl.u32 %v2418, 7
        %v2420 = vsub.s32 0, %v2419
        %v2421 = vrot.slane %v2416, %v2420
        %v2423 = vmul.f32 %v2353, %v2421
        %v2424 = vmul.f32 %v2355, %v2421
        %v2425 = vmul.f32 %v2357, %v2421
        %v2426 = vmul.f32 %v2359, %v2421
        %v2427 = vmul.f32 %v2361, %v2421
        %v2428 = vmul.f32 %v2363, %v2421
        %v2429 = vmul.f32 %v2365, %v2421
        %v2430 = vmul.f32 %v2367, %v2421
        %v2431 = vmul.f32 %v2369, %v2421
        %v2432 = vmul.f32 %v2371, %v2421
        %v2433 = vmul.f32 %v2373, %v2421
        %v2434 = vmul.f32 %v2375, %v2421
        %v2435 = vmul.f32 %v2377, %v2421
        %v2436 = vmul.f32 %v2379, %v2421
        %v2437 = vmul.f32 %v2381, %v2421
        %v2438 = vmul.f32 %v2383, %v2421
        %v2439 = vld [vmem:[#allocation12] sm:$0xf]
        %v2440 = vld [vmem:[#allocation12 + $0x4] sm:$0xf]
        %v2441 = vld [vmem:[#allocation12 + $0x8] sm:$0xf]
        %v2442 = vld [vmem:[#allocation12 + $0xc] sm:$0xf]
        %v2443 = vld [vmem:[#allocation12 + $0x10] sm:$0xf]
        %v2444 = vld [vmem:[#allocation12 + $0x14] sm:$0xf]
        %v2445 = vld [vmem:[#allocation12 + $0x18] sm:$0xf]
        %v2446 = vld [vmem:[#allocation12 + $0x1c] sm:$0xf]
        %v2447 = vld [vmem:[#allocation12 + $0x20] sm:$0xf]
        %v2448 = vld [vmem:[#allocation12 + $0x24] sm:$0xf]
        %v2449 = vld [vmem:[#allocation12 + $0x28] sm:$0xf]
        %v2450 = vld [vmem:[#allocation12 + $0x2c] sm:$0xf]
        %v2451 = vld [vmem:[#allocation12 + $0x30] sm:$0xf]
        %v2452 = vld [vmem:[#allocation12 + $0x34] sm:$0xf]
        %v2453 = vld [vmem:[#allocation12 + $0x38] sm:$0xf]
        %v2454 = vld [vmem:[#allocation12 + $0x3c] sm:$0xf]
        %v2455 = vpack.c.bf16 %v2016, %v2015
        %v2456 = vpack.c.bf16 %v2018, %v2017
        %v2457 = vpack.c.bf16 %v2020, %v2019
        %v2458 = vpack.c.bf16 %v2022, %v2021
        %v2459 = vpack.c.bf16 %v2024, %v2023
        %v2460 = vpack.c.bf16 %v2026, %v2025
        %v2461 = vpack.c.bf16 %v2028, %v2027
        %v2462 = vpack.c.bf16 %v2030, %v2029
        %v2463 = vpack.c.bf16 %v1696, %v1695
        %v2464 = vpack.c.bf16 %v1698, %v1697
        %v2465 = vpack.c.bf16 %v1700, %v1699
        %v2466 = vpack.c.bf16 %v1702, %v1701
        %v2467 = vpack.c.bf16 %v1704, %v1703
        %v2468 = vpack.c.bf16 %v1706, %v1705
        %v2469 = vpack.c.bf16 %v1708, %v1707
        %v2470 = vpack.c.bf16 %v1710, %v1709
        %v2487 = vunpack.c.l.b16 %v2439
        %v2488 = vunpack.c.l.b16 %v2440
        %v2489 = vunpack.c.l.b16 %v2441
        %v2490 = vunpack.c.l.b16 %v2442
        %v2491 = vunpack.c.l.b16 %v2443
        %v2492 = vunpack.c.l.b16 %v2444
        %v2493 = vunpack.c.l.b16 %v2445
        %v2494 = vunpack.c.l.b16 %v2446
        %v2495 = vunpack.c.l.b16 %v2447
        %v2496 = vunpack.c.l.b16 %v2448
        %v2497 = vunpack.c.l.b16 %v2449
        %v2498 = vunpack.c.l.b16 %v2450
        %v2499 = vunpack.c.l.b16 %v2451
        %v2500 = vunpack.c.l.b16 %v2452
        %v2501 = vunpack.c.l.b16 %v2453
        %v2502 = vunpack.c.l.b16 %v2454
        %v2503 = vpack.c.b16 %v2488, %v2487
        %v2504 = vpack.c.b16 %v2490, %v2489
        %v2505 = vpack.c.b16 %v2492, %v2491
        %v2506 = vpack.c.b16 %v2494, %v2493
        %v2507 = vpack.c.b16 %v2496, %v2495
        %v2508 = vpack.c.b16 %v2498, %v2497
        %v2509 = vpack.c.b16 %v2500, %v2499
        %v2510 = vpack.c.b16 %v2502, %v2501
        %2519 = vmatprep.subr.bf16.mxu0 0
        %2520 = vmatpush1.bf16.msra.mxu0 %v2503
        %2521 = vmatprep.subr.bf16.mxu0 0
        %2522 = vmatpush1.bf16.msra.mxu0 %v2504
        %2523 = vmatprep.subr.bf16.mxu0 0
        %2524 = vmatpush1.bf16.msra.mxu0 %v2505
        %2525 = vmatprep.subr.bf16.mxu0 0
        %2526 = vmatpush1.bf16.msra.mxu0 %v2506
        %2527 = vmatprep.subr.bf16.mxu0 0
        %2528 = vmatpush1.bf16.msra.mxu0 %v2507
        %2529 = vmatprep.subr.bf16.mxu0 0
        %2530 = vmatpush1.bf16.msra.mxu0 %v2508
        %2531 = vmatprep.subr.bf16.mxu0 0
        %2532 = vmatpush1.bf16.msra.mxu0 %v2509
        %2533 = vmatprep.subr.bf16.mxu0 0
        %2534 = vmatpush1.bf16.msra.mxu0 %v2510
        %2535 = vmatprep.subr.bf16.mxu0 0
        %2536 = vmatpush1.bf16.msra.mxu0 0
        %2537 = vmatprep.subr.bf16.mxu0 0
        %2538 = vmatpush1.bf16.msra.mxu0 0
        %2539 = vmatprep.subr.bf16.mxu0 0
        %2540 = vmatpush1.bf16.msra.mxu0 0
        %2541 = vmatprep.subr.bf16.mxu0 0
        %2542 = vmatpush1.bf16.msra.mxu0 0
        %2543 = vmatprep.subr.bf16.mxu0 0
        %2544 = vmatpush1.bf16.msra.mxu0 0
        %2545 = vmatprep.subr.bf16.mxu0 0
        %2546 = vmatpush1.bf16.msra.mxu0 0
        %2547 = vmatprep.subr.bf16.mxu0 0
        %2548 = vmatpush1.bf16.msra.mxu0 0
        %2549 = vmatprep.subr.bf16.mxu0 0
        %2550 = vmatpush1.bf16.msra.mxu0 0
        %2551 = vmatprep.mubr.bf16.mxu0 0
        %2552 = vmatmul.mubr.bf16.gmra.mrb[0].mxu0 %v2455
        %v2553 = vpop.f32.mrb[0].mxu0
        %v2554 = vadd.f32 0.0, %v2553
        %v2555 = vpop.f32.mrb[0].mxu0
        %v2556 = vpop.f32.mrb[0].mxu0
        %v2557 = vadd.f32 0.0, %v2556
        %v2558 = vpop.f32.mrb[0].mxu0
        %2559 = vmatprep.mubr.bf16.mxu0 0
        %2560 = vmatmul.mubr.bf16.gmra.mrb[0].mxu0 %v2456
        %v2561 = vpop.f32.mrb[0].mxu0
        %v2562 = vadd.f32 0.0, %v2561
        %v2563 = vpop.f32.mrb[0].mxu0
        %v2564 = vpop.f32.mrb[0].mxu0
        %v2565 = vadd.f32 0.0, %v2564
        %v2566 = vpop.f32.mrb[0].mxu0
        %2567 = vmatprep.mubr.bf16.mxu0 0
        %2568 = vmatmul.mubr.bf16.gmra.mrb[0].mxu0 %v2457
        %v2569 = vpop.f32.mrb[0].mxu0
        %v2570 = vadd.f32 0.0, %v2569
        %v2571 = vpop.f32.mrb[0].mxu0
        %v2572 = vpop.f32.mrb[0].mxu0
        %v2573 = vadd.f32 0.0, %v2572
        %v2574 = vpop.f32.mrb[0].mxu0
        %2575 = vmatprep.mubr.bf16.mxu0 0
        %2576 = vmatmul.mubr.bf16.gmra.mrb[0].mxu0 %v2458
        %v2577 = vpop.f32.mrb[0].mxu0
        %v2578 = vadd.f32 0.0, %v2577
        %v2579 = vpop.f32.mrb[0].mxu0
        %v2580 = vpop.f32.mrb[0].mxu0
        %v2581 = vadd.f32 0.0, %v2580
        %v2582 = vpop.f32.mrb[0].mxu0
        %2583 = vmatprep.mubr.bf16.mxu0 0
        %2584 = vmatmul.mubr.bf16.gmra.mrb[0].mxu0 %v2459
        %v2585 = vpop.f32.mrb[0].mxu0
        %v2586 = vadd.f32 0.0, %v2585
        %v2587 = vpop.f32.mrb[0].mxu0
        %v2588 = vpop.f32.mrb[0].mxu0
        %v2589 = vadd.f32 0.0, %v2588
        %v2590 = vpop.f32.mrb[0].mxu0
        %2591 = vmatprep.mubr.bf16.mxu0 0
        %2592 = vmatmul.mubr.bf16.gmra.mrb[0].mxu0 %v2460
        %v2593 = vpop.f32.mrb[0].mxu0
        %v2594 = vadd.f32 0.0, %v2593
        %v2595 = vpop.f32.mrb[0].mxu0
        %v2596 = vpop.f32.mrb[0].mxu0
        %v2597 = vadd.f32 0.0, %v2596
        %v2598 = vpop.f32.mrb[0].mxu0
        %2599 = vmatprep.mubr.bf16.mxu0 0
        %2600 = vmatmul.mubr.bf16.gmra.mrb[0].mxu0 %v2461
        %v2601 = vpop.f32.mrb[0].mxu0
        %v2602 = vadd.f32 0.0, %v2601
        %v2603 = vpop.f32.mrb[0].mxu0
        %v2604 = vpop.f32.mrb[0].mxu0
        %v2605 = vadd.f32 0.0, %v2604
        %v2606 = vpop.f32.mrb[0].mxu0
        %2607 = vmatprep.mubr.bf16.mxu0 0
        %2608 = vmatmul.mubr.bf16.gmra.mrb[0].mxu0 %v2462
        %v2609 = vpop.f32.mrb[0].mxu0
        %v2610 = vadd.f32 0.0, %v2609
        %v2611 = vpop.f32.mrb[0].mxu0
        %v2612 = vpop.f32.mrb[0].mxu0
        %v2613 = vadd.f32 0.0, %v2612
        %v2614 = vpop.f32.mrb[0].mxu0
        %2615 = vmatprep.mubr.bf16.mxu0 0
        %2616 = vmatmul.mubr.bf16.gmra.mrb[0].mxu0 %v2463
        %v2617 = vpop.f32.mrb[0].mxu0
        %v2618 = vadd.f32 0.0, %v2617
        %v2619 = vpop.f32.mrb[0].mxu0
        %v2620 = vpop.f32.mrb[0].mxu0
        %v2621 = vadd.f32 0.0, %v2620
        %v2622 = vpop.f32.mrb[0].mxu0
        %2623 = vmatprep.mubr.bf16.mxu0 0
        %2624 = vmatmul.mubr.bf16.gmra.mrb[0].mxu0 %v2464
        %v2625 = vpop.f32.mrb[0].mxu0
        %v2626 = vadd.f32 0.0, %v2625
        %v2627 = vpop.f32.mrb[0].mxu0
        %v2628 = vpop.f32.mrb[0].mxu0
        %v2629 = vadd.f32 0.0, %v2628
        %v2630 = vpop.f32.mrb[0].mxu0
        %2631 = vmatprep.mubr.bf16.mxu0 0
        %2632 = vmatmul.mubr.bf16.gmra.mrb[0].mxu0 %v2465
        %v2633 = vpop.f32.mrb[0].mxu0
        %v2634 = vadd.f32 0.0, %v2633
        %v2635 = vpop.f32.mrb[0].mxu0
        %v2636 = vpop.f32.mrb[0].mxu0
        %v2637 = vadd.f32 0.0, %v2636
        %v2638 = vpop.f32.mrb[0].mxu0
        %2639 = vmatprep.mubr.bf16.mxu0 0
        %2640 = vmatmul.mubr.bf16.gmra.mrb[0].mxu0 %v2466
        %v2641 = vpop.f32.mrb[0].mxu0
        %v2642 = vadd.f32 0.0, %v2641
        %v2643 = vpop.f32.mrb[0].mxu0
        %v2644 = vpop.f32.mrb[0].mxu0
        %v2645 = vadd.f32 0.0, %v2644
        %v2646 = vpop.f32.mrb[0].mxu0
        %2647 = vmatprep.mubr.bf16.mxu0 0
        %2648 = vmatmul.mubr.bf16.gmra.mrb[0].mxu0 %v2467
        %v2649 = vpop.f32.mrb[0].mxu0
        %v2650 = vadd.f32 0.0, %v2649
        %v2651 = vpop.f32.mrb[0].mxu0
        %v2652 = vpop.f32.mrb[0].mxu0
        %v2653 = vadd.f32 0.0, %v2652
        %v2654 = vpop.f32.mrb[0].mxu0
        %2655 = vmatprep.mubr.bf16.mxu0 0
        %2656 = vmatmul.mubr.bf16.gmra.mrb[0].mxu0 %v2468
        %v2657 = vpop.f32.mrb[0].mxu0
        %v2658 = vadd.f32 0.0, %v2657
        %v2659 = vpop.f32.mrb[0].mxu0
        %v2660 = vpop.f32.mrb[0].mxu0
        %v2661 = vadd.f32 0.0, %v2660
        %v2662 = vpop.f32.mrb[0].mxu0
        %2663 = vmatprep.mubr.bf16.mxu0 0
        %2664 = vmatmul.mubr.bf16.gmra.mrb[0].mxu0 %v2469
        %v2665 = vpop.f32.mrb[0].mxu0
        %v2666 = vadd.f32 0.0, %v2665
        %v2667 = vpop.f32.mrb[0].mxu0
        %v2668 = vpop.f32.mrb[0].mxu0
        %v2669 = vadd.f32 0.0, %v2668
        %v2670 = vpop.f32.mrb[0].mxu0
        %2671 = vmatprep.mubr.bf16.mxu0 0
        %2672 = vmatmul.mubr.bf16.gmra.mrb[0].mxu0 %v2470
        %v2673 = vpop.f32.mrb[0].mxu0
        %v2674 = vadd.f32 0.0, %v2673
        %v2675 = vpop.f32.mrb[0].mxu0
        %v2676 = vpop.f32.mrb[0].mxu0
        %v2677 = vadd.f32 0.0, %v2676
        %v2678 = vpop.f32.mrb[0].mxu0
        %2679 = vdwg.mxu0
        %v2680 = vpack.c.bf16 %v2557, %v2554
        %v2681 = vpack.c.bf16 %v2565, %v2562
        %v2682 = vpack.c.bf16 %v2573, %v2570
        %v2683 = vpack.c.bf16 %v2581, %v2578
        %v2684 = vpack.c.bf16 %v2589, %v2586
        %v2685 = vpack.c.bf16 %v2597, %v2594
        %v2686 = vpack.c.bf16 %v2605, %v2602
        %v2687 = vpack.c.bf16 %v2613, %v2610
        %2688 = vmatprep.subr.bf16.mxu0 0
        %2689 = vmatpush1.bf16.msra.mxu0 %v2680
        %2690 = vmatprep.subr.bf16.mxu0 0
        %2691 = vmatpush1.bf16.msra.mxu0 %v2681
        %2692 = vmatprep.subr.bf16.mxu0 0
        %2693 = vmatpush1.bf16.msra.mxu0 %v2682
        %2694 = vmatprep.subr.bf16.mxu0 0
        %2695 = vmatpush1.bf16.msra.mxu0 %v2683
        %2696 = vmatprep.subr.bf16.mxu0 0
        %2697 = vmatpush1.bf16.msra.mxu0 %v2684
        %2698 = vmatprep.subr.bf16.mxu0 0
        %2699 = vmatpush1.bf16.msra.mxu0 %v2685
        %2700 = vmatprep.subr.bf16.mxu0 0
        %2701 = vmatpush1.bf16.msra.mxu0 %v2686
        %2702 = vmatprep.subr.bf16.mxu0 0
        %2703 = vmatpush1.bf16.msra.mxu0 %v2687
        %2704 = vmatprep.subr.bf16.mxu0 0
        %2705 = vmatpush1.bf16.msra.mxu0 0
        %2706 = vmatprep.subr.bf16.mxu0 0
        %2707 = vmatpush1.bf16.msra.mxu0 0
        %2708 = vmatprep.subr.bf16.mxu0 0
        %2709 = vmatpush1.bf16.msra.mxu0 0
        %2710 = vmatprep.subr.bf16.mxu0 0
        %2711 = vmatpush1.bf16.msra.mxu0 0
        %2712 = vmatprep.subr.bf16.mxu0 0
        %2713 = vmatpush1.bf16.msra.mxu0 0
        %2714 = vmatprep.subr.bf16.mxu0 0
        %2715 = vmatpush1.bf16.msra.mxu0 0
        %2716 = vmatprep.subr.bf16.mxu0 0
        %2717 = vmatpush1.bf16.msra.mxu0 0
        %2718 = vmatprep.subr.bf16.mxu0 0
        %2719 = vmatpush1.bf16.msra.mxu0 0
        %2720 = vmatprep.mubr.bf16.mxu0 0
        %2721 = vmatmul.mubr.bf16.gmra.mrb[0].mxu0 %v2503
        %v2722 = vpop.f32.mrb[0].mxu0
        %v2723 = vadd.f32 0.0, %v2722
        %v2724 = vpop.f32.mrb[0].mxu0
        %v2725 = vpop.f32.mrb[0].mxu0
        %v2726 = vadd.f32 0.0, %v2725
        %v2727 = vpop.f32.mrb[0].mxu0
        %2728 = vmatprep.mubr.bf16.mxu0 0
        %2729 = vmatmul.mubr.bf16.gmra.mrb[0].mxu0 %v2504
        %v2730 = vpop.f32.mrb[0].mxu0
        %v2731 = vadd.f32 0.0, %v2730
        %v2732 = vpop.f32.mrb[0].mxu0
        %v2733 = vpop.f32.mrb[0].mxu0
        %v2734 = vadd.f32 0.0, %v2733
        %v2735 = vpop.f32.mrb[0].mxu0
        %2736 = vmatprep.mubr.bf16.mxu0 0
        %2737 = vmatmul.mubr.bf16.gmra.mrb[0].mxu0 %v2505
        %v2738 = vpop.f32.mrb[0].mxu0
        %v2739 = vadd.f32 0.0, %v2738
        %v2740 = vpop.f32.mrb[0].mxu0
        %v2741 = vpop.f32.mrb[0].mxu0
        %v2742 = vadd.f32 0.0, %v2741
        %v2743 = vpop.f32.mrb[0].mxu0
        %2744 = vmatprep.mubr.bf16.mxu0 0
        %2745 = vmatmul.mubr.bf16.gmra.mrb[0].mxu0 %v2506
        %v2746 = vpop.f32.mrb[0].mxu0
        %v2747 = vadd.f32 0.0, %v2746
        %v2748 = vpop.f32.mrb[0].mxu0
        %v2749 = vpop.f32.mrb[0].mxu0
        %v2750 = vadd.f32 0.0, %v2749
        %v2751 = vpop.f32.mrb[0].mxu0
        %2752 = vmatprep.mubr.bf16.mxu0 0
        %2753 = vmatmul.mubr.bf16.gmra.mrb[0].mxu0 %v2507
        %v2754 = vpop.f32.mrb[0].mxu0
        %v2755 = vadd.f32 0.0, %v2754
        %v2756 = vpop.f32.mrb[0].mxu0
        %v2757 = vpop.f32.mrb[0].mxu0
        %v2758 = vadd.f32 0.0, %v2757
        %v2759 = vpop.f32.mrb[0].mxu0
        %2760 = vmatprep.mubr.bf16.mxu0 0
        %2761 = vmatmul.mubr.bf16.gmra.mrb[0].mxu0 %v2508
        %v2762 = vpop.f32.mrb[0].mxu0
        %v2763 = vadd.f32 0.0, %v2762
        %v2764 = vpop.f32.mrb[0].mxu0
        %v2765 = vpop.f32.mrb[0].mxu0
        %v2766 = vadd.f32 0.0, %v2765
        %v2767 = vpop.f32.mrb[0].mxu0
        %2768 = vmatprep.mubr.bf16.mxu0 0
        %2769 = vmatmul.mubr.bf16.gmra.mrb[0].mxu0 %v2509
        %v2770 = vpop.f32.mrb[0].mxu0
        %v2771 = vadd.f32 0.0, %v2770
        %v2772 = vpop.f32.mrb[0].mxu0
        %v2773 = vpop.f32.mrb[0].mxu0
        %v2774 = vadd.f32 0.0, %v2773
        %v2775 = vpop.f32.mrb[0].mxu0
        %2776 = vmatprep.mubr.bf16.mxu0 0
        %2777 = vmatmul.mubr.bf16.gmra.mrb[0].mxu0 %v2510
        %v2778 = vpop.f32.mrb[0].mxu0
        %v2779 = vadd.f32 0.0, %v2778
        %v2780 = vpop.f32.mrb[0].mxu0
        %v2781 = vpop.f32.mrb[0].mxu0
        %v2782 = vadd.f32 0.0, %v2781
        %v2783 = vpop.f32.mrb[0].mxu0
        %2784 = vdwg.mxu0
        %v2785 = vpack.c.bf16 %v2621, %v2618
        %v2786 = vpack.c.bf16 %v2629, %v2626
        %v2787 = vpack.c.bf16 %v2637, %v2634
        %v2788 = vpack.c.bf16 %v2645, %v2642
        %v2789 = vpack.c.bf16 %v2653, %v2650
        %v2790 = vpack.c.bf16 %v2661, %v2658
        %v2791 = vpack.c.bf16 %v2669, %v2666
        %v2792 = vpack.c.bf16 %v2677, %v2674
        %2793 = vmatprep.subr.bf16.mxu0 0
        %2794 = vmatpush1.bf16.msra.mxu0 %v2785
        %2795 = vmatprep.subr.bf16.mxu0 0
        %2796 = vmatpush1.bf16.msra.mxu0 %v2786
        %2797 = vmatprep.subr.bf16.mxu0 0
        %2798 = vmatpush1.bf16.msra.mxu0 %v2787
        %2799 = vmatprep.subr.bf16.mxu0 0
        %2800 = vmatpush1.bf16.msra.mxu0 %v2788
        %2801 = vmatprep.subr.bf16.mxu0 0
        %2802 = vmatpush1.bf16.msra.mxu0 %v2789
        %2803 = vmatprep.subr.bf16.mxu0 0
        %2804 = vmatpush1.bf16.msra.mxu0 %v2790
        %2805 = vmatprep.subr.bf16.mxu0 0
        %2806 = vmatpush1.bf16.msra.mxu0 %v2791
        %2807 = vmatprep.subr.bf16.mxu0 0
        %2808 = vmatpush1.bf16.msra.mxu0 %v2792
        %2809 = vmatprep.subr.bf16.mxu0 0
        %2810 = vmatpush1.bf16.msra.mxu0 0
        %2811 = vmatprep.subr.bf16.mxu0 0
        %2812 = vmatpush1.bf16.msra.mxu0 0
        %2813 = vmatprep.subr.bf16.mxu0 0
        %2814 = vmatpush1.bf16.msra.mxu0 0
        %2815 = vmatprep.subr.bf16.mxu0 0
        %2816 = vmatpush1.bf16.msra.mxu0 0
        %2817 = vmatprep.subr.bf16.mxu0 0
        %2818 = vmatpush1.bf16.msra.mxu0 0
        %2819 = vmatprep.subr.bf16.mxu0 0
        %2820 = vmatpush1.bf16.msra.mxu0 0
        %2821 = vmatprep.subr.bf16.mxu0 0
        %2822 = vmatpush1.bf16.msra.mxu0 0
        %2823 = vmatprep.subr.bf16.mxu0 0
        %2824 = vmatpush1.bf16.msra.mxu0 0
        %2825 = vmatprep.mubr.bf16.mxu0 0
        %2826 = vmatmul.mubr.bf16.gmra.mrb[0].mxu0 %v2503
        %v2827 = vpop.f32.mrb[0].mxu0
        %v2828 = vadd.f32 0.0, %v2827
        %v2829 = vpop.f32.mrb[0].mxu0
        %v2830 = vpop.f32.mrb[0].mxu0
        %v2831 = vadd.f32 0.0, %v2830
        %v2832 = vpop.f32.mrb[0].mxu0
        %2833 = vmatprep.mubr.bf16.mxu0 0
        %2834 = vmatmul.mubr.bf16.gmra.mrb[0].mxu0 %v2504
        %v2835 = vpop.f32.mrb[0].mxu0
        %v2836 = vadd.f32 0.0, %v2835
        %v2837 = vpop.f32.mrb[0].mxu0
        %v2838 = vpop.f32.mrb[0].mxu0
        %v2839 = vadd.f32 0.0, %v2838
        %v2840 = vpop.f32.mrb[0].mxu0
        %2841 = vmatprep.mubr.bf16.mxu0 0
        %2842 = vmatmul.mubr.bf16.gmra.mrb[0].mxu0 %v2505
        %v2843 = vpop.f32.mrb[0].mxu0
        %v2844 = vadd.f32 0.0, %v2843
        %v2845 = vpop.f32.mrb[0].mxu0
        %v2846 = vpop.f32.mrb[0].mxu0
        %v2847 = vadd.f32 0.0, %v2846
        %v2848 = vpop.f32.mrb[0].mxu0
        %2849 = vmatprep.mubr.bf16.mxu0 0
        %2850 = vmatmul.mubr.bf16.gmra.mrb[0].mxu0 %v2506
        %v2851 = vpop.f32.mrb[0].mxu0
        %v2852 = vadd.f32 0.0, %v2851
        %v2853 = vpop.f32.mrb[0].mxu0
        %v2854 = vpop.f32.mrb[0].mxu0
        %v2855 = vadd.f32 0.0, %v2854
        %v2856 = vpop.f32.mrb[0].mxu0
        %2857 = vmatprep.mubr.bf16.mxu0 0
        %2858 = vmatmul.mubr.bf16.gmra.mrb[0].mxu0 %v2507
        %v2859 = vpop.f32.mrb[0].mxu0
        %v2860 = vadd.f32 0.0, %v2859
        %v2861 = vpop.f32.mrb[0].mxu0
        %v2862 = vpop.f32.mrb[0].mxu0
        %v2863 = vadd.f32 0.0, %v2862
        %v2864 = vpop.f32.mrb[0].mxu0
        %2865 = vmatprep.mubr.bf16.mxu0 0
        %2866 = vmatmul.mubr.bf16.gmra.mrb[0].mxu0 %v2508
        %v2867 = vpop.f32.mrb[0].mxu0
        %v2868 = vadd.f32 0.0, %v2867
        %v2869 = vpop.f32.mrb[0].mxu0
        %v2870 = vpop.f32.mrb[0].mxu0
        %v2871 = vadd.f32 0.0, %v2870
        %v2872 = vpop.f32.mrb[0].mxu0
        %2873 = vmatprep.mubr.bf16.mxu0 0
        %2874 = vmatmul.mubr.bf16.gmra.mrb[0].mxu0 %v2509
        %v2875 = vpop.f32.mrb[0].mxu0
        %v2876 = vadd.f32 0.0, %v2875
        %v2877 = vpop.f32.mrb[0].mxu0
        %v2878 = vpop.f32.mrb[0].mxu0
        %v2879 = vadd.f32 0.0, %v2878
        %v2880 = vpop.f32.mrb[0].mxu0
        %2881 = vmatprep.mubr.bf16.mxu0 0
        %2882 = vmatmul.mubr.bf16.gmra.mrb[0].mxu0 %v2510
        %v2883 = vpop.f32.mrb[0].mxu0
        %v2884 = vadd.f32 0.0, %v2883
        %v2885 = vpop.f32.mrb[0].mxu0
        %v2886 = vpop.f32.mrb[0].mxu0
        %v2887 = vadd.f32 0.0, %v2886
        %v2888 = vpop.f32.mrb[0].mxu0
        %2889 = vdwg.mxu0
        %v2890 = vmul.f32 %v2423, %v2723
        %v2891 = vmul.f32 %v2424, %v2726
        %v2892 = vmul.f32 %v2425, %v2731
        %v2893 = vmul.f32 %v2426, %v2734
        %v2894 = vmul.f32 %v2427, %v2739
        %v2895 = vmul.f32 %v2428, %v2742
        %v2896 = vmul.f32 %v2429, %v2747
        %v2897 = vmul.f32 %v2430, %v2750
        %v2898 = vmul.f32 %v2431, %v2755
        %v2899 = vmul.f32 %v2432, %v2758
        %v2900 = vmul.f32 %v2433, %v2763
        %v2901 = vmul.f32 %v2434, %v2766
        %v2902 = vmul.f32 %v2435, %v2771
        %v2903 = vmul.f32 %v2436, %v2774
        %v2904 = vmul.f32 %v2437, %v2779
        %v2905 = vmul.f32 %v2438, %v2782
        %v2906 = vmul.f32 %v2423, %v2385
        %v2907 = vmul.f32 %v2424, %v2387
        %v2908 = vmul.f32 %v2425, %v2389
        %v2909 = vmul.f32 %v2426, %v2391
        %v2910 = vmul.f32 %v2427, %v2393
        %v2911 = vmul.f32 %v2428, %v2395
        %v2912 = vmul.f32 %v2429, %v2397
        %v2913 = vmul.f32 %v2430, %v2399
        %v2914 = vmul.f32 %v2431, %v2401
        %v2915 = vmul.f32 %v2432, %v2403
        %v2916 = vmul.f32 %v2433, %v2405
        %v2917 = vmul.f32 %v2434, %v2407
        %v2918 = vmul.f32 %v2435, %v2409
        %v2919 = vmul.f32 %v2436, %v2411
        %v2920 = vmul.f32 %v2437, %v2413
        %v2921 = vmul.f32 %v2438, %v2415
        %v2922 = vmul.f32 %v2906, %v1792
        %v2923 = vmul.f32 %v2907, %v1794
        %v2924 = vmul.f32 %v2908, %v1796
        %v2925 = vmul.f32 %v2909, %v1798
        %v2926 = vmul.f32 %v2910, %v1800
        %v2927 = vmul.f32 %v2911, %v1802
        %v2928 = vmul.f32 %v2912, %v1804
        %v2929 = vmul.f32 %v2913, %v1806
        %v2930 = vmul.f32 %v2914, %v1808
        %v2931 = vmul.f32 %v2915, %v1810
        %v2932 = vmul.f32 %v2916, %v1812
        %v2933 = vmul.f32 %v2917, %v1814
        %v2934 = vmul.f32 %v2918, %v1816
        %v2935 = vmul.f32 %v2919, %v1818
        %v2936 = vmul.f32 %v2920, %v1820
        %v2937 = vmul.f32 %v2921, %v1822
        %v2938 = vmul.f32 %v2922, %v2828
        %v2939 = vmul.f32 %v2923, %v2831
        %v2940 = vmul.f32 %v2924, %v2836
        %v2941 = vmul.f32 %v2925, %v2839
        %v2942 = vmul.f32 %v2926, %v2844
        %v2943 = vmul.f32 %v2927, %v2847
        %v2944 = vmul.f32 %v2928, %v2852
        %v2945 = vmul.f32 %v2929, %v2855
        %v2946 = vmul.f32 %v2930, %v2860
        %v2947 = vmul.f32 %v2931, %v2863
        %v2948 = vmul.f32 %v2932, %v2868
        %v2949 = vmul.f32 %v2933, %v2871
        %v2950 = vmul.f32 %v2934, %v2876
        %v2951 = vmul.f32 %v2935, %v2879
        %v2952 = vmul.f32 %v2936, %v2884
        %v2953 = vmul.f32 %v2937, %v2887
        %v2954 = vadd.f32 %v2890, %v2938
        %v2955 = vadd.f32 %v2891, %v2939
        %v2956 = vadd.f32 %v2892, %v2940
        %v2957 = vadd.f32 %v2893, %v2941
        %v2958 = vadd.f32 %v2894, %v2942
        %v2959 = vadd.f32 %v2895, %v2943
        %v2960 = vadd.f32 %v2896, %v2944
        %v2961 = vadd.f32 %v2897, %v2945
        %v2962 = vadd.f32 %v2898, %v2946
        %v2963 = vadd.f32 %v2899, %v2947
        %v2964 = vadd.f32 %v2900, %v2948
        %v2965 = vadd.f32 %v2901, %v2949
        %v2966 = vadd.f32 %v2902, %v2950
        %v2967 = vadd.f32 %v2903, %v2951
        %v2968 = vadd.f32 %v2904, %v2952
        %v2969 = vadd.f32 %v2905, %v2953
        %v2970 = vmax.f32 %v2954, 0.0
        %v2971 = vmax.f32 %v2955, 0.0
        %v2972 = vmax.f32 %v2956, 0.0
        %v2973 = vmax.f32 %v2957, 0.0
        %v2974 = vmax.f32 %v2958, 0.0
        %v2975 = vmax.f32 %v2959, 0.0
        %v2976 = vmax.f32 %v2960, 0.0
        %v2977 = vmax.f32 %v2961, 0.0
        %v2978 = vmax.f32 %v2962, 0.0
        %v2979 = vmax.f32 %v2963, 0.0
        %v2980 = vmax.f32 %v2964, 0.0
        %v2981 = vmax.f32 %v2965, 0.0
        %v2982 = vmax.f32 %v2966, 0.0
        %v2983 = vmax.f32 %v2967, 0.0
        %v2984 = vmax.f32 %v2968, 0.0
        %v2985 = vmax.f32 %v2969, 0.0
        %v2986 = vmin.f32 %v2970, 1.0
        %v2987 = vmin.f32 %v2971, 1.0
        %v2988 = vmin.f32 %v2972, 1.0
        %v2989 = vmin.f32 %v2973, 1.0
        %v2990 = vmin.f32 %v2974, 1.0
        %v2991 = vmin.f32 %v2975, 1.0
        %v2992 = vmin.f32 %v2976, 1.0
        %v2993 = vmin.f32 %v2977, 1.0
        %v2994 = vmin.f32 %v2978, 1.0
        %v2995 = vmin.f32 %v2979, 1.0
        %v2996 = vmin.f32 %v2980, 1.0
        %v2997 = vmin.f32 %v2981, 1.0
        %v2998 = vmin.f32 %v2982, 1.0
        %v2999 = vmin.f32 %v2983, 1.0
        %v3000 = vmin.f32 %v2984, 1.0
        %v3001 = vmin.f32 %v2985, 1.0
        %v3002 = vpack.c.bf16 %v2987, %v2986
        %v3003 = vpack.c.bf16 %v2989, %v2988
        %v3004 = vpack.c.bf16 %v2991, %v2990
        %v3005 = vpack.c.bf16 %v2993, %v2992
        %v3006 = vpack.c.bf16 %v2995, %v2994
        %v3007 = vpack.c.bf16 %v2997, %v2996
        %v3008 = vpack.c.bf16 %v2999, %v2998
        %v3009 = vpack.c.bf16 %v3001, %v3000
        %v3010 = vld [vmem:[#allocation13] sm:$0xf]
        %v3011 = vld [vmem:[#allocation13 + $0x4] sm:$0xf]
        %v3012 = vld [vmem:[#allocation13 + $0x8] sm:$0xf]
        %v3013 = vld [vmem:[#allocation13 + $0xc] sm:$0xf]
        %v3014 = vld [vmem:[#allocation13 + $0x10] sm:$0xf]
        %v3015 = vld [vmem:[#allocation13 + $0x14] sm:$0xf]
        %v3016 = vld [vmem:[#allocation13 + $0x18] sm:$0xf]
        %v3017 = vld [vmem:[#allocation13 + $0x1c] sm:$0xf]
        %v3018 = vld [vmem:[#allocation13 + $0x20] sm:$0xf]
        %v3019 = vld [vmem:[#allocation13 + $0x24] sm:$0xf]
        %v3020 = vld [vmem:[#allocation13 + $0x28] sm:$0xf]
        %v3021 = vld [vmem:[#allocation13 + $0x2c] sm:$0xf]
        %v3022 = vld [vmem:[#allocation13 + $0x30] sm:$0xf]
        %v3023 = vld [vmem:[#allocation13 + $0x34] sm:$0xf]
        %v3024 = vld [vmem:[#allocation13 + $0x38] sm:$0xf]
        %v3025 = vld [vmem:[#allocation13 + $0x3c] sm:$0xf]
        %3026 = vxpose.xlu0.c.b16.start [1/8] %v3002, 128
        %3027 = vxpose.xlu0.c.b16.cont [2/8] %v3003, 128
        %3028 = vxpose.xlu0.c.b16.cont [3/8] %v3004, 128
        %3029 = vxpose.xlu0.c.b16.cont [4/8] %v3005, 128
        %3030 = vxpose.xlu0.c.b16.cont [5/8] %v3006, 128
        %3031 = vxpose.xlu0.c.b16.cont [6/8] %v3007, 128
        %3032 = vxpose.xlu0.c.b16.cont [7/8] %v3008, 128
        %3033 = vxpose.xlu0.c.b16.end [8/8] %v3009, 128
        %v3034 = vpop.trf.xlu0
        %v3035 = vpop.trf.xlu0
        %v3036 = vpop.trf.xlu0
        %v3037 = vpop.trf.xlu0
        %v3038 = vpop.trf.xlu0
        %v3039 = vpop.trf.xlu0
        %v3040 = vpop.trf.xlu0
        %v3041 = vpop.trf.xlu0
        %v3058 = vunpack.c.l.b16 %v3010
        %v3059 = vunpack.c.l.b16 %v3011
        %v3060 = vunpack.c.l.b16 %v3012
        %v3061 = vunpack.c.l.b16 %v3013
        %v3062 = vunpack.c.l.b16 %v3014
        %v3063 = vunpack.c.l.b16 %v3015
        %v3064 = vunpack.c.l.b16 %v3016
        %v3065 = vunpack.c.l.b16 %v3017
        %v3066 = vunpack.c.l.b16 %v3018
        %v3067 = vunpack.c.l.b16 %v3019
        %v3068 = vunpack.c.l.b16 %v3020
        %v3069 = vunpack.c.l.b16 %v3021
        %v3070 = vunpack.c.l.b16 %v3022
        %v3071 = vunpack.c.l.b16 %v3023
        %v3072 = vunpack.c.l.b16 %v3024
        %v3073 = vunpack.c.l.b16 %v3025
        %v3074 = vpack.c.b16 %v3059, %v3058
        %v3075 = vpack.c.b16 %v3061, %v3060
        %v3076 = vpack.c.b16 %v3063, %v3062
        %v3077 = vpack.c.b16 %v3065, %v3064
        %v3078 = vpack.c.b16 %v3067, %v3066
        %v3079 = vpack.c.b16 %v3069, %v3068
        %v3080 = vpack.c.b16 %v3071, %v3070
        %v3081 = vpack.c.b16 %v3073, %v3072
        %3090 = vmatprep.subr.bf16.mxu0 0
        %3091 = vmatpush1.bf16.msra.mxu0 %v3074
        %3092 = vmatprep.subr.bf16.mxu0 0
        %3093 = vmatpush1.bf16.msra.mxu0 %v3075
        %3094 = vmatprep.subr.bf16.mxu0 0
        %3095 = vmatpush1.bf16.msra.mxu0 %v3076
        %3096 = vmatprep.subr.bf16.mxu0 0
        %3097 = vmatpush1.bf16.msra.mxu0 %v3077
        %3098 = vmatprep.subr.bf16.mxu0 0
        %3099 = vmatpush1.bf16.msra.mxu0 %v3078
        %3100 = vmatprep.subr.bf16.mxu0 0
        %3101 = vmatpush1.bf16.msra.mxu0 %v3079
        %3102 = vmatprep.subr.bf16.mxu0 0
        %3103 = vmatpush1.bf16.msra.mxu0 %v3080
        %3104 = vmatprep.subr.bf16.mxu0 0
        %3105 = vmatpush1.bf16.msra.mxu0 %v3081
        %3106 = vmatprep.subr.bf16.mxu0 0
        %3107 = vmatpush1.bf16.msra.mxu0 0
        %3108 = vmatprep.subr.bf16.mxu0 0
        %3109 = vmatpush1.bf16.msra.mxu0 0
        %3110 = vmatprep.subr.bf16.mxu0 0
        %3111 = vmatpush1.bf16.msra.mxu0 0
        %3112 = vmatprep.subr.bf16.mxu0 0
        %3113 = vmatpush1.bf16.msra.mxu0 0
        %3114 = vmatprep.subr.bf16.mxu0 0
        %3115 = vmatpush1.bf16.msra.mxu0 0
        %3116 = vmatprep.subr.bf16.mxu0 0
        %3117 = vmatpush1.bf16.msra.mxu0 0
        %3118 = vmatprep.subr.bf16.mxu0 0
        %3119 = vmatpush1.bf16.msra.mxu0 0
        %3120 = vmatprep.subr.bf16.mxu0 0
        %3121 = vmatpush1.bf16.msra.mxu0 0
        %3122 = vmatprep.mubr.bf16.mxu0 0
        %3123 = vmatmul.mubr.bf16.gmra.mrb[0].mxu0 %v3034
        %v3124 = vpop.f32.mrb[0].mxu0
        %v3125 = vadd.f32 0.0, %v3124
        %v3126 = vpop.f32.mrb[0].mxu0
        %v3127 = vpop.f32.mrb[0].mxu0
        %v3128 = vadd.f32 0.0, %v3127
        %v3129 = vpop.f32.mrb[0].mxu0
        %3130 = vmatprep.mubr.bf16.mxu0 0
        %3131 = vmatmul.mubr.bf16.gmra.mrb[0].mxu0 %v3035
        %v3132 = vpop.f32.mrb[0].mxu0
        %v3133 = vadd.f32 0.0, %v3132
        %v3134 = vpop.f32.mrb[0].mxu0
        %v3135 = vpop.f32.mrb[0].mxu0
        %v3136 = vadd.f32 0.0, %v3135
        %v3137 = vpop.f32.mrb[0].mxu0
        %3138 = vmatprep.mubr.bf16.mxu0 0
        %3139 = vmatmul.mubr.bf16.gmra.mrb[0].mxu0 %v3036
        %v3140 = vpop.f32.mrb[0].mxu0
        %v3141 = vadd.f32 0.0, %v3140
        %v3142 = vpop.f32.mrb[0].mxu0
        %v3143 = vpop.f32.mrb[0].mxu0
        %v3144 = vadd.f32 0.0, %v3143
        %v3145 = vpop.f32.mrb[0].mxu0
        %3146 = vmatprep.mubr.bf16.mxu0 0
        %3147 = vmatmul.mubr.bf16.gmra.mrb[0].mxu0 %v3037
        %v3148 = vpop.f32.mrb[0].mxu0
        %v3149 = vadd.f32 0.0, %v3148
        %v3150 = vpop.f32.mrb[0].mxu0
        %v3151 = vpop.f32.mrb[0].mxu0
        %v3152 = vadd.f32 0.0, %v3151
        %v3153 = vpop.f32.mrb[0].mxu0
        %3154 = vmatprep.mubr.bf16.mxu0 0
        %3155 = vmatmul.mubr.bf16.gmra.mrb[0].mxu0 %v3038
        %v3156 = vpop.f32.mrb[0].mxu0
        %v3157 = vadd.f32 0.0, %v3156
        %v3158 = vpop.f32.mrb[0].mxu0
        %v3159 = vpop.f32.mrb[0].mxu0
        %v3160 = vadd.f32 0.0, %v3159
        %v3161 = vpop.f32.mrb[0].mxu0
        %3162 = vmatprep.mubr.bf16.mxu0 0
        %3163 = vmatmul.mubr.bf16.gmra.mrb[0].mxu0 %v3039
        %v3164 = vpop.f32.mrb[0].mxu0
        %v3165 = vadd.f32 0.0, %v3164
        %v3166 = vpop.f32.mrb[0].mxu0
        %v3167 = vpop.f32.mrb[0].mxu0
        %v3168 = vadd.f32 0.0, %v3167
        %v3169 = vpop.f32.mrb[0].mxu0
        %3170 = vmatprep.mubr.bf16.mxu0 0
        %3171 = vmatmul.mubr.bf16.gmra.mrb[0].mxu0 %v3040
        %v3172 = vpop.f32.mrb[0].mxu0
        %v3173 = vadd.f32 0.0, %v3172
        %v3174 = vpop.f32.mrb[0].mxu0
        %v3175 = vpop.f32.mrb[0].mxu0
        %v3176 = vadd.f32 0.0, %v3175
        %v3177 = vpop.f32.mrb[0].mxu0
        %3178 = vmatprep.mubr.bf16.mxu0 0
        %3179 = vmatmul.mubr.bf16.gmra.mrb[0].mxu0 %v3041
        %v3180 = vpop.f32.mrb[0].mxu0
        %v3181 = vadd.f32 0.0, %v3180
        %v3182 = vpop.f32.mrb[0].mxu0
        %v3183 = vpop.f32.mrb[0].mxu0
        %v3184 = vadd.f32 0.0, %v3183
        %v3185 = vpop.f32.mrb[0].mxu0
        %3186 = vdwg.mxu0
        %v3187 = vld [vmem:[#allocation15] sm:$0xff]
        %v3188 = vld [vmem:[#allocation15 + $0x8] sm:$0xff]
        %v3189 = vld [vmem:[#allocation15 + $0x10] sm:$0xff]
        %v3190 = vld [vmem:[#allocation15 + $0x18] sm:$0xff]
        %v3191 = vld [vmem:[#allocation15 + $0x20] sm:$0xff]
        %v3192 = vld [vmem:[#allocation15 + $0x28] sm:$0xff]
        %v3193 = vld [vmem:[#allocation15 + $0x30] sm:$0xff]
        %v3194 = vld [vmem:[#allocation15 + $0x38] sm:$0xff]
        %v3195 = vld [vmem:[#allocation15 + $0x40] sm:$0xff]
        %v3196 = vld [vmem:[#allocation15 + $0x48] sm:$0xff]
        %v3197 = vld [vmem:[#allocation15 + $0x50] sm:$0xff]
        %v3198 = vld [vmem:[#allocation15 + $0x58] sm:$0xff]
        %v3199 = vld [vmem:[#allocation15 + $0x60] sm:$0xff]
        %v3200 = vld [vmem:[#allocation15 + $0x68] sm:$0xff]
        %v3201 = vld [vmem:[#allocation15 + $0x70] sm:$0xff]
        %v3202 = vld [vmem:[#allocation15 + $0x78] sm:$0xff]
        %v3203 = vmul.f32 %v3125, %v3187
        %v3204 = vmul.f32 %v3128, %v3188
        %v3205 = vmul.f32 %v3133, %v3189
        %v3206 = vmul.f32 %v3136, %v3190
        %v3207 = vmul.f32 %v3141, %v3191
        %v3208 = vmul.f32 %v3144, %v3192
        %v3209 = vmul.f32 %v3149, %v3193
        %v3210 = vmul.f32 %v3152, %v3194
        %v3211 = vmul.f32 %v3157, %v3195
        %v3212 = vmul.f32 %v3160, %v3196
        %v3213 = vmul.f32 %v3165, %v3197
        %v3214 = vmul.f32 %v3168, %v3198
        %v3215 = vmul.f32 %v3173, %v3199
        %v3216 = vmul.f32 %v3176, %v3200
        %v3217 = vmul.f32 %v3181, %v3201
        %v3218 = vmul.f32 %v3184, %v3202
        %3219 = vst [vmem:[%s463] sm:$0xff] %v3203
        %3220 = vst [vmem:[%s463 + $0x8] sm:$0xff] %v3204
        %3221 = vst [vmem:[%s463 + $0x10] sm:$0xff] %v3205
        %3222 = vst [vmem:[%s463 + $0x18] sm:$0xff] %v3206
        %3223 = vst [vmem:[%s463 + $0x20] sm:$0xff] %v3207
        %3224 = vst [vmem:[%s463 + $0x28] sm:$0xff] %v3208
        %3225 = vst [vmem:[%s463 + $0x30] sm:$0xff] %v3209
        %3226 = vst [vmem:[%s463 + $0x38] sm:$0xff] %v3210
        %3227 = vst [vmem:[%s463 + $0x40] sm:$0xff] %v3211
        %3228 = vst [vmem:[%s463 + $0x48] sm:$0xff] %v3212
        %3229 = vst [vmem:[%s463 + $0x50] sm:$0xff] %v3213
        %3230 = vst [vmem:[%s463 + $0x58] sm:$0xff] %v3214
        %3231 = vst [vmem:[%s463 + $0x60] sm:$0xff] %v3215
        %3232 = vst [vmem:[%s463 + $0x68] sm:$0xff] %v3216
        %3233 = vst [vmem:[%s463 + $0x70] sm:$0xff] %v3217
        %3234 = vst [vmem:[%s463 + $0x78] sm:$0xff] %v3218
        %s3235 = sand.u32 %s226, 1
        %s3236 = scalar_lea.sflag [#allocation6], %s3235
        %s3237 = sand.u32 %s226, 1
        %s3238 = smul.addr %s3237, 128
        %s3239 = scalar_lea.vmem [#allocation16], %s3238
        // Predicated region
        $region81: #{tpu_custom_call.1} parent=51 // pred_check
          %p3240 = pneg %p236
        $region82: #{tpu_custom_call.1} parent=51 // pred_check_branch
          %3242 = sbr.rel (%p3240) target = $region84
        $region83: #{tpu_custom_call.1} parent=51 // pred_region
          %s3244 = ssub.s32 2048, 2048
          %3245 = vsyncadd %s3236, %s3244
          %s3246 = smul.addr %s35, 16
          %s3247 = smul.addr %s3246, 128
          %s3248 = scalar_lea.hbm %s9, %s3247
          %s3249 = sshll.u32 %s3239, 4
          %s3250 = int_to_ptr.vmem [resolvable:$true] %s3249
          %3255 = dma.vmem_to_hbm [thread:$0]  %s3250, 2048, %s3248, %s3236, 128, 128, 8
        $region84: #{tpu_custom_call.1} parent=51 // pred_fallthru
          _
      $region52: #{tpu_custom_call.1} parent=5 // pred_fallthru
        _
      %p3256 = scmp.le.s32.totalorder 2, %s30
      // Predicated region
      $region85: #{tpu_custom_call.1} parent=5 // pred_check
        %p3257 = pneg %p3256
      $region86: #{tpu_custom_call.1} parent=5 // pred_check_branch
        %3259 = sbr.rel (%p3257) target = $region88
      $region87: #{tpu_custom_call.1} parent=5 // pred_region
        %s3260 = ssub.s32 %s30, 2
        // Predicated region
        $region89: #{tpu_custom_call.1} parent=87 // pred_check
          %p3261 = pneg %p242
        $region90: #{tpu_custom_call.1} parent=87 // pred_check_branch
          %3263 = sbr.rel (%p3261) target = $region92
        $region91: #{tpu_custom_call.1} parent=87 // pred_region
          %s3264 = sand.u32 %s227, 1
          %s3265 = scalar_lea.sflag [#allocation6], %s3264
          %s3266 = sand.u32 %s227, 1
          %s3267 = smul.addr %s3266, 128
          %s3268 = scalar_lea.vmem [#allocation16], %s3267
          %3269 = dma.done %s3265, 2048
        $region92: #{tpu_custom_call.1} parent=87 // pred_fallthru
          _
      $region88: #{tpu_custom_call.1} parent=5 // pred_fallthru
        _
    $region6: #{tpu_custom_call.1} parent=1 // loop_footer
      %s34 = sadd.s32 1, %s30
    $region7: #{tpu_custom_call.1} parent=1 // loop_footer_branch
      %29 = sbr.rel target = $region3
    $region8: #{tpu_custom_call.1} parent=1 // loop_exit
      _
    %3270 = vsyncpa [#allocation5], 1
    %s3271 = scalar_lea.sflag [#allocation5], 1
    %3272 = vsyncpa %s3271, 1
    %3273 = vsyncpa [#allocation8], 1
    %s3274 = scalar_lea.sflag [#allocation8], 1
    %3275 = vsyncpa %s3274, 1
    %3276 = vsyncpa [#allocation11], 1
    %3277 = vsyncpa [#allocation14], 1
    %3278 = vsyncpa [#allocation6], 1
    %s3279 = scalar_lea.sflag [#allocation6], 1
    %3280 = vsyncpa %s3279, 1

</llo_original>
